<compile_context>
chip_gen: v6e
topology: v6e:2x2x1
jax: 0.10.0
libtpu: 0.0.40
codegen_flags: <defaults>
</compile_context>

<pallas_src>
import functools
import math

import jax
import jax.numpy as jnp
from jax.experimental import pallas as pl
from jax.experimental.pallas import tpu as pltpu

# Matmul operand dtype: bf16 engages the fast MXU path on v6e/v7x; accumulation
# is always f32 via preferred_element_type. Set to jnp.float32 to disable.
MM_DTYPE = jnp.bfloat16
NEG_INF = -1e30
SLAB_WIDTH = 128            # lane-dense parameter slab width
SLAB_ROW_ALIGN = 8          # every packed entry starts on an (8,128)-tile row


# ----------------------------------------------------------------------------
# The fused LSTR kernel (one grid step == one batch element)
# ----------------------------------------------------------------------------
def _lstr_kernel(x_ref, p_ref, out_ref, *, off, cfg):
    D = cfg["d_model"]
    H = cfg["num_heads"]
    hd = D // H
    L = cfg["long_memory_num_samples"]
    Wn = cfg["work_memory_num_samples"]
    dff = cfg["dim_feedforward"]
    Din = cfg["d_in"]
    C = cfg["num_classes"]
    Nq = cfg["num_queries"]
    scale = 1.0 / math.sqrt(hd)

    # ---- slab accessors: static, lane-offset-0, 8-row-aligned window loads ----
    def mat(row, k, n):
        return p_ref[row:row + k, 0:n]          # [k, n] f32 weight

    def vec(row, n):
        return p_ref[row:row + 1, 0:n]          # [1, n] f32 bias / gain

    # ---- matmul helpers: bf16 operands, f32 accumulation ----
    def mm(a, b):
        return jax.lax.dot_general(
            a.astype(MM_DTYPE), b.astype(MM_DTYPE),
            (((1,), (0,)), ((), ())), preferred_element_type=jnp.float32)

    def mm_nt(a, b):                            # contract last dims (no transpose)
        return jax.lax.dot_general(
            a.astype(MM_DTYPE), b.astype(MM_DTYPE),
            (((1,), (1,)), ((), ())), preferred_element_type=jnp.float32)

    def layer_norm(v, o, eps=1e-5):             # residual add done by caller
        mu = jnp.mean(v, axis=-1, keepdims=True)
        vc = v - mu
        var = jnp.mean(vc * vc, axis=-1, keepdims=True)
        return vc * jax.lax.rsqrt(var + eps) * vec(o["g"], D) + vec(o["b"], D)

    def softmax(s):
        s = s - jnp.max(s, axis=-1, keepdims=True)
        e = jnp.exp(s)
        return e * pl.reciprocal(jnp.sum(e, axis=-1, keepdims=True), approx=True)

    def mha(q_in, kv_in, o, mask=None, is_self=False):
        """nn.MultiheadAttention semantics on one batch element."""
        w_in = mat(o["in_w"], D, 3 * D)         # [D, 3D]
        b_in = vec(o["in_b"], 3 * D)            # [1, 3D]
        if is_self:
            qkv = mm(q_in, w_in) + b_in         # single fused QKV matmul
            q, k, v = qkv[:, 0:D], qkv[:, D:2 * D], qkv[:, 2 * D:3 * D]
        else:
            # only Q of the query, only K/V of the memory (saves 1/3 in-proj)
            q = mm(q_in, w_in[:, 0:D]) + b_in[:, 0:D]
            kv = mm(kv_in, w_in[:, D:3 * D]) + b_in[:, D:3 * D]
            k, v = kv[:, 0:D], kv[:, D:2 * D]

        w_out = mat(o["out_w"], D, D)           # [D, D]
        acc = jnp.zeros((q_in.shape[0], D), jnp.float32)
        for h in range(H):                      # static unroll over heads
            lo, hi = h * hd, (h + 1) * hd
            s = mm_nt(q[:, lo:hi], k[:, lo:hi]) * scale       # [Tq, Tk]
            if mask is not None:
                s = s + mask
            ctx = mm(softmax(s), v[:, lo:hi])                 # [Tq, hd]
            # concat-over-heads + out-projection folded into per-head accumulate
            acc = acc + mm(ctx, w_out[lo:hi, :])
        return acc + vec(o["out_b"], D)

    def dec_layer(tgt, memory, o, tgt_mask=None):
        """Post-norm TransformerDecoderLayer (self-attn -> cross-attn -> FFN)."""
        sa = mha(tgt, tgt, o["self"], mask=tgt_mask, is_self=True)
        tgt = layer_norm(tgt + sa, o["n1"])
        ca = mha(tgt, memory, o["cross"])
        tgt = layer_norm(tgt + ca, o["n2"])
        h = jnp.maximum(mm(tgt, mat(o["lin1_w"], D, dff)) + vec(o["lin1_b"], dff), 0.0)
        ff = mm(h, mat(o["lin2_w"], dff, D)) + vec(o["lin2_b"], D)
        return layer_norm(tgt + ff, o["n3"])

    def decoder(tgt, memory, o, tgt_mask=None):
        y = tgt
        for lo_ in o["layers"]:
            y = dec_layer(y, memory, lo_, tgt_mask=tgt_mask)
        if "norm" in o:
            y = layer_norm(y, o["norm"])
        return y

    x = x_ref[0]                                              # [T, Din] f32

    # ---- long branch: feature head -> encoder (decoder with learned queries) ----
    lm = jnp.maximum(mm(x[0:L, :], mat(off["fh_long_w"], Din, D))
                     + vec(off["fh_long_b"], D), 0.0)         # [L, D]
    enc_q = mat(off["enc_query"], Nq, D)                      # [Nq, D]
    memory = decoder(enc_q, lm, off["enc"])                   # [Nq, D]

    # ---- work branch: feature head + positional encoding -> causal decoder ----
    wm = jnp.maximum(mm(x[L:L + Wn, :], mat(off["fh_work_w"], Din, D))
                     + vec(off["fh_work_b"], D), 0.0)         # [Wn, D]
    work = wm + mat(off["pe"], Wn, D)                         # PE(pad=0)

    # causal mask built in-kernel (no HBM mask input)
    ii = jax.lax.broadcasted_iota(jnp.int32, (Wn, Wn), 0)
    jj = jax.lax.broadcasted_iota(jnp.int32, (Wn, Wn), 1)
    causal = jnp.where(jj <= ii, 0.0, NEG_INF).astype(jnp.float32)

    output = decoder(work, memory, off["dec"], tgt_mask=causal)   # [Wn, D]

    # ---- classification head (future_enabled == False path) ----
    out_ref[0] = mm(output, mat(off["cls_w"], D, C)) + vec(off["cls_b"], C)


def lstr_forward(param_slab, off, visual, motion, audio, cfg):
    # modality concat is layout plumbing so the kernel sees one lane-denser input
    x = jnp.concatenate([visual, motion, audio], axis=-1).astype(jnp.float32)
    B, T, Din = x.shape
    Wn = cfg["work_memory_num_samples"]
    C = cfg["num_classes"]
    # TODO(synk): anticipation queries, future/CCI branch, GROUPS pooling and
    # EK100 verb/noun classifiers are disabled in this configuration.

    kcfg = dict(cfg)
    kcfg["d_in"] = Din
    kcfg["num_queries"] = cfg["enc_module"][0][0]

    kernel = functools.partial(_lstr_kernel, off=off, cfg=kcfg)

    return pl.pallas_call(
        kernel,
        out_shape=jax.ShapeDtypeStruct((B, Wn, C), jnp.float32),
        grid=(B,),
        in_specs=[
            pl.BlockSpec((1, T, Din), lambda b: (b, 0, 0)),          # one batch elem
            pl.BlockSpec(param_slab.shape, lambda b: (0, 0)),        # whole param slab
        ],
        out_specs=pl.BlockSpec((1, Wn, C), lambda b: (b, 0, 0)),
        compiler_params=pltpu.CompilerParams(
            dimension_semantics=("parallel",),   # batch across TCs on v7x
        ),
    )(x, param_slab)


# ----------------------------------------------------------------------------
# Parameter packing: everything into one lane-dense f32 [R, 128] slab
# ----------------------------------------------------------------------------
class _SlabPacker:
    def __init__(self, width=SLAB_WIDTH, row_align=SLAB_ROW_ALIGN):
        self.width = width
        self.row_align = row_align
        self.chunks = []
        self.rows = 0

    def add(self, arr):
        arr = jnp.asarray(arr, jnp.float32)
        if arr.ndim == 1:
            arr = arr[None, :]
        r, c = arr.shape
        assert c <= self.width, f"entry wider than slab: {c}"
        pr = (-r) % self.row_align
        offset = self.rows
        self.chunks.append(jnp.pad(arr, ((0, pr), (0, self.width - c))))
        self.rows += r + pr
        return offset

    def finalize(self):
        return jnp.concatenate(self.chunks, axis=0)


def pack_lstr_params(params, cfg):
    """Pack the nested parameter dict into (slab, static-offset dict)."""
    pk = _SlabPacker()
    off = {}

    def add_fh(p):
        w = jnp.concatenate([p["wv"], p["wm"], p["wa"]], axis=0)     # [Din, D]
        return pk.add(w), pk.add(p["b"])

    off["fh_long_w"], off["fh_long_b"] = add_fh(params["fh_long"])
    off["fh_work_w"], off["fh_work_b"] = add_fh(params["fh_work"])
    off["enc_query"] = pk.add(params["enc_query"])
    off["pe"] = pk.add(params["pe"][:cfg["work_memory_num_samples"]])

    def add_mha(p):
        return {"in_w": pk.add(p["in_proj_w"]), "in_b": pk.add(p["in_proj_b"]),
                "out_w": pk.add(p["out_proj_w"]), "out_b": pk.add(p["out_proj_b"])}

    def add_ln(g, b):
        return {"g": pk.add(g), "b": pk.add(b)}

    def add_decoder(dp):
        o = {"layers": []}
        for lp in dp["layers"]:
            o["layers"].append({
                "self": add_mha(lp["self_attn"]),
                "cross": add_mha(lp["cross_attn"]),
                "n1": add_ln(lp["norm1_g"], lp["norm1_b"]),
                "n2": add_ln(lp["norm2_g"], lp["norm2_b"]),
                "n3": add_ln(lp["norm3_g"], lp["norm3_b"]),
                "lin1_w": pk.add(lp["lin1_w"]), "lin1_b": pk.add(lp["lin1_b"]),
                "lin2_w": pk.add(lp["lin2_w"]), "lin2_b": pk.add(lp["lin2_b"]),
            })
        if "norm_g" in dp:
            o["norm"] = add_ln(dp["norm_g"], dp["norm_b"])
        return o

    off["enc"] = add_decoder(params["enc_module"])
    off["dec"] = add_decoder(params["dec_module"])
    off["cls_w"] = pk.add(params["cls_w"])
    off["cls_b"] = pk.add(params["cls_b"])

    return pk.finalize(), off


# ----------------------------------------------------------------------------
# Parameter initialization (deterministic synthetic weights, pre-transposed)
# ----------------------------------------------------------------------------
def sinusoidal_pe(max_len, d_model):
    pos = jnp.arange(max_len, dtype=jnp.float32)[:, None]
    div = jnp.exp(jnp.arange(0, d_model, 2, dtype=jnp.float32)
                  * (-math.log(10000.0) / d_model))
    pe = jnp.zeros((max_len, d_model), jnp.float32)
    pe = pe.at[:, 0::2].set(jnp.sin(pos * div))
    pe = pe.at[:, 1::2].set(jnp.cos(pos * div))
    return pe


def _init_feature_head(key, dv, dm, da, d, scale=0.05):
    kv, km, ka = jax.random.split(key, 3)
    return {"wv": jax.random.normal(kv, (dv, d), jnp.float32) * scale,
            "wm": jax.random.normal(km, (dm, d), jnp.float32) * scale,
            "wa": jax.random.normal(ka, (da, d), jnp.float32) * scale,
            "b": jnp.zeros((1, d), jnp.float32)}


def _init_mha(key, d, scale=0.05):
    k1, k2 = jax.random.split(key)
    return {"in_proj_w": jax.random.normal(k1, (d, 3 * d), jnp.float32) * scale,
            "in_proj_b": jnp.zeros((1, 3 * d), jnp.float32),
            "out_proj_w": jax.random.normal(k2, (d, d), jnp.float32) * scale,
            "out_proj_b": jnp.zeros((1, d), jnp.float32)}


def _init_dec_layer(key, d, dff, scale=0.05):
    ks = jax.random.split(key, 4)
    return {
        "self_attn": _init_mha(ks[0], d),
        "cross_attn": _init_mha(ks[1], d),
        "norm1_g": jnp.ones((1, d), jnp.float32), "norm1_b": jnp.zeros((1, d), jnp.float32),
        "norm2_g": jnp.ones((1, d), jnp.float32), "norm2_b": jnp.zeros((1, d), jnp.float32),
        "norm3_g": jnp.ones((1, d), jnp.float32), "norm3_b": jnp.zeros((1, d), jnp.float32),
        "lin1_w": jax.random.normal(ks[2], (d, dff), jnp.float32) * scale,
        "lin1_b": jnp.zeros((1, dff), jnp.float32),
        "lin2_w": jax.random.normal(ks[3], (dff, d), jnp.float32) * scale,
        "lin2_b": jnp.zeros((1, d), jnp.float32),
    }


def _init_decoder(key, num_layers, final_norm, d, dff):
    ks = jax.random.split(key, num_layers)
    dp = {"layers": [_init_dec_layer(ks[i], d, dff) for i in range(num_layers)]}
    if final_norm:
        dp["norm_g"] = jnp.ones((1, d), jnp.float32)
        dp["norm_b"] = jnp.zeros((1, d), jnp.float32)
    return dp


def init_lstr_params(key, cfg, dv, dm, da):
    D, dff = cfg["d_model"], cfg["dim_feedforward"]
    ks = jax.random.split(key, 6)
    nq, enc_layers, enc_norm = cfg["enc_module"][0]
    _, dec_layers, dec_norm = cfg["dec_module"]
    return {
        "fh_long": _init_feature_head(ks[0], dv, dm, da, D),
        "fh_work": _init_feature_head(ks[1], dv, dm, da, D),
        "enc_query": jax.random.normal(ks[2], (nq, D), jnp.float32) * 0.05,
        "enc_module": _init_decoder(ks[3], enc_layers, enc_norm, D, dff),
        "dec_module": _init_decoder(ks[4], dec_layers, dec_norm, D, dff),
        "cls_w": jax.random.normal(ks[5], (D, cfg["num_classes"]), jnp.float32) * 0.05,
        "cls_b": jnp.zeros((1, cfg["num_classes"]), jnp.float32),
        "pe": sinusoidal_pe(128, D),
    }


# ----------------------------------------------------------------------------
if __name__ == "__main__":
    cfg = {
        "long_memory_num_samples": 16,
        "work_memory_num_samples": 8,
        "anticipation_num_samples": 0,
        "future_num_samples": 0,       # future / CCI branch disabled
        "d_model": 32,
        "num_heads": 4,
        "dim_feedforward": 64,
        "num_classes": 10,
        "enc_module": [[8, 1, True]],  # [num_queries, num_layers, final_norm]
        "dec_module": [-1, 1, True],
        "groups": 0,
    }
    B = 2
    T = cfg["long_memory_num_samples"] + cfg["work_memory_num_samples"]  # 24
    Dv, Dm, Da = 16, 16, 8

    key = jax.random.PRNGKey(0)
    kv, km, ka, kp = jax.random.split(key, 4)
    visual = jax.random.normal(kv, (B, T, Dv), jnp.float32)
    motion = jax.random.normal(km, (B, T, Dm), jnp.float32)
    audio = jax.random.normal(ka, (B, T, Da), jnp.float32)

    params = init_lstr_params(kp, cfg, Dv, Dm, Da)
    param_slab, off = pack_lstr_params(params, cfg)   # one [R,128] f32 slab

    fwd = jax.jit(lambda p, v, m, a: lstr_forward(p, off, v, m, a, cfg))
    out = fwd(param_slab, visual, motion, audio)
    jax.block_until_ready(out)

    assert out.shape == (B, cfg["work_memory_num_samples"], cfg["num_classes"])
    assert bool(jnp.all(jnp.isfinite(out)))
    print("KERNEL_OK")
</pallas_src>

<mosaic_0001>
module attributes {stable_mosaic.version = 11 : i64} {
  func.func @_lstr_kernel(%arg0: i32, %arg1: memref<1x24x40xf32, #tpu.memory_space<vmem>>, %arg2: memref<824x128xf32, #tpu.memory_space<vmem>>, %arg3: memref<1x8x10xf32, #tpu.memory_space<vmem>>) attributes {dimension_semantics = [#tpu.dimension_semantics<parallel>], iteration_bounds = array<i64: 2>, scalar_prefetch = 0 : i64, scratch_operands = 0 : i64, tpu.core_type = #tpu.core_type<tc>, window_params = [{transform_indices = @transform_0, window_bounds = array<i64: 1, 24, 40>}, {pipeline_mode = #tpu.pipeline_mode<synchronous>, transform_indices = @transform_1, window_bounds = array<i64: 824, 128>}, {transform_indices = @transform_2, window_bounds = array<i64: 1, 8, 10>}]} {
    %c0 = arith.constant 0 : index
    %c0_0 = arith.constant 0 : index
    %c0_1 = arith.constant 0 : index
    %0 = vector.load %arg1[%c0, %c0_0, %c0_1] : memref<1x24x40xf32, #tpu.memory_space<vmem>>, vector<1x24x40xf32>
    %1 = vector.shape_cast %0 : vector<1x24x40xf32> to vector<24x40xf32>
    %2 = vector.extract_strided_slice %1 {offsets = [0, 0], sizes = [16, 40], strides = [1, 1]} : vector<24x40xf32> to vector<16x40xf32>
    %c0_2 = arith.constant 0 : index
    %c0_3 = arith.constant 0 : index
    %3 = vector.load %arg2[%c0_2, %c0_3] : memref<824x128xf32, #tpu.memory_space<vmem>>, vector<40x32xf32>
    %4 = arith.truncf %2 : vector<16x40xf32> to vector<16x40xbf16>
    %5 = arith.truncf %3 : vector<40x32xf32> to vector<40x32xbf16>
    %cst = arith.constant dense<0.000000e+00> : vector<16x32xf32>
    %6 = tpu.matmul %4, %5, %cst {dimension_numbers = #tpu.dot_dimension_numbers<[1], [0], [0], [1], [0, 0, 1, 1], [], []>} : vector<16x40xbf16>, vector<40x32xbf16>, vector<16x32xf32> -> vector<16x32xf32>
    %c40 = arith.constant 40 : index
    %c0_4 = arith.constant 0 : index
    %7 = vector.load %arg2[%c40, %c0_4] : memref<824x128xf32, #tpu.memory_space<vmem>>, vector<1x32xf32>
    %8 = vector.broadcast %7 : vector<1x32xf32> to vector<16x32xf32>
    %9 = arith.addf %6, %8 : vector<16x32xf32>
    %cst_5 = arith.constant 0.000000e+00 : f32
    %10 = vector.broadcast %cst_5 : f32 to vector<16x32xf32>
    %11 = arith.maximumf %9, %10 : vector<16x32xf32>
    %c96 = arith.constant 96 : index
    %c0_6 = arith.constant 0 : index
    %12 = vector.load %arg2[%c96, %c0_6] : memref<824x128xf32, #tpu.memory_space<vmem>>, vector<8x32xf32>
    %c112 = arith.constant 112 : index
    %c0_7 = arith.constant 0 : index
    %13 = vector.load %arg2[%c112, %c0_7] : memref<824x128xf32, #tpu.memory_space<vmem>>, vector<32x96xf32>
    %c144 = arith.constant 144 : index
    %c0_8 = arith.constant 0 : index
    %14 = vector.load %arg2[%c144, %c0_8] : memref<824x128xf32, #tpu.memory_space<vmem>>, vector<1x96xf32>
    %15 = arith.truncf %12 : vector<8x32xf32> to vector<8x32xbf16>
    %16 = arith.truncf %13 : vector<32x96xf32> to vector<32x96xbf16>
    %cst_9 = arith.constant dense<0.000000e+00> : vector<8x96xf32>
    %17 = tpu.matmul %15, %16, %cst_9 {dimension_numbers = #tpu.dot_dimension_numbers<[1], [0], [0], [1], [0, 0, 1, 1], [], []>} : vector<8x32xbf16>, vector<32x96xbf16>, vector<8x96xf32> -> vector<8x96xf32>
    %18 = vector.broadcast %14 : vector<1x96xf32> to vector<8x96xf32>
    %19 = arith.addf %17, %18 : vector<8x96xf32>
    %20 = vector.extract_strided_slice %19 {offsets = [0, 0], sizes = [8, 32], strides = [1, 1]} : vector<8x96xf32> to vector<8x32xf32>
    %21 = vector.extract_strided_slice %19 {offsets = [0, 32], sizes = [8, 32], strides = [1, 1]} : vector<8x96xf32> to vector<8x32xf32>
    %22 = vector.extract_strided_slice %19 {offsets = [0, 64], sizes = [8, 32], strides = [1, 1]} : vector<8x96xf32> to vector<8x32xf32>
    %c152 = arith.constant 152 : index
    %c0_10 = arith.constant 0 : index
    %23 = vector.load %arg2[%c152, %c0_10] : memref<824x128xf32, #tpu.memory_space<vmem>>, vector<32x32xf32>
    %cst_11 = arith.constant 0.000000e+00 : f32
    %24 = vector.broadcast %cst_11 : f32 to vector<8x32xf32>
    %25 = vector.extract_strided_slice %20 {offsets = [0, 0], sizes = [8, 8], strides = [1, 1]} : vector<8x32xf32> to vector<8x8xf32>
    %26 = vector.extract_strided_slice %21 {offsets = [0, 0], sizes = [8, 8], strides = [1, 1]} : vector<8x32xf32> to vector<8x8xf32>
    %27 = arith.truncf %25 : vector<8x8xf32> to vector<8x8xbf16>
    %28 = arith.truncf %26 : vector<8x8xf32> to vector<8x8xbf16>
    %cst_12 = arith.constant dense<0.000000e+00> : vector<8x8xf32>
    %29 = tpu.matmul %27, %28, %cst_12 {dimension_numbers = #tpu.dot_dimension_numbers<[1], [1], [0], [0], [0, 0, 1, 0], [], []>} : vector<8x8xbf16>, vector<8x8xbf16>, vector<8x8xf32> -> vector<8x8xf32>
    %cst_13 = arith.constant 0.353553385 : f32
    %30 = vector.broadcast %cst_13 : f32 to vector<8x8xf32>
    %31 = arith.mulf %29, %30 : vector<8x8xf32>
    %cst_14 = arith.constant dense<0xFF800000> : vector<8xf32>
    %32 = vector.multi_reduction <maximumf>, %31, %cst_14 [1] : vector<8x8xf32> to vector<8xf32>
    %33 = vector.shape_cast %32 : vector<8xf32> to vector<8x1xf32>
    %34 = vector.broadcast %33 : vector<8x1xf32> to vector<8x8xf32>
    %35 = arith.subf %31, %34 : vector<8x8xf32>
    %36 = math.exp %35 : vector<8x8xf32>
    %cst_15 = arith.constant dense<0.000000e+00> : vector<8xf32>
    %37 = vector.multi_reduction <add>, %36, %cst_15 [1] : vector<8x8xf32> to vector<8xf32>
    %38 = vector.shape_cast %37 : vector<8xf32> to vector<8x1xf32>
    %39 = tpu.reciprocal %38 {approx = true} : vector<8x1xf32> -> vector<8x1xf32>
    %40 = vector.broadcast %39 : vector<8x1xf32> to vector<8x8xf32>
    %41 = arith.mulf %36, %40 : vector<8x8xf32>
    %42 = vector.extract_strided_slice %22 {offsets = [0, 0], sizes = [8, 8], strides = [1, 1]} : vector<8x32xf32> to vector<8x8xf32>
    %43 = arith.truncf %41 : vector<8x8xf32> to vector<8x8xbf16>
    %44 = arith.truncf %42 : vector<8x8xf32> to vector<8x8xbf16>
    %cst_16 = arith.constant dense<0.000000e+00> : vector<8x8xf32>
    %45 = tpu.matmul %43, %44, %cst_16 {dimension_numbers = #tpu.dot_dimension_numbers<[1], [0], [0], [1], [0, 0, 1, 1], [], []>} : vector<8x8xbf16>, vector<8x8xbf16>, vector<8x8xf32> -> vector<8x8xf32>
    %46 = vector.extract_strided_slice %23 {offsets = [0, 0], sizes = [8, 32], strides = [1, 1]} : vector<32x32xf32> to vector<8x32xf32>
    %47 = arith.truncf %45 : vector<8x8xf32> to vector<8x8xbf16>
    %48 = arith.truncf %46 : vector<8x32xf32> to vector<8x32xbf16>
    %cst_17 = arith.constant dense<0.000000e+00> : vector<8x32xf32>
    %49 = tpu.matmul %47, %48, %cst_17 {dimension_numbers = #tpu.dot_dimension_numbers<[1], [0], [0], [1], [0, 0, 1, 1], [], []>} : vector<8x8xbf16>, vector<8x32xbf16>, vector<8x32xf32> -> vector<8x32xf32>
    %50 = arith.addf %24, %49 : vector<8x32xf32>
    %51 = vector.extract_strided_slice %20 {offsets = [0, 8], sizes = [8, 8], strides = [1, 1]} : vector<8x32xf32> to vector<8x8xf32>
    %52 = vector.extract_strided_slice %21 {offsets = [0, 8], sizes = [8, 8], strides = [1, 1]} : vector<8x32xf32> to vector<8x8xf32>
    %53 = arith.truncf %51 : vector<8x8xf32> to vector<8x8xbf16>
    %54 = arith.truncf %52 : vector<8x8xf32> to vector<8x8xbf16>
    %cst_18 = arith.constant dense<0.000000e+00> : vector<8x8xf32>
    %55 = tpu.matmul %53, %54, %cst_18 {dimension_numbers = #tpu.dot_dimension_numbers<[1], [1], [0], [0], [0, 0, 1, 0], [], []>} : vector<8x8xbf16>, vector<8x8xbf16>, vector<8x8xf32> -> vector<8x8xf32>
    %cst_19 = arith.constant 0.353553385 : f32
    %56 = vector.broadcast %cst_19 : f32 to vector<8x8xf32>
    %57 = arith.mulf %55, %56 : vector<8x8xf32>
    %cst_20 = arith.constant dense<0xFF800000> : vector<8xf32>
    %58 = vector.multi_reduction <maximumf>, %57, %cst_20 [1] : vector<8x8xf32> to vector<8xf32>
    %59 = vector.shape_cast %58 : vector<8xf32> to vector<8x1xf32>
    %60 = vector.broadcast %59 : vector<8x1xf32> to vector<8x8xf32>
    %61 = arith.subf %57, %60 : vector<8x8xf32>
    %62 = math.exp %61 : vector<8x8xf32>
    %cst_21 = arith.constant dense<0.000000e+00> : vector<8xf32>
    %63 = vector.multi_reduction <add>, %62, %cst_21 [1] : vector<8x8xf32> to vector<8xf32>
    %64 = vector.shape_cast %63 : vector<8xf32> to vector<8x1xf32>
    %65 = tpu.reciprocal %64 {approx = true} : vector<8x1xf32> -> vector<8x1xf32>
    %66 = vector.broadcast %65 : vector<8x1xf32> to vector<8x8xf32>
    %67 = arith.mulf %62, %66 : vector<8x8xf32>
    %68 = vector.extract_strided_slice %22 {offsets = [0, 8], sizes = [8, 8], strides = [1, 1]} : vector<8x32xf32> to vector<8x8xf32>
    %69 = arith.truncf %67 : vector<8x8xf32> to vector<8x8xbf16>
    %70 = arith.truncf %68 : vector<8x8xf32> to vector<8x8xbf16>
    %cst_22 = arith.constant dense<0.000000e+00> : vector<8x8xf32>
    %71 = tpu.matmul %69, %70, %cst_22 {dimension_numbers = #tpu.dot_dimension_numbers<[1], [0], [0], [1], [0, 0, 1, 1], [], []>} : vector<8x8xbf16>, vector<8x8xbf16>, vector<8x8xf32> -> vector<8x8xf32>
    %72 = vector.extract_strided_slice %23 {offsets = [8, 0], sizes = [8, 32], strides = [1, 1]} : vector<32x32xf32> to vector<8x32xf32>
    %73 = arith.truncf %71 : vector<8x8xf32> to vector<8x8xbf16>
    %74 = arith.truncf %72 : vector<8x32xf32> to vector<8x32xbf16>
    %cst_23 = arith.constant dense<0.000000e+00> : vector<8x32xf32>
    %75 = tpu.matmul %73, %74, %cst_23 {dimension_numbers = #tpu.dot_dimension_numbers<[1], [0], [0], [1], [0, 0, 1, 1], [], []>} : vector<8x8xbf16>, vector<8x32xbf16>, vector<8x32xf32> -> vector<8x32xf32>
    %76 = arith.addf %50, %75 : vector<8x32xf32>
    %77 = vector.extract_strided_slice %20 {offsets = [0, 16], sizes = [8, 8], strides = [1, 1]} : vector<8x32xf32> to vector<8x8xf32>
    %78 = vector.extract_strided_slice %21 {offsets = [0, 16], sizes = [8, 8], strides = [1, 1]} : vector<8x32xf32> to vector<8x8xf32>
    %79 = arith.truncf %77 : vector<8x8xf32> to vector<8x8xbf16>
    %80 = arith.truncf %78 : vector<8x8xf32> to vector<8x8xbf16>
    %cst_24 = arith.constant dense<0.000000e+00> : vector<8x8xf32>
    %81 = tpu.matmul %79, %80, %cst_24 {dimension_numbers = #tpu.dot_dimension_numbers<[1], [1], [0], [0], [0, 0, 1, 0], [], []>} : vector<8x8xbf16>, vector<8x8xbf16>, vector<8x8xf32> -> vector<8x8xf32>
    %cst_25 = arith.constant 0.353553385 : f32
    %82 = vector.broadcast %cst_25 : f32 to vector<8x8xf32>
    %83 = arith.mulf %81, %82 : vector<8x8xf32>
    %cst_26 = arith.constant dense<0xFF800000> : vector<8xf32>
    %84 = vector.multi_reduction <maximumf>, %83, %cst_26 [1] : vector<8x8xf32> to vector<8xf32>
    %85 = vector.shape_cast %84 : vector<8xf32> to vector<8x1xf32>
    %86 = vector.broadcast %85 : vector<8x1xf32> to vector<8x8xf32>
    %87 = arith.subf %83, %86 : vector<8x8xf32>
    %88 = math.exp %87 : vector<8x8xf32>
    %cst_27 = arith.constant dense<0.000000e+00> : vector<8xf32>
    %89 = vector.multi_reduction <add>, %88, %cst_27 [1] : vector<8x8xf32> to vector<8xf32>
    %90 = vector.shape_cast %89 : vector<8xf32> to vector<8x1xf32>
    %91 = tpu.reciprocal %90 {approx = true} : vector<8x1xf32> -> vector<8x1xf32>
    %92 = vector.broadcast %91 : vector<8x1xf32> to vector<8x8xf32>
    %93 = arith.mulf %88, %92 : vector<8x8xf32>
    %94 = vector.extract_strided_slice %22 {offsets = [0, 16], sizes = [8, 8], strides = [1, 1]} : vector<8x32xf32> to vector<8x8xf32>
    %95 = arith.truncf %93 : vector<8x8xf32> to vector<8x8xbf16>
    %96 = arith.truncf %94 : vector<8x8xf32> to vector<8x8xbf16>
    %cst_28 = arith.constant dense<0.000000e+00> : vector<8x8xf32>
    %97 = tpu.matmul %95, %96, %cst_28 {dimension_numbers = #tpu.dot_dimension_numbers<[1], [0], [0], [1], [0, 0, 1, 1], [], []>} : vector<8x8xbf16>, vector<8x8xbf16>, vector<8x8xf32> -> vector<8x8xf32>
    %98 = vector.extract_strided_slice %23 {offsets = [16, 0], sizes = [8, 32], strides = [1, 1]} : vector<32x32xf32> to vector<8x32xf32>
    %99 = arith.truncf %97 : vector<8x8xf32> to vector<8x8xbf16>
    %100 = arith.truncf %98 : vector<8x32xf32> to vector<8x32xbf16>
    %cst_29 = arith.constant dense<0.000000e+00> : vector<8x32xf32>
    %101 = tpu.matmul %99, %100, %cst_29 {dimension_numbers = #tpu.dot_dimension_numbers<[1], [0], [0], [1], [0, 0, 1, 1], [], []>} : vector<8x8xbf16>, vector<8x32xbf16>, vector<8x32xf32> -> vector<8x32xf32>
    %102 = arith.addf %76, %101 : vector<8x32xf32>
    %103 = vector.extract_strided_slice %20 {offsets = [0, 24], sizes = [8, 8], strides = [1, 1]} : vector<8x32xf32> to vector<8x8xf32>
    %104 = vector.extract_strided_slice %21 {offsets = [0, 24], sizes = [8, 8], strides = [1, 1]} : vector<8x32xf32> to vector<8x8xf32>
    %105 = arith.truncf %103 : vector<8x8xf32> to vector<8x8xbf16>
    %106 = arith.truncf %104 : vector<8x8xf32> to vector<8x8xbf16>
    %cst_30 = arith.constant dense<0.000000e+00> : vector<8x8xf32>
    %107 = tpu.matmul %105, %106, %cst_30 {dimension_numbers = #tpu.dot_dimension_numbers<[1], [1], [0], [0], [0, 0, 1, 0], [], []>} : vector<8x8xbf16>, vector<8x8xbf16>, vector<8x8xf32> -> vector<8x8xf32>
    %cst_31 = arith.constant 0.353553385 : f32
    %108 = vector.broadcast %cst_31 : f32 to vector<8x8xf32>
    %109 = arith.mulf %107, %108 : vector<8x8xf32>
    %cst_32 = arith.constant dense<0xFF800000> : vector<8xf32>
    %110 = vector.multi_reduction <maximumf>, %109, %cst_32 [1] : vector<8x8xf32> to vector<8xf32>
    %111 = vector.shape_cast %110 : vector<8xf32> to vector<8x1xf32>
    %112 = vector.broadcast %111 : vector<8x1xf32> to vector<8x8xf32>
    %113 = arith.subf %109, %112 : vector<8x8xf32>
    %114 = math.exp %113 : vector<8x8xf32>
    %cst_33 = arith.constant dense<0.000000e+00> : vector<8xf32>
    %115 = vector.multi_reduction <add>, %114, %cst_33 [1] : vector<8x8xf32> to vector<8xf32>
    %116 = vector.shape_cast %115 : vector<8xf32> to vector<8x1xf32>
    %117 = tpu.reciprocal %116 {approx = true} : vector<8x1xf32> -> vector<8x1xf32>
    %118 = vector.broadcast %117 : vector<8x1xf32> to vector<8x8xf32>
    %119 = arith.mulf %114, %118 : vector<8x8xf32>
    %120 = vector.extract_strided_slice %22 {offsets = [0, 24], sizes = [8, 8], strides = [1, 1]} : vector<8x32xf32> to vector<8x8xf32>
    %121 = arith.truncf %119 : vector<8x8xf32> to vector<8x8xbf16>
    %122 = arith.truncf %120 : vector<8x8xf32> to vector<8x8xbf16>
    %cst_34 = arith.constant dense<0.000000e+00> : vector<8x8xf32>
    %123 = tpu.matmul %121, %122, %cst_34 {dimension_numbers = #tpu.dot_dimension_numbers<[1], [0], [0], [1], [0, 0, 1, 1], [], []>} : vector<8x8xbf16>, vector<8x8xbf16>, vector<8x8xf32> -> vector<8x8xf32>
    %124 = vector.extract_strided_slice %23 {offsets = [24, 0], sizes = [8, 32], strides = [1, 1]} : vector<32x32xf32> to vector<8x32xf32>
    %125 = arith.truncf %123 : vector<8x8xf32> to vector<8x8xbf16>
    %126 = arith.truncf %124 : vector<8x32xf32> to vector<8x32xbf16>
    %cst_35 = arith.constant dense<0.000000e+00> : vector<8x32xf32>
    %127 = tpu.matmul %125, %126, %cst_35 {dimension_numbers = #tpu.dot_dimension_numbers<[1], [0], [0], [1], [0, 0, 1, 1], [], []>} : vector<8x8xbf16>, vector<8x32xbf16>, vector<8x32xf32> -> vector<8x32xf32>
    %128 = arith.addf %102, %127 : vector<8x32xf32>
    %c184 = arith.constant 184 : index
    %c0_36 = arith.constant 0 : index
    %129 = vector.load %arg2[%c184, %c0_36] : memref<824x128xf32, #tpu.memory_space<vmem>>, vector<1x32xf32>
    %130 = vector.broadcast %129 : vector<1x32xf32> to vector<8x32xf32>
    %131 = arith.addf %128, %130 : vector<8x32xf32>
    %132 = arith.addf %12, %131 : vector<8x32xf32>
    %cst_37 = arith.constant dense<0.000000e+00> : vector<8xf32>
    %133 = vector.multi_reduction <add>, %132, %cst_37 [1] : vector<8x32xf32> to vector<8xf32>
    %134 = vector.shape_cast %133 : vector<8xf32> to vector<8x1xf32>
    %cst_38 = arith.constant 3.200000e+01 : f32
    %135 = vector.broadcast %cst_38 : f32 to vector<8x1xf32>
    %136 = arith.divf %134, %135 : vector<8x1xf32>
    %137 = vector.broadcast %136 : vector<8x1xf32> to vector<8x32xf32>
    %138 = arith.subf %132, %137 : vector<8x32xf32>
    %139 = arith.mulf %138, %138 : vector<8x32xf32>
    %cst_39 = arith.constant dense<0.000000e+00> : vector<8xf32>
    %140 = vector.multi_reduction <add>, %139, %cst_39 [1] : vector<8x32xf32> to vector<8xf32>
    %141 = vector.shape_cast %140 : vector<8xf32> to vector<8x1xf32>
    %cst_40 = arith.constant 3.200000e+01 : f32
    %142 = vector.broadcast %cst_40 : f32 to vector<8x1xf32>
    %143 = arith.divf %141, %142 : vector<8x1xf32>
    %cst_41 = arith.constant 9.99999974E-6 : f32
    %144 = vector.broadcast %cst_41 : f32 to vector<8x1xf32>
    %145 = arith.addf %143, %144 : vector<8x1xf32>
    %146 = math.rsqrt %145 : vector<8x1xf32>
    %147 = vector.broadcast %146 : vector<8x1xf32> to vector<8x32xf32>
    %148 = arith.mulf %138, %147 : vector<8x32xf32>
    %c272 = arith.constant 272 : index
    %c0_42 = arith.constant 0 : index
    %149 = vector.load %arg2[%c272, %c0_42] : memref<824x128xf32, #tpu.memory_space<vmem>>, vector<1x32xf32>
    %150 = vector.broadcast %149 : vector<1x32xf32> to vector<8x32xf32>
    %151 = arith.mulf %148, %150 : vector<8x32xf32>
    %c280 = arith.constant 280 : index
    %c0_43 = arith.constant 0 : index
    %152 = vector.load %arg2[%c280, %c0_43] : memref<824x128xf32, #tpu.memory_space<vmem>>, vector<1x32xf32>
    %153 = vector.broadcast %152 : vector<1x32xf32> to vector<8x32xf32>
    %154 = arith.addf %151, %153 : vector<8x32xf32>
    %c192 = arith.constant 192 : index
    %c0_44 = arith.constant 0 : index
    %155 = vector.load %arg2[%c192, %c0_44] : memref<824x128xf32, #tpu.memory_space<vmem>>, vector<32x96xf32>
    %c224 = arith.constant 224 : index
    %c0_45 = arith.constant 0 : index
    %156 = vector.load %arg2[%c224, %c0_45] : memref<824x128xf32, #tpu.memory_space<vmem>>, vector<1x96xf32>
    %157 = vector.extract_strided_slice %155 {offsets = [0, 0], sizes = [32, 32], strides = [1, 1]} : vector<32x96xf32> to vector<32x32xf32>
    %158 = arith.truncf %154 : vector<8x32xf32> to vector<8x32xbf16>
    %159 = arith.truncf %157 : vector<32x32xf32> to vector<32x32xbf16>
    %cst_46 = arith.constant dense<0.000000e+00> : vector<8x32xf32>
    %160 = tpu.matmul %158, %159, %cst_46 {dimension_numbers = #tpu.dot_dimension_numbers<[1], [0], [0], [1], [0, 0, 1, 1], [], []>} : vector<8x32xbf16>, vector<32x32xbf16>, vector<8x32xf32> -> vector<8x32xf32>
    %161 = vector.extract_strided_slice %156 {offsets = [0, 0], sizes = [1, 32], strides = [1, 1]} : vector<1x96xf32> to vector<1x32xf32>
    %162 = vector.broadcast %161 : vector<1x32xf32> to vector<8x32xf32>
    %163 = arith.addf %160, %162 : vector<8x32xf32>
    %164 = vector.extract_strided_slice %155 {offsets = [0, 32], sizes = [32, 64], strides = [1, 1]} : vector<32x96xf32> to vector<32x64xf32>
    %165 = arith.truncf %11 : vector<16x32xf32> to vector<16x32xbf16>
    %166 = arith.truncf %164 : vector<32x64xf32> to vector<32x64xbf16>
    %cst_47 = arith.constant dense<0.000000e+00> : vector<16x64xf32>
    %167 = tpu.matmul %165, %166, %cst_47 {dimension_numbers = #tpu.dot_dimension_numbers<[1], [0], [0], [1], [0, 0, 1, 1], [], []>} : vector<16x32xbf16>, vector<32x64xbf16>, vector<16x64xf32> -> vector<16x64xf32>
    %168 = vector.extract_strided_slice %156 {offsets = [0, 32], sizes = [1, 64], strides = [1, 1]} : vector<1x96xf32> to vector<1x64xf32>
    %169 = vector.broadcast %168 : vector<1x64xf32> to vector<16x64xf32>
    %170 = arith.addf %167, %169 : vector<16x64xf32>
    %171 = vector.extract_strided_slice %170 {offsets = [0, 0], sizes = [16, 32], strides = [1, 1]} : vector<16x64xf32> to vector<16x32xf32>
    %172 = vector.extract_strided_slice %170 {offsets = [0, 32], sizes = [16, 32], strides = [1, 1]} : vector<16x64xf32> to vector<16x32xf32>
    %c232 = arith.constant 232 : index
    %c0_48 = arith.constant 0 : index
    %173 = vector.load %arg2[%c232, %c0_48] : memref<824x128xf32, #tpu.memory_space<vmem>>, vector<32x32xf32>
    %cst_49 = arith.constant 0.000000e+00 : f32
    %174 = vector.broadcast %cst_49 : f32 to vector<8x32xf32>
    %175 = vector.extract_strided_slice %163 {offsets = [0, 0], sizes = [8, 8], strides = [1, 1]} : vector<8x32xf32> to vector<8x8xf32>
    %176 = vector.extract_strided_slice %171 {offsets = [0, 0], sizes = [16, 8], strides = [1, 1]} : vector<16x32xf32> to vector<16x8xf32>
    %177 = arith.truncf %175 : vector<8x8xf32> to vector<8x8xbf16>
    %178 = arith.truncf %176 : vector<16x8xf32> to vector<16x8xbf16>
    %cst_50 = arith.constant dense<0.000000e+00> : vector<8x16xf32>
    %179 = tpu.matmul %177, %178, %cst_50 {dimension_numbers = #tpu.dot_dimension_numbers<[1], [1], [0], [0], [0, 0, 1, 0], [], []>} : vector<8x8xbf16>, vector<16x8xbf16>, vector<8x16xf32> -> vector<8x16xf32>
    %cst_51 = arith.constant 0.353553385 : f32
    %180 = vector.broadcast %cst_51 : f32 to vector<8x16xf32>
    %181 = arith.mulf %179, %180 : vector<8x16xf32>
    %cst_52 = arith.constant dense<0xFF800000> : vector<8xf32>
    %182 = vector.multi_reduction <maximumf>, %181, %cst_52 [1] : vector<8x16xf32> to vector<8xf32>
    %183 = vector.shape_cast %182 : vector<8xf32> to vector<8x1xf32>
    %184 = vector.broadcast %183 : vector<8x1xf32> to vector<8x16xf32>
    %185 = arith.subf %181, %184 : vector<8x16xf32>
    %186 = math.exp %185 : vector<8x16xf32>
    %cst_53 = arith.constant dense<0.000000e+00> : vector<8xf32>
    %187 = vector.multi_reduction <add>, %186, %cst_53 [1] : vector<8x16xf32> to vector<8xf32>
    %188 = vector.shape_cast %187 : vector<8xf32> to vector<8x1xf32>
    %189 = tpu.reciprocal %188 {approx = true} : vector<8x1xf32> -> vector<8x1xf32>
    %190 = vector.broadcast %189 : vector<8x1xf32> to vector<8x16xf32>
    %191 = arith.mulf %186, %190 : vector<8x16xf32>
    %192 = vector.extract_strided_slice %172 {offsets = [0, 0], sizes = [16, 8], strides = [1, 1]} : vector<16x32xf32> to vector<16x8xf32>
    %193 = arith.truncf %191 : vector<8x16xf32> to vector<8x16xbf16>
    %194 = arith.truncf %192 : vector<16x8xf32> to vector<16x8xbf16>
    %cst_54 = arith.constant dense<0.000000e+00> : vector<8x8xf32>
    %195 = tpu.matmul %193, %194, %cst_54 {dimension_numbers = #tpu.dot_dimension_numbers<[1], [0], [0], [1], [0, 0, 1, 1], [], []>} : vector<8x16xbf16>, vector<16x8xbf16>, vector<8x8xf32> -> vector<8x8xf32>
    %196 = vector.extract_strided_slice %173 {offsets = [0, 0], sizes = [8, 32], strides = [1, 1]} : vector<32x32xf32> to vector<8x32xf32>
    %197 = arith.truncf %195 : vector<8x8xf32> to vector<8x8xbf16>
    %198 = arith.truncf %196 : vector<8x32xf32> to vector<8x32xbf16>
    %cst_55 = arith.constant dense<0.000000e+00> : vector<8x32xf32>
    %199 = tpu.matmul %197, %198, %cst_55 {dimension_numbers = #tpu.dot_dimension_numbers<[1], [0], [0], [1], [0, 0, 1, 1], [], []>} : vector<8x8xbf16>, vector<8x32xbf16>, vector<8x32xf32> -> vector<8x32xf32>
    %200 = arith.addf %174, %199 : vector<8x32xf32>
    %201 = vector.extract_strided_slice %163 {offsets = [0, 8], sizes = [8, 8], strides = [1, 1]} : vector<8x32xf32> to vector<8x8xf32>
    %202 = vector.extract_strided_slice %171 {offsets = [0, 8], sizes = [16, 8], strides = [1, 1]} : vector<16x32xf32> to vector<16x8xf32>
    %203 = arith.truncf %201 : vector<8x8xf32> to vector<8x8xbf16>
    %204 = arith.truncf %202 : vector<16x8xf32> to vector<16x8xbf16>
    %cst_56 = arith.constant dense<0.000000e+00> : vector<8x16xf32>
    %205 = tpu.matmul %203, %204, %cst_56 {dimension_numbers = #tpu.dot_dimension_numbers<[1], [1], [0], [0], [0, 0, 1, 0], [], []>} : vector<8x8xbf16>, vector<16x8xbf16>, vector<8x16xf32> -> vector<8x16xf32>
    %cst_57 = arith.constant 0.353553385 : f32
    %206 = vector.broadcast %cst_57 : f32 to vector<8x16xf32>
    %207 = arith.mulf %205, %206 : vector<8x16xf32>
    %cst_58 = arith.constant dense<0xFF800000> : vector<8xf32>
    %208 = vector.multi_reduction <maximumf>, %207, %cst_58 [1] : vector<8x16xf32> to vector<8xf32>
    %209 = vector.shape_cast %208 : vector<8xf32> to vector<8x1xf32>
    %210 = vector.broadcast %209 : vector<8x1xf32> to vector<8x16xf32>
    %211 = arith.subf %207, %210 : vector<8x16xf32>
    %212 = math.exp %211 : vector<8x16xf32>
    %cst_59 = arith.constant dense<0.000000e+00> : vector<8xf32>
    %213 = vector.multi_reduction <add>, %212, %cst_59 [1] : vector<8x16xf32> to vector<8xf32>
    %214 = vector.shape_cast %213 : vector<8xf32> to vector<8x1xf32>
    %215 = tpu.reciprocal %214 {approx = true} : vector<8x1xf32> -> vector<8x1xf32>
    %216 = vector.broadcast %215 : vector<8x1xf32> to vector<8x16xf32>
    %217 = arith.mulf %212, %216 : vector<8x16xf32>
    %218 = vector.extract_strided_slice %172 {offsets = [0, 8], sizes = [16, 8], strides = [1, 1]} : vector<16x32xf32> to vector<16x8xf32>
    %219 = arith.truncf %217 : vector<8x16xf32> to vector<8x16xbf16>
    %220 = arith.truncf %218 : vector<16x8xf32> to vector<16x8xbf16>
    %cst_60 = arith.constant dense<0.000000e+00> : vector<8x8xf32>
    %221 = tpu.matmul %219, %220, %cst_60 {dimension_numbers = #tpu.dot_dimension_numbers<[1], [0], [0], [1], [0, 0, 1, 1], [], []>} : vector<8x16xbf16>, vector<16x8xbf16>, vector<8x8xf32> -> vector<8x8xf32>
    %222 = vector.extract_strided_slice %173 {offsets = [8, 0], sizes = [8, 32], strides = [1, 1]} : vector<32x32xf32> to vector<8x32xf32>
    %223 = arith.truncf %221 : vector<8x8xf32> to vector<8x8xbf16>
    %224 = arith.truncf %222 : vector<8x32xf32> to vector<8x32xbf16>
    %cst_61 = arith.constant dense<0.000000e+00> : vector<8x32xf32>
    %225 = tpu.matmul %223, %224, %cst_61 {dimension_numbers = #tpu.dot_dimension_numbers<[1], [0], [0], [1], [0, 0, 1, 1], [], []>} : vector<8x8xbf16>, vector<8x32xbf16>, vector<8x32xf32> -> vector<8x32xf32>
    %226 = arith.addf %200, %225 : vector<8x32xf32>
    %227 = vector.extract_strided_slice %163 {offsets = [0, 16], sizes = [8, 8], strides = [1, 1]} : vector<8x32xf32> to vector<8x8xf32>
    %228 = vector.extract_strided_slice %171 {offsets = [0, 16], sizes = [16, 8], strides = [1, 1]} : vector<16x32xf32> to vector<16x8xf32>
    %229 = arith.truncf %227 : vector<8x8xf32> to vector<8x8xbf16>
    %230 = arith.truncf %228 : vector<16x8xf32> to vector<16x8xbf16>
    %cst_62 = arith.constant dense<0.000000e+00> : vector<8x16xf32>
    %231 = tpu.matmul %229, %230, %cst_62 {dimension_numbers = #tpu.dot_dimension_numbers<[1], [1], [0], [0], [0, 0, 1, 0], [], []>} : vector<8x8xbf16>, vector<16x8xbf16>, vector<8x16xf32> -> vector<8x16xf32>
    %cst_63 = arith.constant 0.353553385 : f32
    %232 = vector.broadcast %cst_63 : f32 to vector<8x16xf32>
    %233 = arith.mulf %231, %232 : vector<8x16xf32>
    %cst_64 = arith.constant dense<0xFF800000> : vector<8xf32>
    %234 = vector.multi_reduction <maximumf>, %233, %cst_64 [1] : vector<8x16xf32> to vector<8xf32>
    %235 = vector.shape_cast %234 : vector<8xf32> to vector<8x1xf32>
    %236 = vector.broadcast %235 : vector<8x1xf32> to vector<8x16xf32>
    %237 = arith.subf %233, %236 : vector<8x16xf32>
    %238 = math.exp %237 : vector<8x16xf32>
    %cst_65 = arith.constant dense<0.000000e+00> : vector<8xf32>
    %239 = vector.multi_reduction <add>, %238, %cst_65 [1] : vector<8x16xf32> to vector<8xf32>
    %240 = vector.shape_cast %239 : vector<8xf32> to vector<8x1xf32>
    %241 = tpu.reciprocal %240 {approx = true} : vector<8x1xf32> -> vector<8x1xf32>
    %242 = vector.broadcast %241 : vector<8x1xf32> to vector<8x16xf32>
    %243 = arith.mulf %238, %242 : vector<8x16xf32>
    %244 = vector.extract_strided_slice %172 {offsets = [0, 16], sizes = [16, 8], strides = [1, 1]} : vector<16x32xf32> to vector<16x8xf32>
    %245 = arith.truncf %243 : vector<8x16xf32> to vector<8x16xbf16>
    %246 = arith.truncf %244 : vector<16x8xf32> to vector<16x8xbf16>
    %cst_66 = arith.constant dense<0.000000e+00> : vector<8x8xf32>
    %247 = tpu.matmul %245, %246, %cst_66 {dimension_numbers = #tpu.dot_dimension_numbers<[1], [0], [0], [1], [0, 0, 1, 1], [], []>} : vector<8x16xbf16>, vector<16x8xbf16>, vector<8x8xf32> -> vector<8x8xf32>
    %248 = vector.extract_strided_slice %173 {offsets = [16, 0], sizes = [8, 32], strides = [1, 1]} : vector<32x32xf32> to vector<8x32xf32>
    %249 = arith.truncf %247 : vector<8x8xf32> to vector<8x8xbf16>
    %250 = arith.truncf %248 : vector<8x32xf32> to vector<8x32xbf16>
    %cst_67 = arith.constant dense<0.000000e+00> : vector<8x32xf32>
    %251 = tpu.matmul %249, %250, %cst_67 {dimension_numbers = #tpu.dot_dimension_numbers<[1], [0], [0], [1], [0, 0, 1, 1], [], []>} : vector<8x8xbf16>, vector<8x32xbf16>, vector<8x32xf32> -> vector<8x32xf32>
    %252 = arith.addf %226, %251 : vector<8x32xf32>
    %253 = vector.extract_strided_slice %163 {offsets = [0, 24], sizes = [8, 8], strides = [1, 1]} : vector<8x32xf32> to vector<8x8xf32>
    %254 = vector.extract_strided_slice %171 {offsets = [0, 24], sizes = [16, 8], strides = [1, 1]} : vector<16x32xf32> to vector<16x8xf32>
    %255 = arith.truncf %253 : vector<8x8xf32> to vector<8x8xbf16>
    %256 = arith.truncf %254 : vector<16x8xf32> to vector<16x8xbf16>
    %cst_68 = arith.constant dense<0.000000e+00> : vector<8x16xf32>
    %257 = tpu.matmul %255, %256, %cst_68 {dimension_numbers = #tpu.dot_dimension_numbers<[1], [1], [0], [0], [0, 0, 1, 0], [], []>} : vector<8x8xbf16>, vector<16x8xbf16>, vector<8x16xf32> -> vector<8x16xf32>
    %cst_69 = arith.constant 0.353553385 : f32
    %258 = vector.broadcast %cst_69 : f32 to vector<8x16xf32>
    %259 = arith.mulf %257, %258 : vector<8x16xf32>
    %cst_70 = arith.constant dense<0xFF800000> : vector<8xf32>
    %260 = vector.multi_reduction <maximumf>, %259, %cst_70 [1] : vector<8x16xf32> to vector<8xf32>
    %261 = vector.shape_cast %260 : vector<8xf32> to vector<8x1xf32>
    %262 = vector.broadcast %261 : vector<8x1xf32> to vector<8x16xf32>
    %263 = arith.subf %259, %262 : vector<8x16xf32>
    %264 = math.exp %263 : vector<8x16xf32>
    %cst_71 = arith.constant dense<0.000000e+00> : vector<8xf32>
    %265 = vector.multi_reduction <add>, %264, %cst_71 [1] : vector<8x16xf32> to vector<8xf32>
    %266 = vector.shape_cast %265 : vector<8xf32> to vector<8x1xf32>
    %267 = tpu.reciprocal %266 {approx = true} : vector<8x1xf32> -> vector<8x1xf32>
    %268 = vector.broadcast %267 : vector<8x1xf32> to vector<8x16xf32>
    %269 = arith.mulf %264, %268 : vector<8x16xf32>
    %270 = vector.extract_strided_slice %172 {offsets = [0, 24], sizes = [16, 8], strides = [1, 1]} : vector<16x32xf32> to vector<16x8xf32>
    %271 = arith.truncf %269 : vector<8x16xf32> to vector<8x16xbf16>
    %272 = arith.truncf %270 : vector<16x8xf32> to vector<16x8xbf16>
    %cst_72 = arith.constant dense<0.000000e+00> : vector<8x8xf32>
    %273 = tpu.matmul %271, %272, %cst_72 {dimension_numbers = #tpu.dot_dimension_numbers<[1], [0], [0], [1], [0, 0, 1, 1], [], []>} : vector<8x16xbf16>, vector<16x8xbf16>, vector<8x8xf32> -> vector<8x8xf32>
    %274 = vector.extract_strided_slice %173 {offsets = [24, 0], sizes = [8, 32], strides = [1, 1]} : vector<32x32xf32> to vector<8x32xf32>
    %275 = arith.truncf %273 : vector<8x8xf32> to vector<8x8xbf16>
    %276 = arith.truncf %274 : vector<8x32xf32> to vector<8x32xbf16>
    %cst_73 = arith.constant dense<0.000000e+00> : vector<8x32xf32>
    %277 = tpu.matmul %275, %276, %cst_73 {dimension_numbers = #tpu.dot_dimension_numbers<[1], [0], [0], [1], [0, 0, 1, 1], [], []>} : vector<8x8xbf16>, vector<8x32xbf16>, vector<8x32xf32> -> vector<8x32xf32>
    %278 = arith.addf %252, %277 : vector<8x32xf32>
    %c264 = arith.constant 264 : index
    %c0_74 = arith.constant 0 : index
    %279 = vector.load %arg2[%c264, %c0_74] : memref<824x128xf32, #tpu.memory_space<vmem>>, vector<1x32xf32>
    %280 = vector.broadcast %279 : vector<1x32xf32> to vector<8x32xf32>
    %281 = arith.addf %278, %280 : vector<8x32xf32>
    %282 = arith.addf %154, %281 : vector<8x32xf32>
    %cst_75 = arith.constant dense<0.000000e+00> : vector<8xf32>
    %283 = vector.multi_reduction <add>, %282, %cst_75 [1] : vector<8x32xf32> to vector<8xf32>
    %284 = vector.shape_cast %283 : vector<8xf32> to vector<8x1xf32>
    %cst_76 = arith.constant 3.200000e+01 : f32
    %285 = vector.broadcast %cst_76 : f32 to vector<8x1xf32>
    %286 = arith.divf %284, %285 : vector<8x1xf32>
    %287 = vector.broadcast %286 : vector<8x1xf32> to vector<8x32xf32>
    %288 = arith.subf %282, %287 : vector<8x32xf32>
    %289 = arith.mulf %288, %288 : vector<8x32xf32>
    %cst_77 = arith.constant dense<0.000000e+00> : vector<8xf32>
    %290 = vector.multi_reduction <add>, %289, %cst_77 [1] : vector<8x32xf32> to vector<8xf32>
    %291 = vector.shape_cast %290 : vector<8xf32> to vector<8x1xf32>
    %cst_78 = arith.constant 3.200000e+01 : f32
    %292 = vector.broadcast %cst_78 : f32 to vector<8x1xf32>
    %293 = arith.divf %291, %292 : vector<8x1xf32>
    %cst_79 = arith.constant 9.99999974E-6 : f32
    %294 = vector.broadcast %cst_79 : f32 to vector<8x1xf32>
    %295 = arith.addf %293, %294 : vector<8x1xf32>
    %296 = math.rsqrt %295 : vector<8x1xf32>
    %297 = vector.broadcast %296 : vector<8x1xf32> to vector<8x32xf32>
    %298 = arith.mulf %288, %297 : vector<8x32xf32>
    %c288 = arith.constant 288 : index
    %c0_80 = arith.constant 0 : index
    %299 = vector.load %arg2[%c288, %c0_80] : memref<824x128xf32, #tpu.memory_space<vmem>>, vector<1x32xf32>
    %300 = vector.broadcast %299 : vector<1x32xf32> to vector<8x32xf32>
    %301 = arith.mulf %298, %300 : vector<8x32xf32>
    %c296 = arith.constant 296 : index
    %c0_81 = arith.constant 0 : index
    %302 = vector.load %arg2[%c296, %c0_81] : memref<824x128xf32, #tpu.memory_space<vmem>>, vector<1x32xf32>
    %303 = vector.broadcast %302 : vector<1x32xf32> to vector<8x32xf32>
    %304 = arith.addf %301, %303 : vector<8x32xf32>
    %c320 = arith.constant 320 : index
    %c0_82 = arith.constant 0 : index
    %305 = vector.load %arg2[%c320, %c0_82] : memref<824x128xf32, #tpu.memory_space<vmem>>, vector<32x64xf32>
    %306 = arith.truncf %304 : vector<8x32xf32> to vector<8x32xbf16>
    %307 = arith.truncf %305 : vector<32x64xf32> to vector<32x64xbf16>
    %cst_83 = arith.constant dense<0.000000e+00> : vector<8x64xf32>
    %308 = tpu.matmul %306, %307, %cst_83 {dimension_numbers = #tpu.dot_dimension_numbers<[1], [0], [0], [1], [0, 0, 1, 1], [], []>} : vector<8x32xbf16>, vector<32x64xbf16>, vector<8x64xf32> -> vector<8x64xf32>
    %c352 = arith.constant 352 : index
    %c0_84 = arith.constant 0 : index
    %309 = vector.load %arg2[%c352, %c0_84] : memref<824x128xf32, #tpu.memory_space<vmem>>, vector<1x64xf32>
    %310 = vector.broadcast %309 : vector<1x64xf32> to vector<8x64xf32>
    %311 = arith.addf %308, %310 : vector<8x64xf32>
    %cst_85 = arith.constant 0.000000e+00 : f32
    %312 = vector.broadcast %cst_85 : f32 to vector<8x64xf32>
    %313 = arith.maximumf %311, %312 : vector<8x64xf32>
    %c360 = arith.constant 360 : index
    %c0_86 = arith.constant 0 : index
    %314 = vector.load %arg2[%c360, %c0_86] : memref<824x128xf32, #tpu.memory_space<vmem>>, vector<64x32xf32>
    %315 = arith.truncf %313 : vector<8x64xf32> to vector<8x64xbf16>
    %316 = arith.truncf %314 : vector<64x32xf32> to vector<64x32xbf16>
    %cst_87 = arith.constant dense<0.000000e+00> : vector<8x32xf32>
    %317 = tpu.matmul %315, %316, %cst_87 {dimension_numbers = #tpu.dot_dimension_numbers<[1], [0], [0], [1], [0, 0, 1, 1], [], []>} : vector<8x64xbf16>, vector<64x32xbf16>, vector<8x32xf32> -> vector<8x32xf32>
    %c424 = arith.constant 424 : index
    %c0_88 = arith.constant 0 : index
    %318 = vector.load %arg2[%c424, %c0_88] : memref<824x128xf32, #tpu.memory_space<vmem>>, vector<1x32xf32>
    %319 = vector.broadcast %318 : vector<1x32xf32> to vector<8x32xf32>
    %320 = arith.addf %317, %319 : vector<8x32xf32>
    %321 = arith.addf %304, %320 : vector<8x32xf32>
    %cst_89 = arith.constant dense<0.000000e+00> : vector<8xf32>
    %322 = vector.multi_reduction <add>, %321, %cst_89 [1] : vector<8x32xf32> to vector<8xf32>
    %323 = vector.shape_cast %322 : vector<8xf32> to vector<8x1xf32>
    %cst_90 = arith.constant 3.200000e+01 : f32
    %324 = vector.broadcast %cst_90 : f32 to vector<8x1xf32>
    %325 = arith.divf %323, %324 : vector<8x1xf32>
    %326 = vector.broadcast %325 : vector<8x1xf32> to vector<8x32xf32>
    %327 = arith.subf %321, %326 : vector<8x32xf32>
    %328 = arith.mulf %327, %327 : vector<8x32xf32>
    %cst_91 = arith.constant dense<0.000000e+00> : vector<8xf32>
    %329 = vector.multi_reduction <add>, %328, %cst_91 [1] : vector<8x32xf32> to vector<8xf32>
    %330 = vector.shape_cast %329 : vector<8xf32> to vector<8x1xf32>
    %cst_92 = arith.constant 3.200000e+01 : f32
    %331 = vector.broadcast %cst_92 : f32 to vector<8x1xf32>
    %332 = arith.divf %330, %331 : vector<8x1xf32>
    %cst_93 = arith.constant 9.99999974E-6 : f32
    %333 = vector.broadcast %cst_93 : f32 to vector<8x1xf32>
    %334 = arith.addf %332, %333 : vector<8x1xf32>
    %335 = math.rsqrt %334 : vector<8x1xf32>
    %336 = vector.broadcast %335 : vector<8x1xf32> to vector<8x32xf32>
    %337 = arith.mulf %327, %336 : vector<8x32xf32>
    %c304 = arith.constant 304 : index
    %c0_94 = arith.constant 0 : index
    %338 = vector.load %arg2[%c304, %c0_94] : memref<824x128xf32, #tpu.memory_space<vmem>>, vector<1x32xf32>
    %339 = vector.broadcast %338 : vector<1x32xf32> to vector<8x32xf32>
    %340 = arith.mulf %337, %339 : vector<8x32xf32>
    %c312 = arith.constant 312 : index
    %c0_95 = arith.constant 0 : index
    %341 = vector.load %arg2[%c312, %c0_95] : memref<824x128xf32, #tpu.memory_space<vmem>>, vector<1x32xf32>
    %342 = vector.broadcast %341 : vector<1x32xf32> to vector<8x32xf32>
    %343 = arith.addf %340, %342 : vector<8x32xf32>
    %cst_96 = arith.constant dense<0.000000e+00> : vector<8xf32>
    %344 = vector.multi_reduction <add>, %343, %cst_96 [1] : vector<8x32xf32> to vector<8xf32>
    %345 = vector.shape_cast %344 : vector<8xf32> to vector<8x1xf32>
    %cst_97 = arith.constant 3.200000e+01 : f32
    %346 = vector.broadcast %cst_97 : f32 to vector<8x1xf32>
    %347 = arith.divf %345, %346 : vector<8x1xf32>
    %348 = vector.broadcast %347 : vector<8x1xf32> to vector<8x32xf32>
    %349 = arith.subf %343, %348 : vector<8x32xf32>
    %350 = arith.mulf %349, %349 : vector<8x32xf32>
    %cst_98 = arith.constant dense<0.000000e+00> : vector<8xf32>
    %351 = vector.multi_reduction <add>, %350, %cst_98 [1] : vector<8x32xf32> to vector<8xf32>
    %352 = vector.shape_cast %351 : vector<8xf32> to vector<8x1xf32>
    %cst_99 = arith.constant 3.200000e+01 : f32
    %353 = vector.broadcast %cst_99 : f32 to vector<8x1xf32>
    %354 = arith.divf %352, %353 : vector<8x1xf32>
    %cst_100 = arith.constant 9.99999974E-6 : f32
    %355 = vector.broadcast %cst_100 : f32 to vector<8x1xf32>
    %356 = arith.addf %354, %355 : vector<8x1xf32>
    %357 = math.rsqrt %356 : vector<8x1xf32>
    %358 = vector.broadcast %357 : vector<8x1xf32> to vector<8x32xf32>
    %359 = arith.mulf %349, %358 : vector<8x32xf32>
    %c432 = arith.constant 432 : index
    %c0_101 = arith.constant 0 : index
    %360 = vector.load %arg2[%c432, %c0_101] : memref<824x128xf32, #tpu.memory_space<vmem>>, vector<1x32xf32>
    %361 = vector.broadcast %360 : vector<1x32xf32> to vector<8x32xf32>
    %362 = arith.mulf %359, %361 : vector<8x32xf32>
    %c440 = arith.constant 440 : index
    %c0_102 = arith.constant 0 : index
    %363 = vector.load %arg2[%c440, %c0_102] : memref<824x128xf32, #tpu.memory_space<vmem>>, vector<1x32xf32>
    %364 = vector.broadcast %363 : vector<1x32xf32> to vector<8x32xf32>
    %365 = arith.addf %362, %364 : vector<8x32xf32>
    %366 = vector.extract_strided_slice %1 {offsets = [16, 0], sizes = [8, 40], strides = [1, 1]} : vector<24x40xf32> to vector<8x40xf32>
    %c48 = arith.constant 48 : index
    %c0_103 = arith.constant 0 : index
    %367 = vector.load %arg2[%c48, %c0_103] : memref<824x128xf32, #tpu.memory_space<vmem>>, vector<40x32xf32>
    %368 = arith.truncf %366 : vector<8x40xf32> to vector<8x40xbf16>
    %369 = arith.truncf %367 : vector<40x32xf32> to vector<40x32xbf16>
    %cst_104 = arith.constant dense<0.000000e+00> : vector<8x32xf32>
    %370 = tpu.matmul %368, %369, %cst_104 {dimension_numbers = #tpu.dot_dimension_numbers<[1], [0], [0], [1], [0, 0, 1, 1], [], []>} : vector<8x40xbf16>, vector<40x32xbf16>, vector<8x32xf32> -> vector<8x32xf32>
    %c88 = arith.constant 88 : index
    %c0_105 = arith.constant 0 : index
    %371 = vector.load %arg2[%c88, %c0_105] : memref<824x128xf32, #tpu.memory_space<vmem>>, vector<1x32xf32>
    %372 = vector.broadcast %371 : vector<1x32xf32> to vector<8x32xf32>
    %373 = arith.addf %370, %372 : vector<8x32xf32>
    %cst_106 = arith.constant 0.000000e+00 : f32
    %374 = vector.broadcast %cst_106 : f32 to vector<8x32xf32>
    %375 = arith.maximumf %373, %374 : vector<8x32xf32>
    %c104 = arith.constant 104 : index
    %c0_107 = arith.constant 0 : index
    %376 = vector.load %arg2[%c104, %c0_107] : memref<824x128xf32, #tpu.memory_space<vmem>>, vector<8x32xf32>
    %377 = arith.addf %375, %376 : vector<8x32xf32>
    %378 = tpu.iota {dimensions = array<i32: 0>} : vector<8x8xi32>
    %379 = tpu.iota {dimensions = array<i32: 1>} : vector<8x8xi32>
    %380 = arith.cmpi sle, %379, %378 : vector<8x8xi32>
    %cst_108 = arith.constant 0.000000e+00 : f32
    %cst_109 = arith.constant -1.000000e+30 : f32
    %381 = vector.broadcast %cst_108 : f32 to vector<8x8xf32>
    %382 = vector.broadcast %cst_109 : f32 to vector<8x8xf32>
    %383 = arith.select %380, %381, %382 : vector<8x8xi1>, vector<8x8xf32>
    %c448 = arith.constant 448 : index
    %c0_110 = arith.constant 0 : index
    %384 = vector.load %arg2[%c448, %c0_110] : memref<824x128xf32, #tpu.memory_space<vmem>>, vector<32x96xf32>
    %c480 = arith.constant 480 : index
    %c0_111 = arith.constant 0 : index
    %385 = vector.load %arg2[%c480, %c0_111] : memref<824x128xf32, #tpu.memory_space<vmem>>, vector<1x96xf32>
    %386 = arith.truncf %377 : vector<8x32xf32> to vector<8x32xbf16>
    %387 = arith.truncf %384 : vector<32x96xf32> to vector<32x96xbf16>
    %cst_112 = arith.constant dense<0.000000e+00> : vector<8x96xf32>
    %388 = tpu.matmul %386, %387, %cst_112 {dimension_numbers = #tpu.dot_dimension_numbers<[1], [0], [0], [1], [0, 0, 1, 1], [], []>} : vector<8x32xbf16>, vector<32x96xbf16>, vector<8x96xf32> -> vector<8x96xf32>
    %389 = vector.broadcast %385 : vector<1x96xf32> to vector<8x96xf32>
    %390 = arith.addf %388, %389 : vector<8x96xf32>
    %391 = vector.extract_strided_slice %390 {offsets = [0, 0], sizes = [8, 32], strides = [1, 1]} : vector<8x96xf32> to vector<8x32xf32>
    %392 = vector.extract_strided_slice %390 {offsets = [0, 32], sizes = [8, 32], strides = [1, 1]} : vector<8x96xf32> to vector<8x32xf32>
    %393 = vector.extract_strided_slice %390 {offsets = [0, 64], sizes = [8, 32], strides = [1, 1]} : vector<8x96xf32> to vector<8x32xf32>
    %c488 = arith.constant 488 : index
    %c0_113 = arith.constant 0 : index
    %394 = vector.load %arg2[%c488, %c0_113] : memref<824x128xf32, #tpu.memory_space<vmem>>, vector<32x32xf32>
    %cst_114 = arith.constant 0.000000e+00 : f32
    %395 = vector.broadcast %cst_114 : f32 to vector<8x32xf32>
    %396 = vector.extract_strided_slice %391 {offsets = [0, 0], sizes = [8, 8], strides = [1, 1]} : vector<8x32xf32> to vector<8x8xf32>
    %397 = vector.extract_strided_slice %392 {offsets = [0, 0], sizes = [8, 8], strides = [1, 1]} : vector<8x32xf32> to vector<8x8xf32>
    %398 = arith.truncf %396 : vector<8x8xf32> to vector<8x8xbf16>
    %399 = arith.truncf %397 : vector<8x8xf32> to vector<8x8xbf16>
    %cst_115 = arith.constant dense<0.000000e+00> : vector<8x8xf32>
    %400 = tpu.matmul %398, %399, %cst_115 {dimension_numbers = #tpu.dot_dimension_numbers<[1], [1], [0], [0], [0, 0, 1, 0], [], []>} : vector<8x8xbf16>, vector<8x8xbf16>, vector<8x8xf32> -> vector<8x8xf32>
    %cst_116 = arith.constant 0.353553385 : f32
    %401 = vector.broadcast %cst_116 : f32 to vector<8x8xf32>
    %402 = arith.mulf %400, %401 : vector<8x8xf32>
    %403 = arith.addf %402, %383 : vector<8x8xf32>
    %cst_117 = arith.constant dense<0xFF800000> : vector<8xf32>
    %404 = vector.multi_reduction <maximumf>, %403, %cst_117 [1] : vector<8x8xf32> to vector<8xf32>
    %405 = vector.shape_cast %404 : vector<8xf32> to vector<8x1xf32>
    %406 = vector.broadcast %405 : vector<8x1xf32> to vector<8x8xf32>
    %407 = arith.subf %403, %406 : vector<8x8xf32>
    %408 = math.exp %407 : vector<8x8xf32>
    %cst_118 = arith.constant dense<0.000000e+00> : vector<8xf32>
    %409 = vector.multi_reduction <add>, %408, %cst_118 [1] : vector<8x8xf32> to vector<8xf32>
    %410 = vector.shape_cast %409 : vector<8xf32> to vector<8x1xf32>
    %411 = tpu.reciprocal %410 {approx = true} : vector<8x1xf32> -> vector<8x1xf32>
    %412 = vector.broadcast %411 : vector<8x1xf32> to vector<8x8xf32>
    %413 = arith.mulf %408, %412 : vector<8x8xf32>
    %414 = vector.extract_strided_slice %393 {offsets = [0, 0], sizes = [8, 8], strides = [1, 1]} : vector<8x32xf32> to vector<8x8xf32>
    %415 = arith.truncf %413 : vector<8x8xf32> to vector<8x8xbf16>
    %416 = arith.truncf %414 : vector<8x8xf32> to vector<8x8xbf16>
    %cst_119 = arith.constant dense<0.000000e+00> : vector<8x8xf32>
    %417 = tpu.matmul %415, %416, %cst_119 {dimension_numbers = #tpu.dot_dimension_numbers<[1], [0], [0], [1], [0, 0, 1, 1], [], []>} : vector<8x8xbf16>, vector<8x8xbf16>, vector<8x8xf32> -> vector<8x8xf32>
    %418 = vector.extract_strided_slice %394 {offsets = [0, 0], sizes = [8, 32], strides = [1, 1]} : vector<32x32xf32> to vector<8x32xf32>
    %419 = arith.truncf %417 : vector<8x8xf32> to vector<8x8xbf16>
    %420 = arith.truncf %418 : vector<8x32xf32> to vector<8x32xbf16>
    %cst_120 = arith.constant dense<0.000000e+00> : vector<8x32xf32>
    %421 = tpu.matmul %419, %420, %cst_120 {dimension_numbers = #tpu.dot_dimension_numbers<[1], [0], [0], [1], [0, 0, 1, 1], [], []>} : vector<8x8xbf16>, vector<8x32xbf16>, vector<8x32xf32> -> vector<8x32xf32>
    %422 = arith.addf %395, %421 : vector<8x32xf32>
    %423 = vector.extract_strided_slice %391 {offsets = [0, 8], sizes = [8, 8], strides = [1, 1]} : vector<8x32xf32> to vector<8x8xf32>
    %424 = vector.extract_strided_slice %392 {offsets = [0, 8], sizes = [8, 8], strides = [1, 1]} : vector<8x32xf32> to vector<8x8xf32>
    %425 = arith.truncf %423 : vector<8x8xf32> to vector<8x8xbf16>
    %426 = arith.truncf %424 : vector<8x8xf32> to vector<8x8xbf16>
    %cst_121 = arith.constant dense<0.000000e+00> : vector<8x8xf32>
    %427 = tpu.matmul %425, %426, %cst_121 {dimension_numbers = #tpu.dot_dimension_numbers<[1], [1], [0], [0], [0, 0, 1, 0], [], []>} : vector<8x8xbf16>, vector<8x8xbf16>, vector<8x8xf32> -> vector<8x8xf32>
    %cst_122 = arith.constant 0.353553385 : f32
    %428 = vector.broadcast %cst_122 : f32 to vector<8x8xf32>
    %429 = arith.mulf %427, %428 : vector<8x8xf32>
    %430 = arith.addf %429, %383 : vector<8x8xf32>
    %cst_123 = arith.constant dense<0xFF800000> : vector<8xf32>
    %431 = vector.multi_reduction <maximumf>, %430, %cst_123 [1] : vector<8x8xf32> to vector<8xf32>
    %432 = vector.shape_cast %431 : vector<8xf32> to vector<8x1xf32>
    %433 = vector.broadcast %432 : vector<8x1xf32> to vector<8x8xf32>
    %434 = arith.subf %430, %433 : vector<8x8xf32>
    %435 = math.exp %434 : vector<8x8xf32>
    %cst_124 = arith.constant dense<0.000000e+00> : vector<8xf32>
    %436 = vector.multi_reduction <add>, %435, %cst_124 [1] : vector<8x8xf32> to vector<8xf32>
    %437 = vector.shape_cast %436 : vector<8xf32> to vector<8x1xf32>
    %438 = tpu.reciprocal %437 {approx = true} : vector<8x1xf32> -> vector<8x1xf32>
    %439 = vector.broadcast %438 : vector<8x1xf32> to vector<8x8xf32>
    %440 = arith.mulf %435, %439 : vector<8x8xf32>
    %441 = vector.extract_strided_slice %393 {offsets = [0, 8], sizes = [8, 8], strides = [1, 1]} : vector<8x32xf32> to vector<8x8xf32>
    %442 = arith.truncf %440 : vector<8x8xf32> to vector<8x8xbf16>
    %443 = arith.truncf %441 : vector<8x8xf32> to vector<8x8xbf16>
    %cst_125 = arith.constant dense<0.000000e+00> : vector<8x8xf32>
    %444 = tpu.matmul %442, %443, %cst_125 {dimension_numbers = #tpu.dot_dimension_numbers<[1], [0], [0], [1], [0, 0, 1, 1], [], []>} : vector<8x8xbf16>, vector<8x8xbf16>, vector<8x8xf32> -> vector<8x8xf32>
    %445 = vector.extract_strided_slice %394 {offsets = [8, 0], sizes = [8, 32], strides = [1, 1]} : vector<32x32xf32> to vector<8x32xf32>
    %446 = arith.truncf %444 : vector<8x8xf32> to vector<8x8xbf16>
    %447 = arith.truncf %445 : vector<8x32xf32> to vector<8x32xbf16>
    %cst_126 = arith.constant dense<0.000000e+00> : vector<8x32xf32>
    %448 = tpu.matmul %446, %447, %cst_126 {dimension_numbers = #tpu.dot_dimension_numbers<[1], [0], [0], [1], [0, 0, 1, 1], [], []>} : vector<8x8xbf16>, vector<8x32xbf16>, vector<8x32xf32> -> vector<8x32xf32>
    %449 = arith.addf %422, %448 : vector<8x32xf32>
    %450 = vector.extract_strided_slice %391 {offsets = [0, 16], sizes = [8, 8], strides = [1, 1]} : vector<8x32xf32> to vector<8x8xf32>
    %451 = vector.extract_strided_slice %392 {offsets = [0, 16], sizes = [8, 8], strides = [1, 1]} : vector<8x32xf32> to vector<8x8xf32>
    %452 = arith.truncf %450 : vector<8x8xf32> to vector<8x8xbf16>
    %453 = arith.truncf %451 : vector<8x8xf32> to vector<8x8xbf16>
    %cst_127 = arith.constant dense<0.000000e+00> : vector<8x8xf32>
    %454 = tpu.matmul %452, %453, %cst_127 {dimension_numbers = #tpu.dot_dimension_numbers<[1], [1], [0], [0], [0, 0, 1, 0], [], []>} : vector<8x8xbf16>, vector<8x8xbf16>, vector<8x8xf32> -> vector<8x8xf32>
    %cst_128 = arith.constant 0.353553385 : f32
    %455 = vector.broadcast %cst_128 : f32 to vector<8x8xf32>
    %456 = arith.mulf %454, %455 : vector<8x8xf32>
    %457 = arith.addf %456, %383 : vector<8x8xf32>
    %cst_129 = arith.constant dense<0xFF800000> : vector<8xf32>
    %458 = vector.multi_reduction <maximumf>, %457, %cst_129 [1] : vector<8x8xf32> to vector<8xf32>
    %459 = vector.shape_cast %458 : vector<8xf32> to vector<8x1xf32>
    %460 = vector.broadcast %459 : vector<8x1xf32> to vector<8x8xf32>
    %461 = arith.subf %457, %460 : vector<8x8xf32>
    %462 = math.exp %461 : vector<8x8xf32>
    %cst_130 = arith.constant dense<0.000000e+00> : vector<8xf32>
    %463 = vector.multi_reduction <add>, %462, %cst_130 [1] : vector<8x8xf32> to vector<8xf32>
    %464 = vector.shape_cast %463 : vector<8xf32> to vector<8x1xf32>
    %465 = tpu.reciprocal %464 {approx = true} : vector<8x1xf32> -> vector<8x1xf32>
    %466 = vector.broadcast %465 : vector<8x1xf32> to vector<8x8xf32>
    %467 = arith.mulf %462, %466 : vector<8x8xf32>
    %468 = vector.extract_strided_slice %393 {offsets = [0, 16], sizes = [8, 8], strides = [1, 1]} : vector<8x32xf32> to vector<8x8xf32>
    %469 = arith.truncf %467 : vector<8x8xf32> to vector<8x8xbf16>
    %470 = arith.truncf %468 : vector<8x8xf32> to vector<8x8xbf16>
    %cst_131 = arith.constant dense<0.000000e+00> : vector<8x8xf32>
    %471 = tpu.matmul %469, %470, %cst_131 {dimension_numbers = #tpu.dot_dimension_numbers<[1], [0], [0], [1], [0, 0, 1, 1], [], []>} : vector<8x8xbf16>, vector<8x8xbf16>, vector<8x8xf32> -> vector<8x8xf32>
    %472 = vector.extract_strided_slice %394 {offsets = [16, 0], sizes = [8, 32], strides = [1, 1]} : vector<32x32xf32> to vector<8x32xf32>
    %473 = arith.truncf %471 : vector<8x8xf32> to vector<8x8xbf16>
    %474 = arith.truncf %472 : vector<8x32xf32> to vector<8x32xbf16>
    %cst_132 = arith.constant dense<0.000000e+00> : vector<8x32xf32>
    %475 = tpu.matmul %473, %474, %cst_132 {dimension_numbers = #tpu.dot_dimension_numbers<[1], [0], [0], [1], [0, 0, 1, 1], [], []>} : vector<8x8xbf16>, vector<8x32xbf16>, vector<8x32xf32> -> vector<8x32xf32>
    %476 = arith.addf %449, %475 : vector<8x32xf32>
    %477 = vector.extract_strided_slice %391 {offsets = [0, 24], sizes = [8, 8], strides = [1, 1]} : vector<8x32xf32> to vector<8x8xf32>
    %478 = vector.extract_strided_slice %392 {offsets = [0, 24], sizes = [8, 8], strides = [1, 1]} : vector<8x32xf32> to vector<8x8xf32>
    %479 = arith.truncf %477 : vector<8x8xf32> to vector<8x8xbf16>
    %480 = arith.truncf %478 : vector<8x8xf32> to vector<8x8xbf16>
    %cst_133 = arith.constant dense<0.000000e+00> : vector<8x8xf32>
    %481 = tpu.matmul %479, %480, %cst_133 {dimension_numbers = #tpu.dot_dimension_numbers<[1], [1], [0], [0], [0, 0, 1, 0], [], []>} : vector<8x8xbf16>, vector<8x8xbf16>, vector<8x8xf32> -> vector<8x8xf32>
    %cst_134 = arith.constant 0.353553385 : f32
    %482 = vector.broadcast %cst_134 : f32 to vector<8x8xf32>
    %483 = arith.mulf %481, %482 : vector<8x8xf32>
    %484 = arith.addf %483, %383 : vector<8x8xf32>
    %cst_135 = arith.constant dense<0xFF800000> : vector<8xf32>
    %485 = vector.multi_reduction <maximumf>, %484, %cst_135 [1] : vector<8x8xf32> to vector<8xf32>
    %486 = vector.shape_cast %485 : vector<8xf32> to vector<8x1xf32>
    %487 = vector.broadcast %486 : vector<8x1xf32> to vector<8x8xf32>
    %488 = arith.subf %484, %487 : vector<8x8xf32>
    %489 = math.exp %488 : vector<8x8xf32>
    %cst_136 = arith.constant dense<0.000000e+00> : vector<8xf32>
    %490 = vector.multi_reduction <add>, %489, %cst_136 [1] : vector<8x8xf32> to vector<8xf32>
    %491 = vector.shape_cast %490 : vector<8xf32> to vector<8x1xf32>
    %492 = tpu.reciprocal %491 {approx = true} : vector<8x1xf32> -> vector<8x1xf32>
    %493 = vector.broadcast %492 : vector<8x1xf32> to vector<8x8xf32>
    %494 = arith.mulf %489, %493 : vector<8x8xf32>
    %495 = vector.extract_strided_slice %393 {offsets = [0, 24], sizes = [8, 8], strides = [1, 1]} : vector<8x32xf32> to vector<8x8xf32>
    %496 = arith.truncf %494 : vector<8x8xf32> to vector<8x8xbf16>
    %497 = arith.truncf %495 : vector<8x8xf32> to vector<8x8xbf16>
    %cst_137 = arith.constant dense<0.000000e+00> : vector<8x8xf32>
    %498 = tpu.matmul %496, %497, %cst_137 {dimension_numbers = #tpu.dot_dimension_numbers<[1], [0], [0], [1], [0, 0, 1, 1], [], []>} : vector<8x8xbf16>, vector<8x8xbf16>, vector<8x8xf32> -> vector<8x8xf32>
    %499 = vector.extract_strided_slice %394 {offsets = [24, 0], sizes = [8, 32], strides = [1, 1]} : vector<32x32xf32> to vector<8x32xf32>
    %500 = arith.truncf %498 : vector<8x8xf32> to vector<8x8xbf16>
    %501 = arith.truncf %499 : vector<8x32xf32> to vector<8x32xbf16>
    %cst_138 = arith.constant dense<0.000000e+00> : vector<8x32xf32>
    %502 = tpu.matmul %500, %501, %cst_138 {dimension_numbers = #tpu.dot_dimension_numbers<[1], [0], [0], [1], [0, 0, 1, 1], [], []>} : vector<8x8xbf16>, vector<8x32xbf16>, vector<8x32xf32> -> vector<8x32xf32>
    %503 = arith.addf %476, %502 : vector<8x32xf32>
    %c520 = arith.constant 520 : index
    %c0_139 = arith.constant 0 : index
    %504 = vector.load %arg2[%c520, %c0_139] : memref<824x128xf32, #tpu.memory_space<vmem>>, vector<1x32xf32>
    %505 = vector.broadcast %504 : vector<1x32xf32> to vector<8x32xf32>
    %506 = arith.addf %503, %505 : vector<8x32xf32>
    %507 = arith.addf %377, %506 : vector<8x32xf32>
    %cst_140 = arith.constant dense<0.000000e+00> : vector<8xf32>
    %508 = vector.multi_reduction <add>, %507, %cst_140 [1] : vector<8x32xf32> to vector<8xf32>
    %509 = vector.shape_cast %508 : vector<8xf32> to vector<8x1xf32>
    %cst_141 = arith.constant 3.200000e+01 : f32
    %510 = vector.broadcast %cst_141 : f32 to vector<8x1xf32>
    %511 = arith.divf %509, %510 : vector<8x1xf32>
    %512 = vector.broadcast %511 : vector<8x1xf32> to vector<8x32xf32>
    %513 = arith.subf %507, %512 : vector<8x32xf32>
    %514 = arith.mulf %513, %513 : vector<8x32xf32>
    %cst_142 = arith.constant dense<0.000000e+00> : vector<8xf32>
    %515 = vector.multi_reduction <add>, %514, %cst_142 [1] : vector<8x32xf32> to vector<8xf32>
    %516 = vector.shape_cast %515 : vector<8xf32> to vector<8x1xf32>
    %cst_143 = arith.constant 3.200000e+01 : f32
    %517 = vector.broadcast %cst_143 : f32 to vector<8x1xf32>
    %518 = arith.divf %516, %517 : vector<8x1xf32>
    %cst_144 = arith.constant 9.99999974E-6 : f32
    %519 = vector.broadcast %cst_144 : f32 to vector<8x1xf32>
    %520 = arith.addf %518, %519 : vector<8x1xf32>
    %521 = math.rsqrt %520 : vector<8x1xf32>
    %522 = vector.broadcast %521 : vector<8x1xf32> to vector<8x32xf32>
    %523 = arith.mulf %513, %522 : vector<8x32xf32>
    %c608 = arith.constant 608 : index
    %c0_145 = arith.constant 0 : index
    %524 = vector.load %arg2[%c608, %c0_145] : memref<824x128xf32, #tpu.memory_space<vmem>>, vector<1x32xf32>
    %525 = vector.broadcast %524 : vector<1x32xf32> to vector<8x32xf32>
    %526 = arith.mulf %523, %525 : vector<8x32xf32>
    %c616 = arith.constant 616 : index
    %c0_146 = arith.constant 0 : index
    %527 = vector.load %arg2[%c616, %c0_146] : memref<824x128xf32, #tpu.memory_space<vmem>>, vector<1x32xf32>
    %528 = vector.broadcast %527 : vector<1x32xf32> to vector<8x32xf32>
    %529 = arith.addf %526, %528 : vector<8x32xf32>
    %c528 = arith.constant 528 : index
    %c0_147 = arith.constant 0 : index
    %530 = vector.load %arg2[%c528, %c0_147] : memref<824x128xf32, #tpu.memory_space<vmem>>, vector<32x96xf32>
    %c560 = arith.constant 560 : index
    %c0_148 = arith.constant 0 : index
    %531 = vector.load %arg2[%c560, %c0_148] : memref<824x128xf32, #tpu.memory_space<vmem>>, vector<1x96xf32>
    %532 = vector.extract_strided_slice %530 {offsets = [0, 0], sizes = [32, 32], strides = [1, 1]} : vector<32x96xf32> to vector<32x32xf32>
    %533 = arith.truncf %529 : vector<8x32xf32> to vector<8x32xbf16>
    %534 = arith.truncf %532 : vector<32x32xf32> to vector<32x32xbf16>
    %cst_149 = arith.constant dense<0.000000e+00> : vector<8x32xf32>
    %535 = tpu.matmul %533, %534, %cst_149 {dimension_numbers = #tpu.dot_dimension_numbers<[1], [0], [0], [1], [0, 0, 1, 1], [], []>} : vector<8x32xbf16>, vector<32x32xbf16>, vector<8x32xf32> -> vector<8x32xf32>
    %536 = vector.extract_strided_slice %531 {offsets = [0, 0], sizes = [1, 32], strides = [1, 1]} : vector<1x96xf32> to vector<1x32xf32>
    %537 = vector.broadcast %536 : vector<1x32xf32> to vector<8x32xf32>
    %538 = arith.addf %535, %537 : vector<8x32xf32>
    %539 = vector.extract_strided_slice %530 {offsets = [0, 32], sizes = [32, 64], strides = [1, 1]} : vector<32x96xf32> to vector<32x64xf32>
    %540 = arith.truncf %365 : vector<8x32xf32> to vector<8x32xbf16>
    %541 = arith.truncf %539 : vector<32x64xf32> to vector<32x64xbf16>
    %cst_150 = arith.constant dense<0.000000e+00> : vector<8x64xf32>
    %542 = tpu.matmul %540, %541, %cst_150 {dimension_numbers = #tpu.dot_dimension_numbers<[1], [0], [0], [1], [0, 0, 1, 1], [], []>} : vector<8x32xbf16>, vector<32x64xbf16>, vector<8x64xf32> -> vector<8x64xf32>
    %543 = vector.extract_strided_slice %531 {offsets = [0, 32], sizes = [1, 64], strides = [1, 1]} : vector<1x96xf32> to vector<1x64xf32>
    %544 = vector.broadcast %543 : vector<1x64xf32> to vector<8x64xf32>
    %545 = arith.addf %542, %544 : vector<8x64xf32>
    %546 = vector.extract_strided_slice %545 {offsets = [0, 0], sizes = [8, 32], strides = [1, 1]} : vector<8x64xf32> to vector<8x32xf32>
    %547 = vector.extract_strided_slice %545 {offsets = [0, 32], sizes = [8, 32], strides = [1, 1]} : vector<8x64xf32> to vector<8x32xf32>
    %c568 = arith.constant 568 : index
    %c0_151 = arith.constant 0 : index
    %548 = vector.load %arg2[%c568, %c0_151] : memref<824x128xf32, #tpu.memory_space<vmem>>, vector<32x32xf32>
    %cst_152 = arith.constant 0.000000e+00 : f32
    %549 = vector.broadcast %cst_152 : f32 to vector<8x32xf32>
    %550 = vector.extract_strided_slice %538 {offsets = [0, 0], sizes = [8, 8], strides = [1, 1]} : vector<8x32xf32> to vector<8x8xf32>
    %551 = vector.extract_strided_slice %546 {offsets = [0, 0], sizes = [8, 8], strides = [1, 1]} : vector<8x32xf32> to vector<8x8xf32>
    %552 = arith.truncf %550 : vector<8x8xf32> to vector<8x8xbf16>
    %553 = arith.truncf %551 : vector<8x8xf32> to vector<8x8xbf16>
    %cst_153 = arith.constant dense<0.000000e+00> : vector<8x8xf32>
    %554 = tpu.matmul %552, %553, %cst_153 {dimension_numbers = #tpu.dot_dimension_numbers<[1], [1], [0], [0], [0, 0, 1, 0], [], []>} : vector<8x8xbf16>, vector<8x8xbf16>, vector<8x8xf32> -> vector<8x8xf32>
    %cst_154 = arith.constant 0.353553385 : f32
    %555 = vector.broadcast %cst_154 : f32 to vector<8x8xf32>
    %556 = arith.mulf %554, %555 : vector<8x8xf32>
    %cst_155 = arith.constant dense<0xFF800000> : vector<8xf32>
    %557 = vector.multi_reduction <maximumf>, %556, %cst_155 [1] : vector<8x8xf32> to vector<8xf32>
    %558 = vector.shape_cast %557 : vector<8xf32> to vector<8x1xf32>
    %559 = vector.broadcast %558 : vector<8x1xf32> to vector<8x8xf32>
    %560 = arith.subf %556, %559 : vector<8x8xf32>
    %561 = math.exp %560 : vector<8x8xf32>
    %cst_156 = arith.constant dense<0.000000e+00> : vector<8xf32>
    %562 = vector.multi_reduction <add>, %561, %cst_156 [1] : vector<8x8xf32> to vector<8xf32>
    %563 = vector.shape_cast %562 : vector<8xf32> to vector<8x1xf32>
    %564 = tpu.reciprocal %563 {approx = true} : vector<8x1xf32> -> vector<8x1xf32>
    %565 = vector.broadcast %564 : vector<8x1xf32> to vector<8x8xf32>
    %566 = arith.mulf %561, %565 : vector<8x8xf32>
    %567 = vector.extract_strided_slice %547 {offsets = [0, 0], sizes = [8, 8], strides = [1, 1]} : vector<8x32xf32> to vector<8x8xf32>
    %568 = arith.truncf %566 : vector<8x8xf32> to vector<8x8xbf16>
    %569 = arith.truncf %567 : vector<8x8xf32> to vector<8x8xbf16>
    %cst_157 = arith.constant dense<0.000000e+00> : vector<8x8xf32>
    %570 = tpu.matmul %568, %569, %cst_157 {dimension_numbers = #tpu.dot_dimension_numbers<[1], [0], [0], [1], [0, 0, 1, 1], [], []>} : vector<8x8xbf16>, vector<8x8xbf16>, vector<8x8xf32> -> vector<8x8xf32>
    %571 = vector.extract_strided_slice %548 {offsets = [0, 0], sizes = [8, 32], strides = [1, 1]} : vector<32x32xf32> to vector<8x32xf32>
    %572 = arith.truncf %570 : vector<8x8xf32> to vector<8x8xbf16>
    %573 = arith.truncf %571 : vector<8x32xf32> to vector<8x32xbf16>
    %cst_158 = arith.constant dense<0.000000e+00> : vector<8x32xf32>
    %574 = tpu.matmul %572, %573, %cst_158 {dimension_numbers = #tpu.dot_dimension_numbers<[1], [0], [0], [1], [0, 0, 1, 1], [], []>} : vector<8x8xbf16>, vector<8x32xbf16>, vector<8x32xf32> -> vector<8x32xf32>
    %575 = arith.addf %549, %574 : vector<8x32xf32>
    %576 = vector.extract_strided_slice %538 {offsets = [0, 8], sizes = [8, 8], strides = [1, 1]} : vector<8x32xf32> to vector<8x8xf32>
    %577 = vector.extract_strided_slice %546 {offsets = [0, 8], sizes = [8, 8], strides = [1, 1]} : vector<8x32xf32> to vector<8x8xf32>
    %578 = arith.truncf %576 : vector<8x8xf32> to vector<8x8xbf16>
    %579 = arith.truncf %577 : vector<8x8xf32> to vector<8x8xbf16>
    %cst_159 = arith.constant dense<0.000000e+00> : vector<8x8xf32>
    %580 = tpu.matmul %578, %579, %cst_159 {dimension_numbers = #tpu.dot_dimension_numbers<[1], [1], [0], [0], [0, 0, 1, 0], [], []>} : vector<8x8xbf16>, vector<8x8xbf16>, vector<8x8xf32> -> vector<8x8xf32>
    %cst_160 = arith.constant 0.353553385 : f32
    %581 = vector.broadcast %cst_160 : f32 to vector<8x8xf32>
    %582 = arith.mulf %580, %581 : vector<8x8xf32>
    %cst_161 = arith.constant dense<0xFF800000> : vector<8xf32>
    %583 = vector.multi_reduction <maximumf>, %582, %cst_161 [1] : vector<8x8xf32> to vector<8xf32>
    %584 = vector.shape_cast %583 : vector<8xf32> to vector<8x1xf32>
    %585 = vector.broadcast %584 : vector<8x1xf32> to vector<8x8xf32>
    %586 = arith.subf %582, %585 : vector<8x8xf32>
    %587 = math.exp %586 : vector<8x8xf32>
    %cst_162 = arith.constant dense<0.000000e+00> : vector<8xf32>
    %588 = vector.multi_reduction <add>, %587, %cst_162 [1] : vector<8x8xf32> to vector<8xf32>
    %589 = vector.shape_cast %588 : vector<8xf32> to vector<8x1xf32>
    %590 = tpu.reciprocal %589 {approx = true} : vector<8x1xf32> -> vector<8x1xf32>
    %591 = vector.broadcast %590 : vector<8x1xf32> to vector<8x8xf32>
    %592 = arith.mulf %587, %591 : vector<8x8xf32>
    %593 = vector.extract_strided_slice %547 {offsets = [0, 8], sizes = [8, 8], strides = [1, 1]} : vector<8x32xf32> to vector<8x8xf32>
    %594 = arith.truncf %592 : vector<8x8xf32> to vector<8x8xbf16>
    %595 = arith.truncf %593 : vector<8x8xf32> to vector<8x8xbf16>
    %cst_163 = arith.constant dense<0.000000e+00> : vector<8x8xf32>
    %596 = tpu.matmul %594, %595, %cst_163 {dimension_numbers = #tpu.dot_dimension_numbers<[1], [0], [0], [1], [0, 0, 1, 1], [], []>} : vector<8x8xbf16>, vector<8x8xbf16>, vector<8x8xf32> -> vector<8x8xf32>
    %597 = vector.extract_strided_slice %548 {offsets = [8, 0], sizes = [8, 32], strides = [1, 1]} : vector<32x32xf32> to vector<8x32xf32>
    %598 = arith.truncf %596 : vector<8x8xf32> to vector<8x8xbf16>
    %599 = arith.truncf %597 : vector<8x32xf32> to vector<8x32xbf16>
    %cst_164 = arith.constant dense<0.000000e+00> : vector<8x32xf32>
    %600 = tpu.matmul %598, %599, %cst_164 {dimension_numbers = #tpu.dot_dimension_numbers<[1], [0], [0], [1], [0, 0, 1, 1], [], []>} : vector<8x8xbf16>, vector<8x32xbf16>, vector<8x32xf32> -> vector<8x32xf32>
    %601 = arith.addf %575, %600 : vector<8x32xf32>
    %602 = vector.extract_strided_slice %538 {offsets = [0, 16], sizes = [8, 8], strides = [1, 1]} : vector<8x32xf32> to vector<8x8xf32>
    %603 = vector.extract_strided_slice %546 {offsets = [0, 16], sizes = [8, 8], strides = [1, 1]} : vector<8x32xf32> to vector<8x8xf32>
    %604 = arith.truncf %602 : vector<8x8xf32> to vector<8x8xbf16>
    %605 = arith.truncf %603 : vector<8x8xf32> to vector<8x8xbf16>
    %cst_165 = arith.constant dense<0.000000e+00> : vector<8x8xf32>
    %606 = tpu.matmul %604, %605, %cst_165 {dimension_numbers = #tpu.dot_dimension_numbers<[1], [1], [0], [0], [0, 0, 1, 0], [], []>} : vector<8x8xbf16>, vector<8x8xbf16>, vector<8x8xf32> -> vector<8x8xf32>
    %cst_166 = arith.constant 0.353553385 : f32
    %607 = vector.broadcast %cst_166 : f32 to vector<8x8xf32>
    %608 = arith.mulf %606, %607 : vector<8x8xf32>
    %cst_167 = arith.constant dense<0xFF800000> : vector<8xf32>
    %609 = vector.multi_reduction <maximumf>, %608, %cst_167 [1] : vector<8x8xf32> to vector<8xf32>
    %610 = vector.shape_cast %609 : vector<8xf32> to vector<8x1xf32>
    %611 = vector.broadcast %610 : vector<8x1xf32> to vector<8x8xf32>
    %612 = arith.subf %608, %611 : vector<8x8xf32>
    %613 = math.exp %612 : vector<8x8xf32>
    %cst_168 = arith.constant dense<0.000000e+00> : vector<8xf32>
    %614 = vector.multi_reduction <add>, %613, %cst_168 [1] : vector<8x8xf32> to vector<8xf32>
    %615 = vector.shape_cast %614 : vector<8xf32> to vector<8x1xf32>
    %616 = tpu.reciprocal %615 {approx = true} : vector<8x1xf32> -> vector<8x1xf32>
    %617 = vector.broadcast %616 : vector<8x1xf32> to vector<8x8xf32>
    %618 = arith.mulf %613, %617 : vector<8x8xf32>
    %619 = vector.extract_strided_slice %547 {offsets = [0, 16], sizes = [8, 8], strides = [1, 1]} : vector<8x32xf32> to vector<8x8xf32>
    %620 = arith.truncf %618 : vector<8x8xf32> to vector<8x8xbf16>
    %621 = arith.truncf %619 : vector<8x8xf32> to vector<8x8xbf16>
    %cst_169 = arith.constant dense<0.000000e+00> : vector<8x8xf32>
    %622 = tpu.matmul %620, %621, %cst_169 {dimension_numbers = #tpu.dot_dimension_numbers<[1], [0], [0], [1], [0, 0, 1, 1], [], []>} : vector<8x8xbf16>, vector<8x8xbf16>, vector<8x8xf32> -> vector<8x8xf32>
    %623 = vector.extract_strided_slice %548 {offsets = [16, 0], sizes = [8, 32], strides = [1, 1]} : vector<32x32xf32> to vector<8x32xf32>
    %624 = arith.truncf %622 : vector<8x8xf32> to vector<8x8xbf16>
    %625 = arith.truncf %623 : vector<8x32xf32> to vector<8x32xbf16>
    %cst_170 = arith.constant dense<0.000000e+00> : vector<8x32xf32>
    %626 = tpu.matmul %624, %625, %cst_170 {dimension_numbers = #tpu.dot_dimension_numbers<[1], [0], [0], [1], [0, 0, 1, 1], [], []>} : vector<8x8xbf16>, vector<8x32xbf16>, vector<8x32xf32> -> vector<8x32xf32>
    %627 = arith.addf %601, %626 : vector<8x32xf32>
    %628 = vector.extract_strided_slice %538 {offsets = [0, 24], sizes = [8, 8], strides = [1, 1]} : vector<8x32xf32> to vector<8x8xf32>
    %629 = vector.extract_strided_slice %546 {offsets = [0, 24], sizes = [8, 8], strides = [1, 1]} : vector<8x32xf32> to vector<8x8xf32>
    %630 = arith.truncf %628 : vector<8x8xf32> to vector<8x8xbf16>
    %631 = arith.truncf %629 : vector<8x8xf32> to vector<8x8xbf16>
    %cst_171 = arith.constant dense<0.000000e+00> : vector<8x8xf32>
    %632 = tpu.matmul %630, %631, %cst_171 {dimension_numbers = #tpu.dot_dimension_numbers<[1], [1], [0], [0], [0, 0, 1, 0], [], []>} : vector<8x8xbf16>, vector<8x8xbf16>, vector<8x8xf32> -> vector<8x8xf32>
    %cst_172 = arith.constant 0.353553385 : f32
    %633 = vector.broadcast %cst_172 : f32 to vector<8x8xf32>
    %634 = arith.mulf %632, %633 : vector<8x8xf32>
    %cst_173 = arith.constant dense<0xFF800000> : vector<8xf32>
    %635 = vector.multi_reduction <maximumf>, %634, %cst_173 [1] : vector<8x8xf32> to vector<8xf32>
    %636 = vector.shape_cast %635 : vector<8xf32> to vector<8x1xf32>
    %637 = vector.broadcast %636 : vector<8x1xf32> to vector<8x8xf32>
    %638 = arith.subf %634, %637 : vector<8x8xf32>
    %639 = math.exp %638 : vector<8x8xf32>
    %cst_174 = arith.constant dense<0.000000e+00> : vector<8xf32>
    %640 = vector.multi_reduction <add>, %639, %cst_174 [1] : vector<8x8xf32> to vector<8xf32>
    %641 = vector.shape_cast %640 : vector<8xf32> to vector<8x1xf32>
    %642 = tpu.reciprocal %641 {approx = true} : vector<8x1xf32> -> vector<8x1xf32>
    %643 = vector.broadcast %642 : vector<8x1xf32> to vector<8x8xf32>
    %644 = arith.mulf %639, %643 : vector<8x8xf32>
    %645 = vector.extract_strided_slice %547 {offsets = [0, 24], sizes = [8, 8], strides = [1, 1]} : vector<8x32xf32> to vector<8x8xf32>
    %646 = arith.truncf %644 : vector<8x8xf32> to vector<8x8xbf16>
    %647 = arith.truncf %645 : vector<8x8xf32> to vector<8x8xbf16>
    %cst_175 = arith.constant dense<0.000000e+00> : vector<8x8xf32>
    %648 = tpu.matmul %646, %647, %cst_175 {dimension_numbers = #tpu.dot_dimension_numbers<[1], [0], [0], [1], [0, 0, 1, 1], [], []>} : vector<8x8xbf16>, vector<8x8xbf16>, vector<8x8xf32> -> vector<8x8xf32>
    %649 = vector.extract_strided_slice %548 {offsets = [24, 0], sizes = [8, 32], strides = [1, 1]} : vector<32x32xf32> to vector<8x32xf32>
    %650 = arith.truncf %648 : vector<8x8xf32> to vector<8x8xbf16>
    %651 = arith.truncf %649 : vector<8x32xf32> to vector<8x32xbf16>
    %cst_176 = arith.constant dense<0.000000e+00> : vector<8x32xf32>
    %652 = tpu.matmul %650, %651, %cst_176 {dimension_numbers = #tpu.dot_dimension_numbers<[1], [0], [0], [1], [0, 0, 1, 1], [], []>} : vector<8x8xbf16>, vector<8x32xbf16>, vector<8x32xf32> -> vector<8x32xf32>
    %653 = arith.addf %627, %652 : vector<8x32xf32>
    %c600 = arith.constant 600 : index
    %c0_177 = arith.constant 0 : index
    %654 = vector.load %arg2[%c600, %c0_177] : memref<824x128xf32, #tpu.memory_space<vmem>>, vector<1x32xf32>
    %655 = vector.broadcast %654 : vector<1x32xf32> to vector<8x32xf32>
    %656 = arith.addf %653, %655 : vector<8x32xf32>
    %657 = arith.addf %529, %656 : vector<8x32xf32>
    %cst_178 = arith.constant dense<0.000000e+00> : vector<8xf32>
    %658 = vector.multi_reduction <add>, %657, %cst_178 [1] : vector<8x32xf32> to vector<8xf32>
    %659 = vector.shape_cast %658 : vector<8xf32> to vector<8x1xf32>
    %cst_179 = arith.constant 3.200000e+01 : f32
    %660 = vector.broadcast %cst_179 : f32 to vector<8x1xf32>
    %661 = arith.divf %659, %660 : vector<8x1xf32>
    %662 = vector.broadcast %661 : vector<8x1xf32> to vector<8x32xf32>
    %663 = arith.subf %657, %662 : vector<8x32xf32>
    %664 = arith.mulf %663, %663 : vector<8x32xf32>
    %cst_180 = arith.constant dense<0.000000e+00> : vector<8xf32>
    %665 = vector.multi_reduction <add>, %664, %cst_180 [1] : vector<8x32xf32> to vector<8xf32>
    %666 = vector.shape_cast %665 : vector<8xf32> to vector<8x1xf32>
    %cst_181 = arith.constant 3.200000e+01 : f32
    %667 = vector.broadcast %cst_181 : f32 to vector<8x1xf32>
    %668 = arith.divf %666, %667 : vector<8x1xf32>
    %cst_182 = arith.constant 9.99999974E-6 : f32
    %669 = vector.broadcast %cst_182 : f32 to vector<8x1xf32>
    %670 = arith.addf %668, %669 : vector<8x1xf32>
    %671 = math.rsqrt %670 : vector<8x1xf32>
    %672 = vector.broadcast %671 : vector<8x1xf32> to vector<8x32xf32>
    %673 = arith.mulf %663, %672 : vector<8x32xf32>
    %c624 = arith.constant 624 : index
    %c0_183 = arith.constant 0 : index
    %674 = vector.load %arg2[%c624, %c0_183] : memref<824x128xf32, #tpu.memory_space<vmem>>, vector<1x32xf32>
    %675 = vector.broadcast %674 : vector<1x32xf32> to vector<8x32xf32>
    %676 = arith.mulf %673, %675 : vector<8x32xf32>
    %c632 = arith.constant 632 : index
    %c0_184 = arith.constant 0 : index
    %677 = vector.load %arg2[%c632, %c0_184] : memref<824x128xf32, #tpu.memory_space<vmem>>, vector<1x32xf32>
    %678 = vector.broadcast %677 : vector<1x32xf32> to vector<8x32xf32>
    %679 = arith.addf %676, %678 : vector<8x32xf32>
    %c656 = arith.constant 656 : index
    %c0_185 = arith.constant 0 : index
    %680 = vector.load %arg2[%c656, %c0_185] : memref<824x128xf32, #tpu.memory_space<vmem>>, vector<32x64xf32>
    %681 = arith.truncf %679 : vector<8x32xf32> to vector<8x32xbf16>
    %682 = arith.truncf %680 : vector<32x64xf32> to vector<32x64xbf16>
    %cst_186 = arith.constant dense<0.000000e+00> : vector<8x64xf32>
    %683 = tpu.matmul %681, %682, %cst_186 {dimension_numbers = #tpu.dot_dimension_numbers<[1], [0], [0], [1], [0, 0, 1, 1], [], []>} : vector<8x32xbf16>, vector<32x64xbf16>, vector<8x64xf32> -> vector<8x64xf32>
    %c688 = arith.constant 688 : index
    %c0_187 = arith.constant 0 : index
    %684 = vector.load %arg2[%c688, %c0_187] : memref<824x128xf32, #tpu.memory_space<vmem>>, vector<1x64xf32>
    %685 = vector.broadcast %684 : vector<1x64xf32> to vector<8x64xf32>
    %686 = arith.addf %683, %685 : vector<8x64xf32>
    %cst_188 = arith.constant 0.000000e+00 : f32
    %687 = vector.broadcast %cst_188 : f32 to vector<8x64xf32>
    %688 = arith.maximumf %686, %687 : vector<8x64xf32>
    %c696 = arith.constant 696 : index
    %c0_189 = arith.constant 0 : index
    %689 = vector.load %arg2[%c696, %c0_189] : memref<824x128xf32, #tpu.memory_space<vmem>>, vector<64x32xf32>
    %690 = arith.truncf %688 : vector<8x64xf32> to vector<8x64xbf16>
    %691 = arith.truncf %689 : vector<64x32xf32> to vector<64x32xbf16>
    %cst_190 = arith.constant dense<0.000000e+00> : vector<8x32xf32>
    %692 = tpu.matmul %690, %691, %cst_190 {dimension_numbers = #tpu.dot_dimension_numbers<[1], [0], [0], [1], [0, 0, 1, 1], [], []>} : vector<8x64xbf16>, vector<64x32xbf16>, vector<8x32xf32> -> vector<8x32xf32>
    %c760 = arith.constant 760 : index
    %c0_191 = arith.constant 0 : index
    %693 = vector.load %arg2[%c760, %c0_191] : memref<824x128xf32, #tpu.memory_space<vmem>>, vector<1x32xf32>
    %694 = vector.broadcast %693 : vector<1x32xf32> to vector<8x32xf32>
    %695 = arith.addf %692, %694 : vector<8x32xf32>
    %696 = arith.addf %679, %695 : vector<8x32xf32>
    %cst_192 = arith.constant dense<0.000000e+00> : vector<8xf32>
    %697 = vector.multi_reduction <add>, %696, %cst_192 [1] : vector<8x32xf32> to vector<8xf32>
    %698 = vector.shape_cast %697 : vector<8xf32> to vector<8x1xf32>
    %cst_193 = arith.constant 3.200000e+01 : f32
    %699 = vector.broadcast %cst_193 : f32 to vector<8x1xf32>
    %700 = arith.divf %698, %699 : vector<8x1xf32>
    %701 = vector.broadcast %700 : vector<8x1xf32> to vector<8x32xf32>
    %702 = arith.subf %696, %701 : vector<8x32xf32>
    %703 = arith.mulf %702, %702 : vector<8x32xf32>
    %cst_194 = arith.constant dense<0.000000e+00> : vector<8xf32>
    %704 = vector.multi_reduction <add>, %703, %cst_194 [1] : vector<8x32xf32> to vector<8xf32>
    %705 = vector.shape_cast %704 : vector<8xf32> to vector<8x1xf32>
    %cst_195 = arith.constant 3.200000e+01 : f32
    %706 = vector.broadcast %cst_195 : f32 to vector<8x1xf32>
    %707 = arith.divf %705, %706 : vector<8x1xf32>
    %cst_196 = arith.constant 9.99999974E-6 : f32
    %708 = vector.broadcast %cst_196 : f32 to vector<8x1xf32>
    %709 = arith.addf %707, %708 : vector<8x1xf32>
    %710 = math.rsqrt %709 : vector<8x1xf32>
    %711 = vector.broadcast %710 : vector<8x1xf32> to vector<8x32xf32>
    %712 = arith.mulf %702, %711 : vector<8x32xf32>
    %c640 = arith.constant 640 : index
    %c0_197 = arith.constant 0 : index
    %713 = vector.load %arg2[%c640, %c0_197] : memref<824x128xf32, #tpu.memory_space<vmem>>, vector<1x32xf32>
    %714 = vector.broadcast %713 : vector<1x32xf32> to vector<8x32xf32>
    %715 = arith.mulf %712, %714 : vector<8x32xf32>
    %c648 = arith.constant 648 : index
    %c0_198 = arith.constant 0 : index
    %716 = vector.load %arg2[%c648, %c0_198] : memref<824x128xf32, #tpu.memory_space<vmem>>, vector<1x32xf32>
    %717 = vector.broadcast %716 : vector<1x32xf32> to vector<8x32xf32>
    %718 = arith.addf %715, %717 : vector<8x32xf32>
    %cst_199 = arith.constant dense<0.000000e+00> : vector<8xf32>
    %719 = vector.multi_reduction <add>, %718, %cst_199 [1] : vector<8x32xf32> to vector<8xf32>
    %720 = vector.shape_cast %719 : vector<8xf32> to vector<8x1xf32>
    %cst_200 = arith.constant 3.200000e+01 : f32
    %721 = vector.broadcast %cst_200 : f32 to vector<8x1xf32>
    %722 = arith.divf %720, %721 : vector<8x1xf32>
    %723 = vector.broadcast %722 : vector<8x1xf32> to vector<8x32xf32>
    %724 = arith.subf %718, %723 : vector<8x32xf32>
    %725 = arith.mulf %724, %724 : vector<8x32xf32>
    %cst_201 = arith.constant dense<0.000000e+00> : vector<8xf32>
    %726 = vector.multi_reduction <add>, %725, %cst_201 [1] : vector<8x32xf32> to vector<8xf32>
    %727 = vector.shape_cast %726 : vector<8xf32> to vector<8x1xf32>
    %cst_202 = arith.constant 3.200000e+01 : f32
    %728 = vector.broadcast %cst_202 : f32 to vector<8x1xf32>
    %729 = arith.divf %727, %728 : vector<8x1xf32>
    %cst_203 = arith.constant 9.99999974E-6 : f32
    %730 = vector.broadcast %cst_203 : f32 to vector<8x1xf32>
    %731 = arith.addf %729, %730 : vector<8x1xf32>
    %732 = math.rsqrt %731 : vector<8x1xf32>
    %733 = vector.broadcast %732 : vector<8x1xf32> to vector<8x32xf32>
    %734 = arith.mulf %724, %733 : vector<8x32xf32>
    %c768 = arith.constant 768 : index
    %c0_204 = arith.constant 0 : index
    %735 = vector.load %arg2[%c768, %c0_204] : memref<824x128xf32, #tpu.memory_space<vmem>>, vector<1x32xf32>
    %736 = vector.broadcast %735 : vector<1x32xf32> to vector<8x32xf32>
    %737 = arith.mulf %734, %736 : vector<8x32xf32>
    %c776 = arith.constant 776 : index
    %c0_205 = arith.constant 0 : index
    %738 = vector.load %arg2[%c776, %c0_205] : memref<824x128xf32, #tpu.memory_space<vmem>>, vector<1x32xf32>
    %739 = vector.broadcast %738 : vector<1x32xf32> to vector<8x32xf32>
    %740 = arith.addf %737, %739 : vector<8x32xf32>
    %c784 = arith.constant 784 : index
    %c0_206 = arith.constant 0 : index
    %741 = vector.load %arg2[%c784, %c0_206] : memref<824x128xf32, #tpu.memory_space<vmem>>, vector<32x10xf32>
    %742 = arith.truncf %740 : vector<8x32xf32> to vector<8x32xbf16>
    %743 = arith.truncf %741 : vector<32x10xf32> to vector<32x10xbf16>
    %cst_207 = arith.constant dense<0.000000e+00> : vector<8x10xf32>
    %744 = tpu.matmul %742, %743, %cst_207 {dimension_numbers = #tpu.dot_dimension_numbers<[1], [0], [0], [1], [0, 0, 1, 1], [], []>} : vector<8x32xbf16>, vector<32x10xbf16>, vector<8x10xf32> -> vector<8x10xf32>
    %c816 = arith.constant 816 : index
    %c0_208 = arith.constant 0 : index
    %745 = vector.load %arg2[%c816, %c0_208] : memref<824x128xf32, #tpu.memory_space<vmem>>, vector<1x10xf32>
    %746 = vector.broadcast %745 : vector<1x10xf32> to vector<8x10xf32>
    %747 = arith.addf %744, %746 : vector<8x10xf32>
    %c0_209 = arith.constant 0 : index
    %c0_210 = arith.constant 0 : index
    %c0_211 = arith.constant 0 : index
    %748 = vector.load %arg3[%c0_209, %c0_210, %c0_211] : memref<1x8x10xf32, #tpu.memory_space<vmem>>, vector<1x8x10xf32>
    %749 = vector.shape_cast %748 : vector<1x8x10xf32> to vector<8x10xf32>
    %750 = vector.shape_cast %747 : vector<8x10xf32> to vector<1x8x10xf32>
    tpu.vector_store %arg3[%c0_209, %c0_210, %c0_211], %750 {strides = array<i32>} : memref<1x8x10xf32, #tpu.memory_space<vmem>>, vector<1x8x10xf32>,
    return
  }
  func.func @transform_0(%arg0: i32) -> (i32, i32, i32) {
    %c0_i32 = arith.constant 0 : i32
    %c0_i32_0 = arith.constant 0 : i32
    %c0_i32_1 = arith.constant 0 : i32
    return %arg0, %c0_i32, %c0_i32_0 : i32, i32, i32
  }
  func.func @transform_1(%arg0: i32) -> (i32, i32) {
    %c0_i32 = arith.constant 0 : i32
    %c0_i32_0 = arith.constant 0 : i32
    %c0_i32_1 = arith.constant 0 : i32
    return %c0_i32, %c0_i32_0 : i32, i32
  }
  func.func @transform_2(%arg0: i32) -> (i32, i32, i32) {
    %c0_i32 = arith.constant 0 : i32
    %c0_i32_0 = arith.constant 0 : i32
    %c0_i32_1 = arith.constant 0 : i32
    return %arg0, %c0_i32, %c0_i32_0 : i32, i32, i32
  }
}

</mosaic_0001>

<llo_original>
// kernel: _lambda_.1
$region0: #{_lambda_.1}
  #allocation0 [shape = 'u32[]', space=smem, size = 0x4, offset = 0x4, fixed_abs, tag = 'smem constant byte address 0x4 - core index']
  #allocation1 [shape = 'u32[144,128]{1,0:T(1,128)}', space=vmem, size = 0x12000, scoped, tag = 'internal scratch']
  %s0 = inlined_call_operand.vmem [shape: f32[2,24,40], index: 0, kind: input, shape index: {}]
  %s1 = inlined_call_operand.hbm [shape: f32[824,128], index: 1, kind: input, shape index: {}]
  %s2 = inlined_call_operand.hbm [shape: f32[2,8,10], index: 2, kind: output, shape index: {}]
  %s3 = sld [smem:[#allocation0]]
  $region45: #{_lambda_.1} parent=0
    _
  %s5 = ssub.s32 1, %s3
  %s6 = scalar_select 0, %s5, %s3
  $region1: #{_lambda_.1} parent=0
    #allocation2 [shape = 'u8[421888]{0}', space=vmem, size = 0x67000, scoped, tag = 'input window, operand 1, single buffered']
    #allocation3 [shape = 's32[2]{0}', space=sflag, size = 0x8, scoped, tag = 'scoped memory for _lambda_.1']
    #allocation4 [shape = 's32[2]{0}', space=sflag, size = 0x8, scoped, tag = 'scoped memory for _lambda_.1']
    #allocation5 [shape = 'u8[8192]{0}', space=vmem, size = 0x2000, scoped, tag = 'output window, operand 0']
    %7 = vsyncpa [#allocation3], 0
    %8 = vsyncpa [#allocation4], 0
    %s9 = scalar_lea.sflag [#allocation4], 1
    %10 = vsyncpa %s9, 0
    loop: start=0, step=1, limit=4
    $region2: #{_lambda_.1} parent=1 // loop_pre_header
      _
    $region3: #{_lambda_.1} parent=1 // loop_header
      %s12 = sphi 0, %s16
      %p13 = scmp.ge.s32.totalorder %s12, 4
      %s22 = sphi 0, %s24
      %s25 = sphi 0, %s22
      %s26 = sphi 0, %s25
      %s42 = sphi 0, %s26
      %s46 = sphi 0, %s46
      %s48 = sphi 0, %s46
      %s49 = sphi 0, %s48
      %s63 = sphi 0, %s49
      %s69 = sphi 0, %s71
      %s72 = sphi 0, %s69
      %s73 = sphi 0, %s72
      %s89 = sphi 0, %s73
    $region4: #{_lambda_.1} parent=1 // loop_header_branch
      %15 = sbr.rel (%p13) target = $region8
    $region5: #{_lambda_.1} parent=1 // loop_body
      %s17 = ssub.s32 %s12, 1
      %s18 = ssub.s32 %s12, 2
      %s19 = sadd.s32 %s12, 1
      %s20 = ssub.s32 %s12, %s19
      %p21 = scmp.eq.s32.totalorder %s20, 0
      %s23 = sadd.s32 %s22, 1
      %s24 = scalar_select %p21, %s22, %s23
      %p27 = pneg %p21
      %p28 = scmp.eq.s32.totalorder %s12, 1
      %p29 = por %p27, %p28
      %p30 = scmp.ne.s32.totalorder %s22, %s25
      %p31 = scmp.eq.s32.totalorder %s12, 0
      %p32 = por %p30, %p31
      %p33 = scmp.ne.s32.totalorder %s22, %s25
      %p34 = scmp.eq.s32.totalorder %s17, 1
      %p35 = por %p33, %p34
      %p36 = scmp.ne.s32.totalorder %s25, %s26
      %p37 = scmp.eq.s32.totalorder %s17, 0
      %p38 = por %p36, %p37
      %p39 = scmp.ne.s32.totalorder %s25, %s26
      %p40 = scmp.eq.s32.totalorder %s18, 1
      %p41 = por %p39, %p40
      %p43 = scmp.ne.s32.totalorder %s26, %s42
      %p44 = scmp.eq.s32.totalorder %s18, 0
      %p45 = por %p43, %p44
      %s47 = sadd.s32 %s46, 1
      %p50 = scmp.eq.s32.totalorder %s12, 1
      %p51 = scmp.ne.s32.totalorder %s46, %s48
      %p52 = scmp.eq.s32.totalorder %s12, 0
      %p53 = por %p51, %p52
      %p54 = scmp.ne.s32.totalorder %s46, %s48
      %p55 = scmp.eq.s32.totalorder %s17, 1
      %p56 = por %p54, %p55
      %p57 = scmp.ne.s32.totalorder %s48, %s49
      %p58 = scmp.eq.s32.totalorder %s17, 0
      %p59 = por %p57, %p58
      %p60 = scmp.ne.s32.totalorder %s48, %s49
      %p61 = scmp.eq.s32.totalorder %s18, 1
      %p62 = por %p60, %p61
      %p64 = scmp.ne.s32.totalorder %s49, %s63
      %p65 = scmp.eq.s32.totalorder %s18, 0
      %p66 = por %p64, %p65
      %s67 = ssub.s32 %s12, %s19
      %p68 = scmp.eq.s32.totalorder %s67, 0
      %s70 = sadd.s32 %s69, 1
      %s71 = scalar_select %p68, %s69, %s70
      %p74 = pneg %p68
      %p75 = scmp.eq.s32.totalorder %s12, 1
      %p76 = por %p74, %p75
      %p77 = scmp.ne.s32.totalorder %s69, %s72
      %p78 = scmp.eq.s32.totalorder %s12, 0
      %p79 = por %p77, %p78
      %p80 = scmp.ne.s32.totalorder %s69, %s72
      %p81 = scmp.eq.s32.totalorder %s17, 1
      %p82 = por %p80, %p81
      %p83 = scmp.ne.s32.totalorder %s72, %s73
      %p84 = scmp.eq.s32.totalorder %s17, 0
      %p85 = por %p83, %p84
      %p86 = scmp.ne.s32.totalorder %s72, %s73
      %p87 = scmp.eq.s32.totalorder %s18, 1
      %p88 = por %p86, %p87
      %p90 = scmp.ne.s32.totalorder %s73, %s89
      %p91 = scmp.eq.s32.totalorder %s18, 0
      %p92 = por %p90, %p91
      %p93 = scmp.le.s32.totalorder 1, %s12
      %p94 = scmp.lt.s32.totalorder %s12, 3
      %p95 = pnand %p93, %p94
      %p96 = pneg %p95
      // Predicated region
      $region9: #{_lambda_.1} parent=5 // pred_check
        _
      $region10: #{_lambda_.1} parent=5 // pred_check_branch
        %98 = sbr.rel (%p95) target = $region12
      $region11: #{_lambda_.1} parent=5 // pred_region
        %s99 = ssub.s32 %s12, 1
        // Predicated region
        $region13: #{_lambda_.1} parent=11 // pred_check
          %p100 = pneg %p59
        $region14: #{_lambda_.1} parent=11 // pred_check_branch
          %102 = sbr.rel (%p100) target = $region16
        $region15: #{_lambda_.1} parent=11 // pred_region
          %s104 = ssub.s32 13184, 13184
          %105 = vsyncadd [#allocation3], %s104
          %s106 = sshll.u32 [#allocation2], 4
          %s107 = int_to_ptr.vmem [resolvable:$true] %s106
          %112 = dma.hbm_to_vmem [thread:$0]  %s1, 13184, %s107, [#allocation3], 128, 128, 8
        $region16: #{_lambda_.1} parent=11 // pred_fallthru
          _
      $region12: #{_lambda_.1} parent=5 // pred_fallthru
        _
      %p113 = scmp.lt.s32.totalorder %s12, 2
      // Predicated region
      $region17: #{_lambda_.1} parent=5 // pred_check
        %p114 = pneg %p113
      $region18: #{_lambda_.1} parent=5 // pred_check_branch
        %116 = sbr.rel (%p114) target = $region20
      $region19: #{_lambda_.1} parent=5 // pred_region
        // Predicated region
        $region21: #{_lambda_.1} parent=19 // pred_check
          %p117 = pneg %p32
        $region22: #{_lambda_.1} parent=19 // pred_check_branch
          %119 = sbr.rel (%p117) target = $region24
        $region23: #{_lambda_.1} parent=19 // pred_region
          %p120 = scmp.lt.s32.totalorder %s12, 1
          %s121 = scalar_select %p120, %s12, 1
          %s122 = smul.addr %s121, 3
          %s123 = smul.addr %s122, 8
          %s124 = scalar_lea.vmem %s0, %s123
        $region24: #{_lambda_.1} parent=19 // pred_fallthru
          _
      $region20: #{_lambda_.1} parent=5 // pred_fallthru
        _
      %p125 = scmp.le.s32.totalorder 1, %s12
      %p126 = scmp.lt.s32.totalorder %s12, 3
      %p127 = pnand %p125, %p126
      %p128 = pneg %p127
      // Predicated region
      $region25: #{_lambda_.1} parent=5 // pred_check
        _
      $region26: #{_lambda_.1} parent=5 // pred_check_branch
        %130 = sbr.rel (%p127) target = $region28
      $region27: #{_lambda_.1} parent=5 // pred_region
        %s131 = ssub.s32 %s12, 1
        // Predicated region
        $region29: #{_lambda_.1} parent=27 // pred_check
          %p132 = pneg %p59
        $region30: #{_lambda_.1} parent=27 // pred_check_branch
          %134 = sbr.rel (%p132) target = $region32
        $region31: #{_lambda_.1} parent=27 // pred_region
          %135 = dma.done [#allocation3], 13184
        $region32: #{_lambda_.1} parent=27 // pred_fallthru
          _
        %p136 = scmp.lt.s32.totalorder %s17, 1
        %s137 = scalar_select %p136, %s17, 1
        %s138 = smul.addr %s137, 3
        %s139 = smul.addr %s138, 8
        %s140 = scalar_lea.vmem %s0, %s139
        %p141 = pneg %p38
        %p142 = pneg %p35
        %p143 = pneg %p59
        %p144 = pneg %p56
        %p145 = pneg %p85
        %p146 = pneg %p82
        %s147 = sand.u32 %s72, 1
        %s148 = scalar_lea.sflag [#allocation4], %s147
        %s149 = sand.u32 %s72, 1
        %s150 = smul.addr %s149, 8
        %s151 = scalar_lea.vmem [#allocation5], %s150
        %p152 = scmp.lt.s32.totalorder %s17, 1
        %s153 = scalar_select %p152, %s17, 1
        %s154 = smul.addr %s153, 3
        %s155 = smul.addr %s154, 8
        %s156 = scalar_lea.vmem %s0, %s155
        %v158 = vld [vmem:[%s156] sm:$0xff]
        %v159 = vld [vmem:[%s156 + $0x8] sm:$0xff]
        %v160 = vld [vmem:[%s156 + $0x10] sm:$0xff]
        %v161 = vld [vmem:[#allocation2] sm:$0xff]
        %v162 = vld [vmem:[#allocation2 + $0x8] sm:$0xff]
        %v163 = vld [vmem:[#allocation2 + $0x10] sm:$0xff]
        %v164 = vld [vmem:[#allocation2 + $0x18] sm:$0xff]
        %v165 = vld [vmem:[#allocation2 + $0x20] sm:$0xff]
        %v166 = vpack.c.bf16 %v159, %v158
        %v167 = vpack.c.bf16 %v162, %v161
        %v168 = vpack.c.bf16 %v164, %v163
        %v169 = vpack.c.bf16 %v165, %v165
        %v170 = vld [vmem:[#allocation2 + $0x28] sm:$0x1]
        %v171 = vlaneseq
        %v172 = vshrl.u32 %v171, 7
        %v173 = vsub.s32 0, %v172
        %v174 = vrot.slane %v170, %v173
        %vm175 = vcmask 326656
        %v177 = vsel %vm175, %v166, 0
        %vm179 = vcmask 1043456
        %v181 = vsel %vm179, %v169, 0
        %183 = vmatprep.subr.bf16.mxu0 0
        %184 = vmatpush1.bf16.msra.mxu0 0
        %185 = vmatprep.subr.bf16.mxu0 0
        %186 = vmatpush1.bf16.msra.mxu0 0
        %187 = vmatprep.subr.bf16.mxu0 0
        %188 = vmatpush1.bf16.msra.mxu0 0
        %189 = vmatprep.subr.bf16.mxu0 0
        %190 = vmatpush1.bf16.msra.mxu0 0
        %191 = vmatprep.subr.bf16.mxu0 0
        %192 = vmatpush1.bf16.msra.mxu0 0
        %193 = vmatprep.subr.bf16.mxu0 0
        %194 = vmatpush1.bf16.msra.mxu0 %v181
        %195 = vmatprep.subr.bf16.mxu0 0
        %196 = vmatpush1.bf16.msra.mxu0 %v168
        %197 = vmatprep.subr.bf16.mxu0 0
        %198 = vmatpush1.bf16.msra.mxu0 %v167
        %199 = vmatprep.subr.bf16.mxu0 0
        %200 = vmatpush2.bf16.msra.mxu0 0
        %201 = vmatprep.subr.bf16.mxu0 0
        %202 = vmatpush2.bf16.msra.mxu0 0
        %203 = vmatprep.subr.bf16.mxu0 0
        %204 = vmatpush2.bf16.msra.mxu0 0
        %205 = vmatprep.subr.bf16.mxu0 0
        %206 = vmatpush2.bf16.msra.mxu0 0
        %207 = vmatprep.subr.bf16.mxu0 0
        %208 = vmatpush2.bf16.msra.mxu0 0
        %209 = vmatprep.subr.bf16.mxu0 0
        %210 = vmatpush2.bf16.msra.mxu0 0
        %211 = vmatprep.subr.bf16.mxu0 0
        %212 = vmatpush2.bf16.msra.mxu0 0
        %213 = vmatprep.subr.bf16.mxu0 0
        %214 = vmatpush2.bf16.msra.mxu0 0
        %215 = vmatprep.mubr.bf16.mxu0 0
        %216 = vmatmul.mubr.bf16.gmra.mxu0 %v177
        %v217 = vpop.f32.mrf.mxu0
        %v218 = vadd.f32 %v174, %v217
        %v219 = vpop.f32.mrf.mxu0
        %v220 = vpop.f32.mrf.mxu0
        %v221 = vadd.f32 %v174, %v220
        %v222 = vpop.f32.mrf.mxu0
        %223 = vdwg.mxu0
        %v224 = vmax.f32 %v218, 0.0
        %v225 = vmax.f32 %v221, 0.0
        %v226 = vld [vmem:[#allocation2 + $0x60] sm:$0xff]
        %v227 = vld [vmem:[#allocation2 + $0x70] sm:$0xff]
        %v228 = vld [vmem:[#allocation2 + $0x78] sm:$0xff]
        %v229 = vld [vmem:[#allocation2 + $0x80] sm:$0xff]
        %v230 = vld [vmem:[#allocation2 + $0x88] sm:$0xff]
        %v231 = vld [vmem:[#allocation2 + $0x90] sm:$0x1]
        %v232 = vpack.c.bf16 %v226, %v226
        %v233 = vpack.c.bf16 %v228, %v227
        %v234 = vpack.c.bf16 %v230, %v229
        %v235 = vlaneseq
        %v236 = vshrl.u32 %v235, 7
        %v237 = vsub.s32 0, %v236
        %v238 = vrot.slane %v231, %v237
        %vm239 = vcmask 261120
        %v241 = vsel %vm239, %v232, 0
        %243 = vmatprep.subr.bf16.mxu0 0
        %244 = vmatpush1.bf16.msra.mxu0 0
        %245 = vmatprep.subr.bf16.mxu0 0
        %246 = vmatpush1.bf16.msra.mxu0 0
        %247 = vmatprep.subr.bf16.mxu0 0
        %248 = vmatpush1.bf16.msra.mxu0 0
        %249 = vmatprep.subr.bf16.mxu0 0
        %250 = vmatpush1.bf16.msra.mxu0 0
        %251 = vmatprep.subr.bf16.mxu0 0
        %252 = vmatpush1.bf16.msra.mxu0 0
        %253 = vmatprep.subr.bf16.mxu0 0
        %254 = vmatpush1.bf16.msra.mxu0 0
        %255 = vmatprep.subr.bf16.mxu0 0
        %256 = vmatpush1.bf16.msra.mxu0 %v234
        %257 = vmatprep.subr.bf16.mxu0 0
        %258 = vmatpush1.bf16.msra.mxu0 %v233
        %259 = vmatprep.subr.bf16.mxu0 0
        %260 = vmatpush2.bf16.msra.mxu0 0
        %261 = vmatprep.subr.bf16.mxu0 0
        %262 = vmatpush2.bf16.msra.mxu0 0
        %263 = vmatprep.subr.bf16.mxu0 0
        %264 = vmatpush2.bf16.msra.mxu0 0
        %265 = vmatprep.subr.bf16.mxu0 0
        %266 = vmatpush2.bf16.msra.mxu0 0
        %267 = vmatprep.subr.bf16.mxu0 0
        %268 = vmatpush2.bf16.msra.mxu0 0
        %269 = vmatprep.subr.bf16.mxu0 0
        %270 = vmatpush2.bf16.msra.mxu0 0
        %271 = vmatprep.subr.bf16.mxu0 0
        %272 = vmatpush2.bf16.msra.mxu0 0
        %273 = vmatprep.subr.bf16.mxu0 0
        %274 = vmatpush2.bf16.msra.mxu0 0
        %275 = vmatprep.mubr.bf16.mxu0 0
        %276 = vmatmul.mubr.bf16.gmra.mxu0 %v241
        %v277 = vpop.f32.mrf.mxu0
        %v278 = vadd.f32 %v238, %v277
        %v279 = vpop.f32.mrf.mxu0
        %v280 = vpop.f32.mrf.mxu0
        %v281 = vpop.f32.mrf.mxu0
        %282 = vdwg.mxu0
        %v283 = vld [vmem:[#allocation2 + $0x98] sm:$0xff]
        %v284 = vld [vmem:[#allocation2 + $0xa0] sm:$0xff]
        %v285 = vld [vmem:[#allocation2 + $0xa8] sm:$0xff]
        %v286 = vld [vmem:[#allocation2 + $0xb0] sm:$0xff]
        %v287 = vpack.c.bf16 %v278, %v278
        %289 = vrot.lane.b32.xlu0 %v287, 96
        %v290 = vpop.permute.xlu0 %289
        %vm291 = vcmask 64512
        %v293 = vsel %vm291, %v287, 0
        %v296 = vsel %vm291, %v290, 0
        %298 = vmatprep.subr.bf16.mxu0 0
        %299 = vmatpush1.bf16.xpose.msra.mxu0 0
        %300 = vmatprep.subr.bf16.mxu0 0
        %301 = vmatpush1.bf16.xpose.msra.mxu0 0
        %302 = vmatprep.subr.bf16.mxu0 0
        %303 = vmatpush1.bf16.xpose.msra.mxu0 0
        %304 = vmatprep.subr.bf16.mxu0 0
        %305 = vmatpush1.bf16.xpose.msra.mxu0 0
        %306 = vmatprep.subr.bf16.mxu0 0
        %307 = vmatpush1.bf16.xpose.msra.mxu0 0
        %308 = vmatprep.subr.bf16.mxu0 0
        %309 = vmatpush1.bf16.xpose.msra.mxu0 0
        %310 = vmatprep.subr.bf16.mxu0 0
        %311 = vmatpush1.bf16.xpose.msra.mxu0 0
        %312 = vmatprep.subr.bf16.mxu0 0
        %313 = vmatpush1.bf16.xpose.msra.mxu0 %v296
        %314 = vmatprep.subr.bf16.mxu0 0
        %315 = vmatpush2.bf16.xpose.msra.mxu0 0
        %316 = vmatprep.subr.bf16.mxu0 0
        %317 = vmatpush2.bf16.xpose.msra.mxu0 0
        %318 = vmatprep.subr.bf16.mxu0 0
        %319 = vmatpush2.bf16.xpose.msra.mxu0 0
        %320 = vmatprep.subr.bf16.mxu0 0
        %321 = vmatpush2.bf16.xpose.msra.mxu0 0
        %322 = vmatprep.subr.bf16.mxu0 0
        %323 = vmatpush2.bf16.xpose.msra.mxu0 0
        %324 = vmatprep.subr.bf16.mxu0 0
        %325 = vmatpush2.bf16.xpose.msra.mxu0 0
        %326 = vmatprep.subr.bf16.mxu0 0
        %327 = vmatpush2.bf16.xpose.msra.mxu0 0
        %328 = vmatprep.subr.bf16.mxu0 0
        %329 = vmatpush2.bf16.xpose.msra.mxu0 0
        %330 = vmatprep.mubr.bf16.mxu0 0
        %331 = vmatmul.mubr.bf16.gmra.mxu0 %v293
        %v332 = vpop.f32.mrf.mxu0
        %v333 = vadd.f32 0.0, %v332
        %v334 = vpop.f32.mrf.mxu0
        %v335 = vpop.f32.mrf.mxu0
        %v336 = vpop.f32.mrf.mxu0
        %337 = vdwg.mxu0
        %v338 = vmul.f32 %v333, 0.35355338
        %v339 = vsel %vm291, %v338, -inf
        %340 = vmax.xlane.f32.xlu0 %v339
        %v341 = vpop.xlane.xlu0 %340
        %v342 = vsub.f32 %v338, %v341
        %v343 = vmul.f32 %v342, 1.442695
        %v344 = vpow.pop %v343
        %v345 = vsel %vm291, %v344, 0.0
        %346 = vadd.xlane.f32.xlu0 %v345
        %v347 = vpop.xlane.xlu0 %346
        %v348 = vrcp.pop %v347
        %v349 = vmul.f32 %v344, %v348
        %v350 = vpack.c.bf16 %v349, %v349
        %351 = vrot.lane.b32.xlu0 %v287, 64
        %v352 = vpop.permute.xlu0 %351
        %v354 = vsel %vm291, %v350, 0
        %v357 = vsel %vm179, %v352, 0
        %359 = vmatprep.subr.bf16.mxu0 0
        %360 = vmatpush1.bf16.msra.mxu0 0
        %361 = vmatprep.subr.bf16.mxu0 0
        %362 = vmatpush1.bf16.msra.mxu0 0
        %363 = vmatprep.subr.bf16.mxu0 0
        %364 = vmatpush1.bf16.msra.mxu0 0
        %365 = vmatprep.subr.bf16.mxu0 0
        %366 = vmatpush1.bf16.msra.mxu0 0
        %367 = vmatprep.subr.bf16.mxu0 0
        %368 = vmatpush1.bf16.msra.mxu0 0
        %369 = vmatprep.subr.bf16.mxu0 0
        %370 = vmatpush1.bf16.msra.mxu0 0
        %371 = vmatprep.subr.bf16.mxu0 0
        %372 = vmatpush1.bf16.msra.mxu0 0
        %373 = vmatprep.subr.bf16.mxu0 0
        %374 = vmatpush1.bf16.msra.mxu0 %v357
        %375 = vmatprep.subr.bf16.mxu0 0
        %376 = vmatpush2.bf16.msra.mxu0 0
        %377 = vmatprep.subr.bf16.mxu0 0
        %378 = vmatpush2.bf16.msra.mxu0 0
        %379 = vmatprep.subr.bf16.mxu0 0
        %380 = vmatpush2.bf16.msra.mxu0 0
        %381 = vmatprep.subr.bf16.mxu0 0
        %382 = vmatpush2.bf16.msra.mxu0 0
        %383 = vmatprep.subr.bf16.mxu0 0
        %384 = vmatpush2.bf16.msra.mxu0 0
        %385 = vmatprep.subr.bf16.mxu0 0
        %386 = vmatpush2.bf16.msra.mxu0 0
        %387 = vmatprep.subr.bf16.mxu0 0
        %388 = vmatpush2.bf16.msra.mxu0 0
        %389 = vmatprep.subr.bf16.mxu0 0
        %390 = vmatpush2.bf16.msra.mxu0 0
        %391 = vmatprep.mubr.bf16.mxu0 0
        %392 = vmatmul.mubr.bf16.gmra.mxu0 %v354
        %v393 = vpop.f32.mrf.mxu0
        %v394 = vadd.f32 0.0, %v393
        %v395 = vpop.f32.mrf.mxu0
        %v396 = vpop.f32.mrf.mxu0
        %v397 = vpop.f32.mrf.mxu0
        %398 = vdwg.mxu0
        %v399 = vpack.c.bf16 %v394, %v394
        %v400 = vpack.c.bf16 %v283, %v283
        %401 = vrot.lane.b32.xlu0 %v287, 120
        %v402 = vpop.permute.xlu0 %401
        %403 = vrot.lane.b32.xlu0 %v287, 88
        %v404 = vpop.permute.xlu0 %403
        %v406 = vsel %vm291, %v402, 0
        %v409 = vsel %vm291, %v404, 0
        %411 = vmatprep.subr.bf16.mxu0 0
        %412 = vmatpush1.bf16.xpose.msra.mxu0 0
        %413 = vmatprep.subr.bf16.mxu0 0
        %414 = vmatpush1.bf16.xpose.msra.mxu0 0
        %415 = vmatprep.subr.bf16.mxu0 0
        %416 = vmatpush1.bf16.xpose.msra.mxu0 0
        %417 = vmatprep.subr.bf16.mxu0 0
        %418 = vmatpush1.bf16.xpose.msra.mxu0 0
        %419 = vmatprep.subr.bf16.mxu0 0
        %420 = vmatpush1.bf16.xpose.msra.mxu0 0
        %421 = vmatprep.subr.bf16.mxu0 0
        %422 = vmatpush1.bf16.xpose.msra.mxu0 0
        %423 = vmatprep.subr.bf16.mxu0 0
        %424 = vmatpush1.bf16.xpose.msra.mxu0 0
        %425 = vmatprep.subr.bf16.mxu0 0
        %426 = vmatpush1.bf16.xpose.msra.mxu0 %v409
        %427 = vmatprep.subr.bf16.mxu0 0
        %428 = vmatpush2.bf16.xpose.msra.mxu0 0
        %429 = vmatprep.subr.bf16.mxu0 0
        %430 = vmatpush2.bf16.xpose.msra.mxu0 0
        %431 = vmatprep.subr.bf16.mxu0 0
        %432 = vmatpush2.bf16.xpose.msra.mxu0 0
        %433 = vmatprep.subr.bf16.mxu0 0
        %434 = vmatpush2.bf16.xpose.msra.mxu0 0
        %435 = vmatprep.subr.bf16.mxu0 0
        %436 = vmatpush2.bf16.xpose.msra.mxu0 0
        %437 = vmatprep.subr.bf16.mxu0 0
        %438 = vmatpush2.bf16.xpose.msra.mxu0 0
        %439 = vmatprep.subr.bf16.mxu0 0
        %440 = vmatpush2.bf16.xpose.msra.mxu0 0
        %441 = vmatprep.subr.bf16.mxu0 0
        %442 = vmatpush2.bf16.xpose.msra.mxu0 0
        %443 = vmatprep.mubr.bf16.mxu0 0
        %444 = vmatmul.mubr.bf16.gmra.mxu0 %v406
        %v445 = vpop.f32.mrf.mxu0
        %v446 = vadd.f32 0.0, %v445
        %v447 = vpop.f32.mrf.mxu0
        %v448 = vpop.f32.mrf.mxu0
        %v449 = vpop.f32.mrf.mxu0
        %450 = vdwg.mxu0
        %v451 = vmul.f32 %v446, 0.35355338
        %v452 = vsel %vm291, %v451, -inf
        %453 = vmax.xlane.f32.xlu0 %v452
        %v454 = vpop.xlane.xlu0 %453
        %v455 = vsub.f32 %v451, %v454
        %v456 = vmul.f32 %v455, 1.442695
        %v457 = vpow.pop %v456
        %v458 = vsel %vm291, %v457, 0.0
        %459 = vadd.xlane.f32.xlu0 %v458
        %v460 = vpop.xlane.xlu0 %459
        %v461 = vrcp.pop %v460
        %v462 = vmul.f32 %v457, %v461
        %v463 = vpack.c.bf16 %v462, %v462
        %464 = vrot.lane.b32.xlu0 %v287, 56
        %v465 = vpop.permute.xlu0 %464
        %v467 = vsel %vm291, %v463, 0
        %v470 = vsel %vm179, %v465, 0
        %472 = vmatprep.subr.bf16.mxu0 0
        %473 = vmatpush1.bf16.msra.mxu0 0
        %474 = vmatprep.subr.bf16.mxu0 0
        %475 = vmatpush1.bf16.msra.mxu0 0
        %476 = vmatprep.subr.bf16.mxu0 0
        %477 = vmatpush1.bf16.msra.mxu0 0
        %478 = vmatprep.subr.bf16.mxu0 0
        %479 = vmatpush1.bf16.msra.mxu0 0
        %480 = vmatprep.subr.bf16.mxu0 0
        %481 = vmatpush1.bf16.msra.mxu0 0
        %482 = vmatprep.subr.bf16.mxu0 0
        %483 = vmatpush1.bf16.msra.mxu0 0
        %484 = vmatprep.subr.bf16.mxu0 0
        %485 = vmatpush1.bf16.msra.mxu0 0
        %486 = vmatprep.subr.bf16.mxu0 0
        %487 = vmatpush1.bf16.msra.mxu0 %v470
        %488 = vmatprep.subr.bf16.mxu0 0
        %489 = vmatpush2.bf16.msra.mxu0 0
        %490 = vmatprep.subr.bf16.mxu0 0
        %491 = vmatpush2.bf16.msra.mxu0 0
        %492 = vmatprep.subr.bf16.mxu0 0
        %493 = vmatpush2.bf16.msra.mxu0 0
        %494 = vmatprep.subr.bf16.mxu0 0
        %495 = vmatpush2.bf16.msra.mxu0 0
        %496 = vmatprep.subr.bf16.mxu0 0
        %497 = vmatpush2.bf16.msra.mxu0 0
        %498 = vmatprep.subr.bf16.mxu0 0
        %499 = vmatpush2.bf16.msra.mxu0 0
        %500 = vmatprep.subr.bf16.mxu0 0
        %501 = vmatpush2.bf16.msra.mxu0 0
        %502 = vmatprep.subr.bf16.mxu0 0
        %503 = vmatpush2.bf16.msra.mxu0 0
        %504 = vmatprep.mubr.bf16.mxu0 0
        %505 = vmatmul.mubr.bf16.gmra.mxu0 %v467
        %v506 = vpop.f32.mrf.mxu0
        %v507 = vadd.f32 0.0, %v506
        %v508 = vpop.f32.mrf.mxu0
        %v509 = vpop.f32.mrf.mxu0
        %v510 = vpop.f32.mrf.mxu0
        %511 = vdwg.mxu0
        %v512 = vpack.c.bf16 %v507, %v507
        %v513 = vpack.c.bf16 %v284, %v284
        %v515 = vsel %vm291, %v512, 0
        %v518 = vsel %vm179, %v513, 0
        %520 = vmatprep.subr.bf16.mxu0 0
        %521 = vmatpush1.bf16.msra.mxu0 0
        %522 = vmatprep.subr.bf16.mxu0 0
        %523 = vmatpush1.bf16.msra.mxu0 0
        %524 = vmatprep.subr.bf16.mxu0 0
        %525 = vmatpush1.bf16.msra.mxu0 0
        %526 = vmatprep.subr.bf16.mxu0 0
        %527 = vmatpush1.bf16.msra.mxu0 0
        %528 = vmatprep.subr.bf16.mxu0 0
        %529 = vmatpush1.bf16.msra.mxu0 0
        %530 = vmatprep.subr.bf16.mxu0 0
        %531 = vmatpush1.bf16.msra.mxu0 0
        %532 = vmatprep.subr.bf16.mxu0 0
        %533 = vmatpush1.bf16.msra.mxu0 0
        %534 = vmatprep.subr.bf16.mxu0 0
        %535 = vmatpush1.bf16.msra.mxu0 %v518
        %536 = vmatprep.subr.bf16.mxu0 0
        %537 = vmatpush2.bf16.msra.mxu0 0
        %538 = vmatprep.subr.bf16.mxu0 0
        %539 = vmatpush2.bf16.msra.mxu0 0
        %540 = vmatprep.subr.bf16.mxu0 0
        %541 = vmatpush2.bf16.msra.mxu0 0
        %542 = vmatprep.subr.bf16.mxu0 0
        %543 = vmatpush2.bf16.msra.mxu0 0
        %544 = vmatprep.subr.bf16.mxu0 0
        %545 = vmatpush2.bf16.msra.mxu0 0
        %546 = vmatprep.subr.bf16.mxu0 0
        %547 = vmatpush2.bf16.msra.mxu0 0
        %548 = vmatprep.subr.bf16.mxu0 0
        %549 = vmatpush2.bf16.msra.mxu0 0
        %550 = vmatprep.subr.bf16.mxu0 0
        %551 = vmatpush2.bf16.msra.mxu0 0
        %552 = vmatprep.mubr.bf16.mxu0 0
        %553 = vmatmul.mubr.bf16.gmra.mxu0 %v515
        %v554 = vpop.f32.mrf.mxu0
        %v555 = vadd.f32 0.0, %v554
        %v556 = vpop.f32.mrf.mxu0
        %v557 = vpop.f32.mrf.mxu0
        %v558 = vpop.f32.mrf.mxu0
        %559 = vdwg.mxu0
        %v561 = vsel %vm291, %v399, 0
        %v564 = vsel %vm179, %v400, 0
        %566 = vmatprep.subr.bf16.mxu0 0
        %567 = vmatpush1.bf16.msra.mxu0 0
        %568 = vmatprep.subr.bf16.mxu0 0
        %569 = vmatpush1.bf16.msra.mxu0 0
        %570 = vmatprep.subr.bf16.mxu0 0
        %571 = vmatpush1.bf16.msra.mxu0 0
        %572 = vmatprep.subr.bf16.mxu0 0
        %573 = vmatpush1.bf16.msra.mxu0 0
        %574 = vmatprep.subr.bf16.mxu0 0
        %575 = vmatpush1.bf16.msra.mxu0 0
        %576 = vmatprep.subr.bf16.mxu0 0
        %577 = vmatpush1.bf16.msra.mxu0 0
        %578 = vmatprep.subr.bf16.mxu0 0
        %579 = vmatpush1.bf16.msra.mxu0 0
        %580 = vmatprep.subr.bf16.mxu0 0
        %581 = vmatpush1.bf16.msra.mxu0 %v564
        %582 = vmatprep.subr.bf16.mxu0 0
        %583 = vmatpush2.bf16.msra.mxu0 0
        %584 = vmatprep.subr.bf16.mxu0 0
        %585 = vmatpush2.bf16.msra.mxu0 0
        %586 = vmatprep.subr.bf16.mxu0 0
        %587 = vmatpush2.bf16.msra.mxu0 0
        %588 = vmatprep.subr.bf16.mxu0 0
        %589 = vmatpush2.bf16.msra.mxu0 0
        %590 = vmatprep.subr.bf16.mxu0 0
        %591 = vmatpush2.bf16.msra.mxu0 0
        %592 = vmatprep.subr.bf16.mxu0 0
        %593 = vmatpush2.bf16.msra.mxu0 0
        %594 = vmatprep.subr.bf16.mxu0 0
        %595 = vmatpush2.bf16.msra.mxu0 0
        %596 = vmatprep.subr.bf16.mxu0 0
        %597 = vmatpush2.bf16.msra.mxu0 0
        %598 = vmatprep.mubr.bf16.mxu0 0
        %599 = vmatmul.mubr.bf16.gmra.mxu0 %v561
        %v600 = vpop.f32.mrf.mxu0
        %v601 = vadd.f32 %v555, %v600
        %v602 = vpop.f32.mrf.mxu0
        %v603 = vpop.f32.mrf.mxu0
        %v604 = vpop.f32.mrf.mxu0
        %605 = vdwg.mxu0
        %606 = vrot.lane.b32.xlu0 %v287, 112
        %v607 = vpop.permute.xlu0 %606
        %608 = vrot.lane.b32.xlu0 %v287, 80
        %v609 = vpop.permute.xlu0 %608
        %v611 = vsel %vm291, %v607, 0
        %v614 = vsel %vm291, %v609, 0
        %616 = vmatprep.subr.bf16.mxu0 0
        %617 = vmatpush1.bf16.xpose.msra.mxu0 0
        %618 = vmatprep.subr.bf16.mxu0 0
        %619 = vmatpush1.bf16.xpose.msra.mxu0 0
        %620 = vmatprep.subr.bf16.mxu0 0
        %621 = vmatpush1.bf16.xpose.msra.mxu0 0
        %622 = vmatprep.subr.bf16.mxu0 0
        %623 = vmatpush1.bf16.xpose.msra.mxu0 0
        %624 = vmatprep.subr.bf16.mxu0 0
        %625 = vmatpush1.bf16.xpose.msra.mxu0 0
        %626 = vmatprep.subr.bf16.mxu0 0
        %627 = vmatpush1.bf16.xpose.msra.mxu0 0
        %628 = vmatprep.subr.bf16.mxu0 0
        %629 = vmatpush1.bf16.xpose.msra.mxu0 0
        %630 = vmatprep.subr.bf16.mxu0 0
        %631 = vmatpush1.bf16.xpose.msra.mxu0 %v614
        %632 = vmatprep.subr.bf16.mxu0 0
        %633 = vmatpush2.bf16.xpose.msra.mxu0 0
        %634 = vmatprep.subr.bf16.mxu0 0
        %635 = vmatpush2.bf16.xpose.msra.mxu0 0
        %636 = vmatprep.subr.bf16.mxu0 0
        %637 = vmatpush2.bf16.xpose.msra.mxu0 0
        %638 = vmatprep.subr.bf16.mxu0 0
        %639 = vmatpush2.bf16.xpose.msra.mxu0 0
        %640 = vmatprep.subr.bf16.mxu0 0
        %641 = vmatpush2.bf16.xpose.msra.mxu0 0
        %642 = vmatprep.subr.bf16.mxu0 0
        %643 = vmatpush2.bf16.xpose.msra.mxu0 0
        %644 = vmatprep.subr.bf16.mxu0 0
        %645 = vmatpush2.bf16.xpose.msra.mxu0 0
        %646 = vmatprep.subr.bf16.mxu0 0
        %647 = vmatpush2.bf16.xpose.msra.mxu0 0
        %648 = vmatprep.mubr.bf16.mxu0 0
        %649 = vmatmul.mubr.bf16.gmra.mxu0 %v611
        %v650 = vpop.f32.mrf.mxu0
        %v651 = vadd.f32 0.0, %v650
        %v652 = vpop.f32.mrf.mxu0
        %v653 = vpop.f32.mrf.mxu0
        %v654 = vpop.f32.mrf.mxu0
        %655 = vdwg.mxu0
        %v656 = vmul.f32 %v651, 0.35355338
        %v657 = vsel %vm291, %v656, -inf
        %658 = vmax.xlane.f32.xlu0 %v657
        %v659 = vpop.xlane.xlu0 %658
        %v660 = vsub.f32 %v656, %v659
        %v661 = vmul.f32 %v660, 1.442695
        %v662 = vpow.pop %v661
        %v663 = vsel %vm291, %v662, 0.0
        %664 = vadd.xlane.f32.xlu0 %v663
        %v665 = vpop.xlane.xlu0 %664
        %v666 = vrcp.pop %v665
        %v667 = vmul.f32 %v662, %v666
        %v668 = vpack.c.bf16 %v667, %v667
        %669 = vrot.lane.b32.xlu0 %v287, 48
        %v670 = vpop.permute.xlu0 %669
        %v672 = vsel %vm291, %v668, 0
        %v675 = vsel %vm179, %v670, 0
        %677 = vmatprep.subr.bf16.mxu0 0
        %678 = vmatpush1.bf16.msra.mxu0 0
        %679 = vmatprep.subr.bf16.mxu0 0
        %680 = vmatpush1.bf16.msra.mxu0 0
        %681 = vmatprep.subr.bf16.mxu0 0
        %682 = vmatpush1.bf16.msra.mxu0 0
        %683 = vmatprep.subr.bf16.mxu0 0
        %684 = vmatpush1.bf16.msra.mxu0 0
        %685 = vmatprep.subr.bf16.mxu0 0
        %686 = vmatpush1.bf16.msra.mxu0 0
        %687 = vmatprep.subr.bf16.mxu0 0
        %688 = vmatpush1.bf16.msra.mxu0 0
        %689 = vmatprep.subr.bf16.mxu0 0
        %690 = vmatpush1.bf16.msra.mxu0 0
        %691 = vmatprep.subr.bf16.mxu0 0
        %692 = vmatpush1.bf16.msra.mxu0 %v675
        %693 = vmatprep.subr.bf16.mxu0 0
        %694 = vmatpush2.bf16.msra.mxu0 0
        %695 = vmatprep.subr.bf16.mxu0 0
        %696 = vmatpush2.bf16.msra.mxu0 0
        %697 = vmatprep.subr.bf16.mxu0 0
        %698 = vmatpush2.bf16.msra.mxu0 0
        %699 = vmatprep.subr.bf16.mxu0 0
        %700 = vmatpush2.bf16.msra.mxu0 0
        %701 = vmatprep.subr.bf16.mxu0 0
        %702 = vmatpush2.bf16.msra.mxu0 0
        %703 = vmatprep.subr.bf16.mxu0 0
        %704 = vmatpush2.bf16.msra.mxu0 0
        %705 = vmatprep.subr.bf16.mxu0 0
        %706 = vmatpush2.bf16.msra.mxu0 0
        %707 = vmatprep.subr.bf16.mxu0 0
        %708 = vmatpush2.bf16.msra.mxu0 0
        %709 = vmatprep.mubr.bf16.mxu0 0
        %710 = vmatmul.mubr.bf16.gmra.mxu0 %v672
        %v711 = vpop.f32.mrf.mxu0
        %v712 = vadd.f32 0.0, %v711
        %v713 = vpop.f32.mrf.mxu0
        %v714 = vpop.f32.mrf.mxu0
        %v715 = vpop.f32.mrf.mxu0
        %716 = vdwg.mxu0
        %v717 = vpack.c.bf16 %v712, %v712
        %v718 = vpack.c.bf16 %v285, %v285
        %v720 = vsel %vm291, %v717, 0
        %v723 = vsel %vm179, %v718, 0
        %725 = vmatprep.subr.bf16.mxu0 0
        %726 = vmatpush1.bf16.msra.mxu0 0
        %727 = vmatprep.subr.bf16.mxu0 0
        %728 = vmatpush1.bf16.msra.mxu0 0
        %729 = vmatprep.subr.bf16.mxu0 0
        %730 = vmatpush1.bf16.msra.mxu0 0
        %731 = vmatprep.subr.bf16.mxu0 0
        %732 = vmatpush1.bf16.msra.mxu0 0
        %733 = vmatprep.subr.bf16.mxu0 0
        %734 = vmatpush1.bf16.msra.mxu0 0
        %735 = vmatprep.subr.bf16.mxu0 0
        %736 = vmatpush1.bf16.msra.mxu0 0
        %737 = vmatprep.subr.bf16.mxu0 0
        %738 = vmatpush1.bf16.msra.mxu0 0
        %739 = vmatprep.subr.bf16.mxu0 0
        %740 = vmatpush1.bf16.msra.mxu0 %v723
        %741 = vmatprep.subr.bf16.mxu0 0
        %742 = vmatpush2.bf16.msra.mxu0 0
        %743 = vmatprep.subr.bf16.mxu0 0
        %744 = vmatpush2.bf16.msra.mxu0 0
        %745 = vmatprep.subr.bf16.mxu0 0
        %746 = vmatpush2.bf16.msra.mxu0 0
        %747 = vmatprep.subr.bf16.mxu0 0
        %748 = vmatpush2.bf16.msra.mxu0 0
        %749 = vmatprep.subr.bf16.mxu0 0
        %750 = vmatpush2.bf16.msra.mxu0 0
        %751 = vmatprep.subr.bf16.mxu0 0
        %752 = vmatpush2.bf16.msra.mxu0 0
        %753 = vmatprep.subr.bf16.mxu0 0
        %754 = vmatpush2.bf16.msra.mxu0 0
        %755 = vmatprep.subr.bf16.mxu0 0
        %756 = vmatpush2.bf16.msra.mxu0 0
        %757 = vmatprep.mubr.bf16.mxu0 0
        %758 = vmatmul.mubr.bf16.gmra.mxu0 %v720
        %v759 = vpop.f32.mrf.mxu0
        %v760 = vadd.f32 0.0, %v759
        %v761 = vpop.f32.mrf.mxu0
        %v762 = vpop.f32.mrf.mxu0
        %v763 = vpop.f32.mrf.mxu0
        %764 = vdwg.mxu0
        %v765 = vadd.f32 %v601, %v760
        %766 = vrot.lane.b32.xlu0 %v287, 104
        %v767 = vpop.permute.xlu0 %766
        %768 = vrot.lane.b32.xlu0 %v287, 72
        %v769 = vpop.permute.xlu0 %768
        %v771 = vsel %vm291, %v767, 0
        %v774 = vsel %vm291, %v769, 0
        %776 = vmatprep.subr.bf16.mxu0 0
        %777 = vmatpush1.bf16.xpose.msra.mxu0 0
        %778 = vmatprep.subr.bf16.mxu0 0
        %779 = vmatpush1.bf16.xpose.msra.mxu0 0
        %780 = vmatprep.subr.bf16.mxu0 0
        %781 = vmatpush1.bf16.xpose.msra.mxu0 0
        %782 = vmatprep.subr.bf16.mxu0 0
        %783 = vmatpush1.bf16.xpose.msra.mxu0 0
        %784 = vmatprep.subr.bf16.mxu0 0
        %785 = vmatpush1.bf16.xpose.msra.mxu0 0
        %786 = vmatprep.subr.bf16.mxu0 0
        %787 = vmatpush1.bf16.xpose.msra.mxu0 0
        %788 = vmatprep.subr.bf16.mxu0 0
        %789 = vmatpush1.bf16.xpose.msra.mxu0 0
        %790 = vmatprep.subr.bf16.mxu0 0
        %791 = vmatpush1.bf16.xpose.msra.mxu0 %v774
        %792 = vmatprep.subr.bf16.mxu0 0
        %793 = vmatpush2.bf16.xpose.msra.mxu0 0
        %794 = vmatprep.subr.bf16.mxu0 0
        %795 = vmatpush2.bf16.xpose.msra.mxu0 0
        %796 = vmatprep.subr.bf16.mxu0 0
        %797 = vmatpush2.bf16.xpose.msra.mxu0 0
        %798 = vmatprep.subr.bf16.mxu0 0
        %799 = vmatpush2.bf16.xpose.msra.mxu0 0
        %800 = vmatprep.subr.bf16.mxu0 0
        %801 = vmatpush2.bf16.xpose.msra.mxu0 0
        %802 = vmatprep.subr.bf16.mxu0 0
        %803 = vmatpush2.bf16.xpose.msra.mxu0 0
        %804 = vmatprep.subr.bf16.mxu0 0
        %805 = vmatpush2.bf16.xpose.msra.mxu0 0
        %806 = vmatprep.subr.bf16.mxu0 0
        %807 = vmatpush2.bf16.xpose.msra.mxu0 0
        %808 = vmatprep.mubr.bf16.mxu0 0
        %809 = vmatmul.mubr.bf16.gmra.mxu0 %v771
        %v810 = vpop.f32.mrf.mxu0
        %v811 = vadd.f32 0.0, %v810
        %v812 = vpop.f32.mrf.mxu0
        %v813 = vpop.f32.mrf.mxu0
        %v814 = vpop.f32.mrf.mxu0
        %815 = vdwg.mxu0
        %v816 = vmul.f32 %v811, 0.35355338
        %v817 = vsel %vm291, %v816, -inf
        %818 = vmax.xlane.f32.xlu0 %v817
        %v819 = vpop.xlane.xlu0 %818
        %v820 = vsub.f32 %v816, %v819
        %v821 = vmul.f32 %v820, 1.442695
        %v822 = vpow.pop %v821
        %v823 = vsel %vm291, %v822, 0.0
        %824 = vadd.xlane.f32.xlu0 %v823
        %v825 = vpop.xlane.xlu0 %824
        %v826 = vrcp.pop %v825
        %v827 = vmul.f32 %v822, %v826
        %v828 = vpack.c.bf16 %v827, %v827
        %829 = vrot.lane.b32.xlu0 %v287, 40
        %v830 = vpop.permute.xlu0 %829
        %v832 = vsel %vm291, %v828, 0
        %v835 = vsel %vm179, %v830, 0
        %837 = vmatprep.subr.bf16.mxu0 0
        %838 = vmatpush1.bf16.msra.mxu0 0
        %839 = vmatprep.subr.bf16.mxu0 0
        %840 = vmatpush1.bf16.msra.mxu0 0
        %841 = vmatprep.subr.bf16.mxu0 0
        %842 = vmatpush1.bf16.msra.mxu0 0
        %843 = vmatprep.subr.bf16.mxu0 0
        %844 = vmatpush1.bf16.msra.mxu0 0
        %845 = vmatprep.subr.bf16.mxu0 0
        %846 = vmatpush1.bf16.msra.mxu0 0
        %847 = vmatprep.subr.bf16.mxu0 0
        %848 = vmatpush1.bf16.msra.mxu0 0
        %849 = vmatprep.subr.bf16.mxu0 0
        %850 = vmatpush1.bf16.msra.mxu0 0
        %851 = vmatprep.subr.bf16.mxu0 0
        %852 = vmatpush1.bf16.msra.mxu0 %v835
        %853 = vmatprep.subr.bf16.mxu0 0
        %854 = vmatpush2.bf16.msra.mxu0 0
        %855 = vmatprep.subr.bf16.mxu0 0
        %856 = vmatpush2.bf16.msra.mxu0 0
        %857 = vmatprep.subr.bf16.mxu0 0
        %858 = vmatpush2.bf16.msra.mxu0 0
        %859 = vmatprep.subr.bf16.mxu0 0
        %860 = vmatpush2.bf16.msra.mxu0 0
        %861 = vmatprep.subr.bf16.mxu0 0
        %862 = vmatpush2.bf16.msra.mxu0 0
        %863 = vmatprep.subr.bf16.mxu0 0
        %864 = vmatpush2.bf16.msra.mxu0 0
        %865 = vmatprep.subr.bf16.mxu0 0
        %866 = vmatpush2.bf16.msra.mxu0 0
        %867 = vmatprep.subr.bf16.mxu0 0
        %868 = vmatpush2.bf16.msra.mxu0 0
        %869 = vmatprep.mubr.bf16.mxu0 0
        %870 = vmatmul.mubr.bf16.gmra.mxu0 %v832
        %v871 = vpop.f32.mrf.mxu0
        %v872 = vadd.f32 0.0, %v871
        %v873 = vpop.f32.mrf.mxu0
        %v874 = vpop.f32.mrf.mxu0
        %v875 = vpop.f32.mrf.mxu0
        %876 = vdwg.mxu0
        %v877 = vpack.c.bf16 %v872, %v872
        %v878 = vpack.c.bf16 %v286, %v286
        %v880 = vsel %vm291, %v877, 0
        %v883 = vsel %vm179, %v878, 0
        %885 = vmatprep.subr.bf16.mxu0 0
        %886 = vmatpush1.bf16.msra.mxu0 0
        %887 = vmatprep.subr.bf16.mxu0 0
        %888 = vmatpush1.bf16.msra.mxu0 0
        %889 = vmatprep.subr.bf16.mxu0 0
        %890 = vmatpush1.bf16.msra.mxu0 0
        %891 = vmatprep.subr.bf16.mxu0 0
        %892 = vmatpush1.bf16.msra.mxu0 0
        %893 = vmatprep.subr.bf16.mxu0 0
        %894 = vmatpush1.bf16.msra.mxu0 0
        %895 = vmatprep.subr.bf16.mxu0 0
        %896 = vmatpush1.bf16.msra.mxu0 0
        %897 = vmatprep.subr.bf16.mxu0 0
        %898 = vmatpush1.bf16.msra.mxu0 0
        %899 = vmatprep.subr.bf16.mxu0 0
        %900 = vmatpush1.bf16.msra.mxu0 %v883
        %901 = vmatprep.subr.bf16.mxu0 0
        %902 = vmatpush2.bf16.msra.mxu0 0
        %903 = vmatprep.subr.bf16.mxu0 0
        %904 = vmatpush2.bf16.msra.mxu0 0
        %905 = vmatprep.subr.bf16.mxu0 0
        %906 = vmatpush2.bf16.msra.mxu0 0
        %907 = vmatprep.subr.bf16.mxu0 0
        %908 = vmatpush2.bf16.msra.mxu0 0
        %909 = vmatprep.subr.bf16.mxu0 0
        %910 = vmatpush2.bf16.msra.mxu0 0
        %911 = vmatprep.subr.bf16.mxu0 0
        %912 = vmatpush2.bf16.msra.mxu0 0
        %913 = vmatprep.subr.bf16.mxu0 0
        %914 = vmatpush2.bf16.msra.mxu0 0
        %915 = vmatprep.subr.bf16.mxu0 0
        %916 = vmatpush2.bf16.msra.mxu0 0
        %917 = vmatprep.mubr.bf16.mxu0 0
        %918 = vmatmul.mubr.bf16.gmra.mxu0 %v880
        %v919 = vpop.f32.mrf.mxu0
        %v920 = vadd.f32 0.0, %v919
        %v921 = vpop.f32.mrf.mxu0
        %v922 = vpop.f32.mrf.mxu0
        %v923 = vpop.f32.mrf.mxu0
        %924 = vdwg.mxu0
        %v925 = vadd.f32 %v765, %v920
        %v926 = vld [vmem:[#allocation2 + $0xb8] sm:$0x1]
        %v927 = vlaneseq
        %v928 = vshrl.u32 %v927, 7
        %v929 = vsub.s32 0, %v928
        %v930 = vrot.slane %v926, %v929
        %v931 = vadd.f32 %v925, %v930
        %v932 = vadd.f32 %v226, %v931
        %v933 = vsel %vm239, %v932, 0.0
        %934 = vadd.xlane.f32.xlu0 %v933
        %v935 = vpop.xlane.xlu0 %934
        %v936 = vrcp.pop 32.0
        %v937 = vmul.f32 %v935, %v936
        %v938 = vsub.f32 %v932, %v937
        %v939 = vmul.f32 %v938, %v938
        %v940 = vsel %vm239, %v939, 0.0
        %941 = vadd.xlane.f32.xlu0 %v940
        %v942 = vpop.xlane.xlu0 %941
        %v943 = vmul.f32 %v942, %v936
        %v944 = vadd.f32 %v943, 1e-05
        %v945 = vrsqrt.pop %v944
        %v946 = vmul.f32 %v938, %v945
        %v947 = vld [vmem:[#allocation2 + $0x110] sm:$0x1]
        %v948 = vlaneseq
        %v949 = vshrl.u32 %v948, 7
        %v950 = vsub.s32 0, %v949
        %v951 = vrot.slane %v947, %v950
        %v952 = vmul.f32 %v946, %v951
        %v953 = vld [vmem:[#allocation2 + $0x118] sm:$0x1]
        %v954 = vlaneseq
        %v955 = vshrl.u32 %v954, 7
        %v956 = vsub.s32 0, %v955
        %v957 = vrot.slane %v953, %v956
        %v958 = vadd.f32 %v952, %v957
        %v959 = vld [vmem:[#allocation2 + $0xc0] sm:$0xff]
        %v960 = vld [vmem:[#allocation2 + $0xc8] sm:$0xff]
        %v961 = vld [vmem:[#allocation2 + $0xd0] sm:$0xff]
        %v962 = vld [vmem:[#allocation2 + $0xd8] sm:$0xff]
        %v963 = vld [vmem:[#allocation2 + $0xe0] sm:$0x1]
        %v964 = vpack.c.bf16 %v958, %v958
        %v965 = vpack.c.bf16 %v960, %v959
        %v966 = vpack.c.bf16 %v962, %v961
        %v967 = vlaneseq
        %v968 = vshrl.u32 %v967, 7
        %v969 = vsub.s32 0, %v968
        %v970 = vrot.slane %v963, %v969
        %v972 = vsel %vm239, %v964, 0
        %974 = vmatprep.subr.bf16.mxu0 0
        %975 = vmatpush1.bf16.msra.mxu0 0
        %976 = vmatprep.subr.bf16.mxu0 0
        %977 = vmatpush1.bf16.msra.mxu0 0
        %978 = vmatprep.subr.bf16.mxu0 0
        %979 = vmatpush1.bf16.msra.mxu0 0
        %980 = vmatprep.subr.bf16.mxu0 0
        %981 = vmatpush1.bf16.msra.mxu0 0
        %982 = vmatprep.subr.bf16.mxu0 0
        %983 = vmatpush1.bf16.msra.mxu0 0
        %984 = vmatprep.subr.bf16.mxu0 0
        %985 = vmatpush1.bf16.msra.mxu0 0
        %986 = vmatprep.subr.bf16.mxu0 0
        %987 = vmatpush1.bf16.msra.mxu0 %v966
        %988 = vmatprep.subr.bf16.mxu0 0
        %989 = vmatpush1.bf16.msra.mxu0 %v965
        %990 = vmatprep.subr.bf16.mxu0 0
        %991 = vmatpush2.bf16.msra.mxu0 0
        %992 = vmatprep.subr.bf16.mxu0 0
        %993 = vmatpush2.bf16.msra.mxu0 0
        %994 = vmatprep.subr.bf16.mxu0 0
        %995 = vmatpush2.bf16.msra.mxu0 0
        %996 = vmatprep.subr.bf16.mxu0 0
        %997 = vmatpush2.bf16.msra.mxu0 0
        %998 = vmatprep.subr.bf16.mxu0 0
        %999 = vmatpush2.bf16.msra.mxu0 0
        %1000 = vmatprep.subr.bf16.mxu0 0
        %1001 = vmatpush2.bf16.msra.mxu0 0
        %1002 = vmatprep.subr.bf16.mxu0 0
        %1003 = vmatpush2.bf16.msra.mxu0 0
        %1004 = vmatprep.subr.bf16.mxu0 0
        %1005 = vmatpush2.bf16.msra.mxu0 0
        %1006 = vmatprep.mubr.bf16.mxu0 0
        %1007 = vmatmul.mubr.bf16.gmra.mxu0 %v972
        %v1008 = vpop.f32.mrf.mxu0
        %v1009 = vadd.f32 %v970, %v1008
        %v1010 = vpop.f32.mrf.mxu0
        %v1011 = vpop.f32.mrf.mxu0
        %v1012 = vpop.f32.mrf.mxu0
        %1013 = vdwg.mxu0
        %v1014 = vpack.c.bf16 %v225, %v224
        %1017 = vrot.lane.b32.xlu0 %v965, 96
        %v1018 = vpop.permute.xlu0 %1017
        %1019 = vrot.lane.b32.xlu0 %v966, 96
        %v1020 = vpop.permute.xlu0 %1019
        %1024 = vrot.lane.b32.xlu0 %v970, 96
        %v1025 = vpop.permute.xlu0 %1024
        %v1028 = vsel %vm239, %v1014, 0
        %1030 = vmatprep.subr.bf16.mxu0 0
        %1031 = vmatpush1.bf16.msra.mxu0 0
        %1032 = vmatprep.subr.bf16.mxu0 0
        %1033 = vmatpush1.bf16.msra.mxu0 0
        %1034 = vmatprep.subr.bf16.mxu0 0
        %1035 = vmatpush1.bf16.msra.mxu0 0
        %1036 = vmatprep.subr.bf16.mxu0 0
        %1037 = vmatpush1.bf16.msra.mxu0 0
        %1038 = vmatprep.subr.bf16.mxu0 0
        %1039 = vmatpush1.bf16.msra.mxu0 0
        %1040 = vmatprep.subr.bf16.mxu0 0
        %1041 = vmatpush1.bf16.msra.mxu0 0
        %1042 = vmatprep.subr.bf16.mxu0 0
        %1043 = vmatpush1.bf16.msra.mxu0 %v1020
        %1044 = vmatprep.subr.bf16.mxu0 0
        %1045 = vmatpush1.bf16.msra.mxu0 %v1018
        %1046 = vmatprep.subr.bf16.mxu0 0
        %1047 = vmatpush2.bf16.msra.mxu0 0
        %1048 = vmatprep.subr.bf16.mxu0 0
        %1049 = vmatpush2.bf16.msra.mxu0 0
        %1050 = vmatprep.subr.bf16.mxu0 0
        %1051 = vmatpush2.bf16.msra.mxu0 0
        %1052 = vmatprep.subr.bf16.mxu0 0
        %1053 = vmatpush2.bf16.msra.mxu0 0
        %1054 = vmatprep.subr.bf16.mxu0 0
        %1055 = vmatpush2.bf16.msra.mxu0 0
        %1056 = vmatprep.subr.bf16.mxu0 0
        %1057 = vmatpush2.bf16.msra.mxu0 0
        %1058 = vmatprep.subr.bf16.mxu0 0
        %1059 = vmatpush2.bf16.msra.mxu0 0
        %1060 = vmatprep.subr.bf16.mxu0 0
        %1061 = vmatpush2.bf16.msra.mxu0 0
        %1062 = vmatprep.mubr.bf16.mxu0 0
        %1063 = vmatmul.mubr.bf16.gmra.mxu0 %v1028
        %v1064 = vpop.f32.mrf.mxu0
        %v1065 = vadd.f32 %v1025, %v1064
        %v1066 = vpop.f32.mrf.mxu0
        %v1067 = vpop.f32.mrf.mxu0
        %v1068 = vadd.f32 %v1025, %v1067
        %v1069 = vpop.f32.mrf.mxu0
        %1070 = vdwg.mxu0
        %v1071 = vld [vmem:[#allocation2 + $0xe8] sm:$0xff]
        %v1072 = vld [vmem:[#allocation2 + $0xf0] sm:$0xff]
        %v1073 = vld [vmem:[#allocation2 + $0xf8] sm:$0xff]
        %v1074 = vld [vmem:[#allocation2 + $0x100] sm:$0xff]
        %v1075 = vpack.c.bf16 %v1009, %v1009
        %v1076 = vpack.c.bf16 %v1068, %v1065
        %v1078 = vsel %vm291, %v1075, 0
        %v1081 = vsel %vm291, %v1076, 0
        %1083 = vmatprep.subr.bf16.mxu0 0
        %1084 = vmatpush1.bf16.xpose.msra.mxu0 0
        %1085 = vmatprep.subr.bf16.mxu0 0
        %1086 = vmatpush1.bf16.xpose.msra.mxu0 0
        %1087 = vmatprep.subr.bf16.mxu0 0
        %1088 = vmatpush1.bf16.xpose.msra.mxu0 0
        %1089 = vmatprep.subr.bf16.mxu0 0
        %1090 = vmatpush1.bf16.xpose.msra.mxu0 0
        %1091 = vmatprep.subr.bf16.mxu0 0
        %1092 = vmatpush1.bf16.xpose.msra.mxu0 0
        %1093 = vmatprep.subr.bf16.mxu0 0
        %1094 = vmatpush1.bf16.xpose.msra.mxu0 0
        %1095 = vmatprep.subr.bf16.mxu0 0
        %1096 = vmatpush1.bf16.xpose.msra.mxu0 0
        %1097 = vmatprep.subr.bf16.mxu0 0
        %1098 = vmatpush1.bf16.xpose.msra.mxu0 %v1081
        %1099 = vmatprep.subr.bf16.mxu0 0
        %1100 = vmatpush2.bf16.xpose.msra.mxu0 0
        %1101 = vmatprep.subr.bf16.mxu0 0
        %1102 = vmatpush2.bf16.xpose.msra.mxu0 0
        %1103 = vmatprep.subr.bf16.mxu0 0
        %1104 = vmatpush2.bf16.xpose.msra.mxu0 0
        %1105 = vmatprep.subr.bf16.mxu0 0
        %1106 = vmatpush2.bf16.xpose.msra.mxu0 0
        %1107 = vmatprep.subr.bf16.mxu0 0
        %1108 = vmatpush2.bf16.xpose.msra.mxu0 0
        %1109 = vmatprep.subr.bf16.mxu0 0
        %1110 = vmatpush2.bf16.xpose.msra.mxu0 0
        %1111 = vmatprep.subr.bf16.mxu0 0
        %1112 = vmatpush2.bf16.xpose.msra.mxu0 0
        %1113 = vmatprep.subr.bf16.mxu0 0
        %1114 = vmatpush2.bf16.xpose.msra.mxu0 0
        %1115 = vmatprep.mubr.bf16.mxu0 0
        %1116 = vmatmul.mubr.bf16.gmra.mxu0 %v1078
        %v1117 = vpop.f32.mrf.mxu0
        %v1118 = vadd.f32 0.0, %v1117
        %v1119 = vpop.f32.mrf.mxu0
        %v1120 = vpop.f32.mrf.mxu0
        %v1121 = vpop.f32.mrf.mxu0
        %1122 = vdwg.mxu0
        %v1123 = vmul.f32 %v1118, 0.35355338
        %vm1124 = vcmask 130048
        %v1125 = vsel %vm1124, %v1123, -inf
        %1126 = vmax.xlane.f32.xlu0 %v1125
        %v1127 = vpop.xlane.xlu0 %1126
        %v1128 = vsub.f32 %v1123, %v1127
        %v1129 = vmul.f32 %v1128, 1.442695
        %v1130 = vpow.pop %v1129
        %v1131 = vsel %vm1124, %v1130, 0.0
        %1132 = vadd.xlane.f32.xlu0 %v1131
        %v1133 = vpop.xlane.xlu0 %1132
        %v1134 = vrcp.pop %v1133
        %v1135 = vmul.f32 %v1130, %v1134
        %v1136 = vpack.c.bf16 %v1135, %v1135
        %1138 = vrot.lane.b32.xlu0 %v1076, 96
        %v1139 = vpop.permute.xlu0 %1138
        %v1142 = vsel %vm1124, %v1136, 0
        %1144 = vmatprep.subr.bf16.mxu0 0
        %1145 = vmatpush1.bf16.msra.mxu0 0
        %1146 = vmatprep.subr.bf16.mxu0 0
        %1147 = vmatpush1.bf16.msra.mxu0 0
        %1148 = vmatprep.subr.bf16.mxu0 0
        %1149 = vmatpush1.bf16.msra.mxu0 0
        %1150 = vmatprep.subr.bf16.mxu0 0
        %1151 = vmatpush1.bf16.msra.mxu0 0
        %1152 = vmatprep.subr.bf16.mxu0 0
        %1153 = vmatpush1.bf16.msra.mxu0 0
        %1154 = vmatprep.subr.bf16.mxu0 0
        %1155 = vmatpush1.bf16.msra.mxu0 0
        %1156 = vmatprep.subr.bf16.mxu0 0
        %1157 = vmatpush1.bf16.msra.mxu0 0
        %1158 = vmatprep.subr.bf16.mxu0 0
        %1159 = vmatpush1.bf16.msra.mxu0 %v1139
        %1160 = vmatprep.subr.bf16.mxu0 0
        %1161 = vmatpush2.bf16.msra.mxu0 0
        %1162 = vmatprep.subr.bf16.mxu0 0
        %1163 = vmatpush2.bf16.msra.mxu0 0
        %1164 = vmatprep.subr.bf16.mxu0 0
        %1165 = vmatpush2.bf16.msra.mxu0 0
        %1166 = vmatprep.subr.bf16.mxu0 0
        %1167 = vmatpush2.bf16.msra.mxu0 0
        %1168 = vmatprep.subr.bf16.mxu0 0
        %1169 = vmatpush2.bf16.msra.mxu0 0
        %1170 = vmatprep.subr.bf16.mxu0 0
        %1171 = vmatpush2.bf16.msra.mxu0 0
        %1172 = vmatprep.subr.bf16.mxu0 0
        %1173 = vmatpush2.bf16.msra.mxu0 0
        %1174 = vmatprep.subr.bf16.mxu0 0
        %1175 = vmatpush2.bf16.msra.mxu0 0
        %1176 = vmatprep.mubr.bf16.mxu0 0
        %1177 = vmatmul.mubr.bf16.gmra.mxu0 %v1142
        %v1178 = vpop.f32.mrf.mxu0
        %v1179 = vadd.f32 0.0, %v1178
        %v1180 = vpop.f32.mrf.mxu0
        %v1181 = vpop.f32.mrf.mxu0
        %v1182 = vpop.f32.mrf.mxu0
        %1183 = vdwg.mxu0
        %v1184 = vpack.c.bf16 %v1179, %v1179
        %v1185 = vpack.c.bf16 %v1071, %v1071
        %1187 = vrot.lane.b32.xlu0 %v1075, 120
        %v1188 = vpop.permute.xlu0 %1187
        %1189 = vrot.lane.b32.xlu0 %v1076, 120
        %v1190 = vpop.permute.xlu0 %1189
        %v1192 = vsel %vm291, %v1188, 0
        %v1195 = vsel %vm291, %v1190, 0
        %1197 = vmatprep.subr.bf16.mxu0 0
        %1198 = vmatpush1.bf16.xpose.msra.mxu0 0
        %1199 = vmatprep.subr.bf16.mxu0 0
        %1200 = vmatpush1.bf16.xpose.msra.mxu0 0
        %1201 = vmatprep.subr.bf16.mxu0 0
        %1202 = vmatpush1.bf16.xpose.msra.mxu0 0
        %1203 = vmatprep.subr.bf16.mxu0 0
        %1204 = vmatpush1.bf16.xpose.msra.mxu0 0
        %1205 = vmatprep.subr.bf16.mxu0 0
        %1206 = vmatpush1.bf16.xpose.msra.mxu0 0
        %1207 = vmatprep.subr.bf16.mxu0 0
        %1208 = vmatpush1.bf16.xpose.msra.mxu0 0
        %1209 = vmatprep.subr.bf16.mxu0 0
        %1210 = vmatpush1.bf16.xpose.msra.mxu0 0
        %1211 = vmatprep.subr.bf16.mxu0 0
        %1212 = vmatpush1.bf16.xpose.msra.mxu0 %v1195
        %1213 = vmatprep.subr.bf16.mxu0 0
        %1214 = vmatpush2.bf16.xpose.msra.mxu0 0
        %1215 = vmatprep.subr.bf16.mxu0 0
        %1216 = vmatpush2.bf16.xpose.msra.mxu0 0
        %1217 = vmatprep.subr.bf16.mxu0 0
        %1218 = vmatpush2.bf16.xpose.msra.mxu0 0
        %1219 = vmatprep.subr.bf16.mxu0 0
        %1220 = vmatpush2.bf16.xpose.msra.mxu0 0
        %1221 = vmatprep.subr.bf16.mxu0 0
        %1222 = vmatpush2.bf16.xpose.msra.mxu0 0
        %1223 = vmatprep.subr.bf16.mxu0 0
        %1224 = vmatpush2.bf16.xpose.msra.mxu0 0
        %1225 = vmatprep.subr.bf16.mxu0 0
        %1226 = vmatpush2.bf16.xpose.msra.mxu0 0
        %1227 = vmatprep.subr.bf16.mxu0 0
        %1228 = vmatpush2.bf16.xpose.msra.mxu0 0
        %1229 = vmatprep.mubr.bf16.mxu0 0
        %1230 = vmatmul.mubr.bf16.gmra.mxu0 %v1192
        %v1231 = vpop.f32.mrf.mxu0
        %v1232 = vadd.f32 0.0, %v1231
        %v1233 = vpop.f32.mrf.mxu0
        %v1234 = vpop.f32.mrf.mxu0
        %v1235 = vpop.f32.mrf.mxu0
        %1236 = vdwg.mxu0
        %v1237 = vmul.f32 %v1232, 0.35355338
        %v1238 = vsel %vm1124, %v1237, -inf
        %1239 = vmax.xlane.f32.xlu0 %v1238
        %v1240 = vpop.xlane.xlu0 %1239
        %v1241 = vsub.f32 %v1237, %v1240
        %v1242 = vmul.f32 %v1241, 1.442695
        %v1243 = vpow.pop %v1242
        %v1244 = vsel %vm1124, %v1243, 0.0
        %1245 = vadd.xlane.f32.xlu0 %v1244
        %v1246 = vpop.xlane.xlu0 %1245
        %v1247 = vrcp.pop %v1246
        %v1248 = vmul.f32 %v1243, %v1247
        %v1249 = vpack.c.bf16 %v1248, %v1248
        %1250 = vrot.lane.b32.xlu0 %v1076, 88
        %v1251 = vpop.permute.xlu0 %1250
        %v1254 = vsel %vm1124, %v1249, 0
        %1256 = vmatprep.subr.bf16.mxu0 0
        %1257 = vmatpush1.bf16.msra.mxu0 0
        %1258 = vmatprep.subr.bf16.mxu0 0
        %1259 = vmatpush1.bf16.msra.mxu0 0
        %1260 = vmatprep.subr.bf16.mxu0 0
        %1261 = vmatpush1.bf16.msra.mxu0 0
        %1262 = vmatprep.subr.bf16.mxu0 0
        %1263 = vmatpush1.bf16.msra.mxu0 0
        %1264 = vmatprep.subr.bf16.mxu0 0
        %1265 = vmatpush1.bf16.msra.mxu0 0
        %1266 = vmatprep.subr.bf16.mxu0 0
        %1267 = vmatpush1.bf16.msra.mxu0 0
        %1268 = vmatprep.subr.bf16.mxu0 0
        %1269 = vmatpush1.bf16.msra.mxu0 0
        %1270 = vmatprep.subr.bf16.mxu0 0
        %1271 = vmatpush1.bf16.msra.mxu0 %v1251
        %1272 = vmatprep.subr.bf16.mxu0 0
        %1273 = vmatpush2.bf16.msra.mxu0 0
        %1274 = vmatprep.subr.bf16.mxu0 0
        %1275 = vmatpush2.bf16.msra.mxu0 0
        %1276 = vmatprep.subr.bf16.mxu0 0
        %1277 = vmatpush2.bf16.msra.mxu0 0
        %1278 = vmatprep.subr.bf16.mxu0 0
        %1279 = vmatpush2.bf16.msra.mxu0 0
        %1280 = vmatprep.subr.bf16.mxu0 0
        %1281 = vmatpush2.bf16.msra.mxu0 0
        %1282 = vmatprep.subr.bf16.mxu0 0
        %1283 = vmatpush2.bf16.msra.mxu0 0
        %1284 = vmatprep.subr.bf16.mxu0 0
        %1285 = vmatpush2.bf16.msra.mxu0 0
        %1286 = vmatprep.subr.bf16.mxu0 0
        %1287 = vmatpush2.bf16.msra.mxu0 0
        %1288 = vmatprep.mubr.bf16.mxu0 0
        %1289 = vmatmul.mubr.bf16.gmra.mxu0 %v1254
        %v1290 = vpop.f32.mrf.mxu0
        %v1291 = vadd.f32 0.0, %v1290
        %v1292 = vpop.f32.mrf.mxu0
        %v1293 = vpop.f32.mrf.mxu0
        %v1294 = vpop.f32.mrf.mxu0
        %1295 = vdwg.mxu0
        %v1296 = vpack.c.bf16 %v1291, %v1291
        %v1297 = vpack.c.bf16 %v1072, %v1072
        %v1299 = vsel %vm291, %v1296, 0
        %v1302 = vsel %vm179, %v1297, 0
        %1304 = vmatprep.subr.bf16.mxu0 0
        %1305 = vmatpush1.bf16.msra.mxu0 0
        %1306 = vmatprep.subr.bf16.mxu0 0
        %1307 = vmatpush1.bf16.msra.mxu0 0
        %1308 = vmatprep.subr.bf16.mxu0 0
        %1309 = vmatpush1.bf16.msra.mxu0 0
        %1310 = vmatprep.subr.bf16.mxu0 0
        %1311 = vmatpush1.bf16.msra.mxu0 0
        %1312 = vmatprep.subr.bf16.mxu0 0
        %1313 = vmatpush1.bf16.msra.mxu0 0
        %1314 = vmatprep.subr.bf16.mxu0 0
        %1315 = vmatpush1.bf16.msra.mxu0 0
        %1316 = vmatprep.subr.bf16.mxu0 0
        %1317 = vmatpush1.bf16.msra.mxu0 0
        %1318 = vmatprep.subr.bf16.mxu0 0
        %1319 = vmatpush1.bf16.msra.mxu0 %v1302
        %1320 = vmatprep.subr.bf16.mxu0 0
        %1321 = vmatpush2.bf16.msra.mxu0 0
        %1322 = vmatprep.subr.bf16.mxu0 0
        %1323 = vmatpush2.bf16.msra.mxu0 0
        %1324 = vmatprep.subr.bf16.mxu0 0
        %1325 = vmatpush2.bf16.msra.mxu0 0
        %1326 = vmatprep.subr.bf16.mxu0 0
        %1327 = vmatpush2.bf16.msra.mxu0 0
        %1328 = vmatprep.subr.bf16.mxu0 0
        %1329 = vmatpush2.bf16.msra.mxu0 0
        %1330 = vmatprep.subr.bf16.mxu0 0
        %1331 = vmatpush2.bf16.msra.mxu0 0
        %1332 = vmatprep.subr.bf16.mxu0 0
        %1333 = vmatpush2.bf16.msra.mxu0 0
        %1334 = vmatprep.subr.bf16.mxu0 0
        %1335 = vmatpush2.bf16.msra.mxu0 0
        %1336 = vmatprep.mubr.bf16.mxu0 0
        %1337 = vmatmul.mubr.bf16.gmra.mxu0 %v1299
        %v1338 = vpop.f32.mrf.mxu0
        %v1339 = vadd.f32 0.0, %v1338
        %v1340 = vpop.f32.mrf.mxu0
        %v1341 = vpop.f32.mrf.mxu0
        %v1342 = vpop.f32.mrf.mxu0
        %1343 = vdwg.mxu0
        %v1345 = vsel %vm291, %v1184, 0
        %v1348 = vsel %vm179, %v1185, 0
        %1350 = vmatprep.subr.bf16.mxu0 0
        %1351 = vmatpush1.bf16.msra.mxu0 0
        %1352 = vmatprep.subr.bf16.mxu0 0
        %1353 = vmatpush1.bf16.msra.mxu0 0
        %1354 = vmatprep.subr.bf16.mxu0 0
        %1355 = vmatpush1.bf16.msra.mxu0 0
        %1356 = vmatprep.subr.bf16.mxu0 0
        %1357 = vmatpush1.bf16.msra.mxu0 0
        %1358 = vmatprep.subr.bf16.mxu0 0
        %1359 = vmatpush1.bf16.msra.mxu0 0
        %1360 = vmatprep.subr.bf16.mxu0 0
        %1361 = vmatpush1.bf16.msra.mxu0 0
        %1362 = vmatprep.subr.bf16.mxu0 0
        %1363 = vmatpush1.bf16.msra.mxu0 0
        %1364 = vmatprep.subr.bf16.mxu0 0
        %1365 = vmatpush1.bf16.msra.mxu0 %v1348
        %1366 = vmatprep.subr.bf16.mxu0 0
        %1367 = vmatpush2.bf16.msra.mxu0 0
        %1368 = vmatprep.subr.bf16.mxu0 0
        %1369 = vmatpush2.bf16.msra.mxu0 0
        %1370 = vmatprep.subr.bf16.mxu0 0
        %1371 = vmatpush2.bf16.msra.mxu0 0
        %1372 = vmatprep.subr.bf16.mxu0 0
        %1373 = vmatpush2.bf16.msra.mxu0 0
        %1374 = vmatprep.subr.bf16.mxu0 0
        %1375 = vmatpush2.bf16.msra.mxu0 0
        %1376 = vmatprep.subr.bf16.mxu0 0
        %1377 = vmatpush2.bf16.msra.mxu0 0
        %1378 = vmatprep.subr.bf16.mxu0 0
        %1379 = vmatpush2.bf16.msra.mxu0 0
        %1380 = vmatprep.subr.bf16.mxu0 0
        %1381 = vmatpush2.bf16.msra.mxu0 0
        %1382 = vmatprep.mubr.bf16.mxu0 0
        %1383 = vmatmul.mubr.bf16.gmra.mxu0 %v1345
        %v1384 = vpop.f32.mrf.mxu0
        %v1385 = vadd.f32 %v1339, %v1384
        %v1386 = vpop.f32.mrf.mxu0
        %v1387 = vpop.f32.mrf.mxu0
        %v1388 = vpop.f32.mrf.mxu0
        %1389 = vdwg.mxu0
        %1390 = vrot.lane.b32.xlu0 %v1075, 112
        %v1391 = vpop.permute.xlu0 %1390
        %1392 = vrot.lane.b32.xlu0 %v1076, 112
        %v1393 = vpop.permute.xlu0 %1392
        %v1395 = vsel %vm291, %v1391, 0
        %v1398 = vsel %vm291, %v1393, 0
        %1400 = vmatprep.subr.bf16.mxu0 0
        %1401 = vmatpush1.bf16.xpose.msra.mxu0 0
        %1402 = vmatprep.subr.bf16.mxu0 0
        %1403 = vmatpush1.bf16.xpose.msra.mxu0 0
        %1404 = vmatprep.subr.bf16.mxu0 0
        %1405 = vmatpush1.bf16.xpose.msra.mxu0 0
        %1406 = vmatprep.subr.bf16.mxu0 0
        %1407 = vmatpush1.bf16.xpose.msra.mxu0 0
        %1408 = vmatprep.subr.bf16.mxu0 0
        %1409 = vmatpush1.bf16.xpose.msra.mxu0 0
        %1410 = vmatprep.subr.bf16.mxu0 0
        %1411 = vmatpush1.bf16.xpose.msra.mxu0 0
        %1412 = vmatprep.subr.bf16.mxu0 0
        %1413 = vmatpush1.bf16.xpose.msra.mxu0 0
        %1414 = vmatprep.subr.bf16.mxu0 0
        %1415 = vmatpush1.bf16.xpose.msra.mxu0 %v1398
        %1416 = vmatprep.subr.bf16.mxu0 0
        %1417 = vmatpush2.bf16.xpose.msra.mxu0 0
        %1418 = vmatprep.subr.bf16.mxu0 0
        %1419 = vmatpush2.bf16.xpose.msra.mxu0 0
        %1420 = vmatprep.subr.bf16.mxu0 0
        %1421 = vmatpush2.bf16.xpose.msra.mxu0 0
        %1422 = vmatprep.subr.bf16.mxu0 0
        %1423 = vmatpush2.bf16.xpose.msra.mxu0 0
        %1424 = vmatprep.subr.bf16.mxu0 0
        %1425 = vmatpush2.bf16.xpose.msra.mxu0 0
        %1426 = vmatprep.subr.bf16.mxu0 0
        %1427 = vmatpush2.bf16.xpose.msra.mxu0 0
        %1428 = vmatprep.subr.bf16.mxu0 0
        %1429 = vmatpush2.bf16.xpose.msra.mxu0 0
        %1430 = vmatprep.subr.bf16.mxu0 0
        %1431 = vmatpush2.bf16.xpose.msra.mxu0 0
        %1432 = vmatprep.mubr.bf16.mxu0 0
        %1433 = vmatmul.mubr.bf16.gmra.mxu0 %v1395
        %v1434 = vpop.f32.mrf.mxu0
        %v1435 = vadd.f32 0.0, %v1434
        %v1436 = vpop.f32.mrf.mxu0
        %v1437 = vpop.f32.mrf.mxu0
        %v1438 = vpop.f32.mrf.mxu0
        %1439 = vdwg.mxu0
        %v1440 = vmul.f32 %v1435, 0.35355338
        %v1441 = vsel %vm1124, %v1440, -inf
        %1442 = vmax.xlane.f32.xlu0 %v1441
        %v1443 = vpop.xlane.xlu0 %1442
        %v1444 = vsub.f32 %v1440, %v1443
        %v1445 = vmul.f32 %v1444, 1.442695
        %v1446 = vpow.pop %v1445
        %v1447 = vsel %vm1124, %v1446, 0.0
        %1448 = vadd.xlane.f32.xlu0 %v1447
        %v1449 = vpop.xlane.xlu0 %1448
        %v1450 = vrcp.pop %v1449
        %v1451 = vmul.f32 %v1446, %v1450
        %v1452 = vpack.c.bf16 %v1451, %v1451
        %1453 = vrot.lane.b32.xlu0 %v1076, 80
        %v1454 = vpop.permute.xlu0 %1453
        %v1457 = vsel %vm1124, %v1452, 0
        %1459 = vmatprep.subr.bf16.mxu0 0
        %1460 = vmatpush1.bf16.msra.mxu0 0
        %1461 = vmatprep.subr.bf16.mxu0 0
        %1462 = vmatpush1.bf16.msra.mxu0 0
        %1463 = vmatprep.subr.bf16.mxu0 0
        %1464 = vmatpush1.bf16.msra.mxu0 0
        %1465 = vmatprep.subr.bf16.mxu0 0
        %1466 = vmatpush1.bf16.msra.mxu0 0
        %1467 = vmatprep.subr.bf16.mxu0 0
        %1468 = vmatpush1.bf16.msra.mxu0 0
        %1469 = vmatprep.subr.bf16.mxu0 0
        %1470 = vmatpush1.bf16.msra.mxu0 0
        %1471 = vmatprep.subr.bf16.mxu0 0
        %1472 = vmatpush1.bf16.msra.mxu0 0
        %1473 = vmatprep.subr.bf16.mxu0 0
        %1474 = vmatpush1.bf16.msra.mxu0 %v1454
        %1475 = vmatprep.subr.bf16.mxu0 0
        %1476 = vmatpush2.bf16.msra.mxu0 0
        %1477 = vmatprep.subr.bf16.mxu0 0
        %1478 = vmatpush2.bf16.msra.mxu0 0
        %1479 = vmatprep.subr.bf16.mxu0 0
        %1480 = vmatpush2.bf16.msra.mxu0 0
        %1481 = vmatprep.subr.bf16.mxu0 0
        %1482 = vmatpush2.bf16.msra.mxu0 0
        %1483 = vmatprep.subr.bf16.mxu0 0
        %1484 = vmatpush2.bf16.msra.mxu0 0
        %1485 = vmatprep.subr.bf16.mxu0 0
        %1486 = vmatpush2.bf16.msra.mxu0 0
        %1487 = vmatprep.subr.bf16.mxu0 0
        %1488 = vmatpush2.bf16.msra.mxu0 0
        %1489 = vmatprep.subr.bf16.mxu0 0
        %1490 = vmatpush2.bf16.msra.mxu0 0
        %1491 = vmatprep.mubr.bf16.mxu0 0
        %1492 = vmatmul.mubr.bf16.gmra.mxu0 %v1457
        %v1493 = vpop.f32.mrf.mxu0
        %v1494 = vadd.f32 0.0, %v1493
        %v1495 = vpop.f32.mrf.mxu0
        %v1496 = vpop.f32.mrf.mxu0
        %v1497 = vpop.f32.mrf.mxu0
        %1498 = vdwg.mxu0
        %v1499 = vpack.c.bf16 %v1494, %v1494
        %v1500 = vpack.c.bf16 %v1073, %v1073
        %v1502 = vsel %vm291, %v1499, 0
        %v1505 = vsel %vm179, %v1500, 0
        %1507 = vmatprep.subr.bf16.mxu0 0
        %1508 = vmatpush1.bf16.msra.mxu0 0
        %1509 = vmatprep.subr.bf16.mxu0 0
        %1510 = vmatpush1.bf16.msra.mxu0 0
        %1511 = vmatprep.subr.bf16.mxu0 0
        %1512 = vmatpush1.bf16.msra.mxu0 0
        %1513 = vmatprep.subr.bf16.mxu0 0
        %1514 = vmatpush1.bf16.msra.mxu0 0
        %1515 = vmatprep.subr.bf16.mxu0 0
        %1516 = vmatpush1.bf16.msra.mxu0 0
        %1517 = vmatprep.subr.bf16.mxu0 0
        %1518 = vmatpush1.bf16.msra.mxu0 0
        %1519 = vmatprep.subr.bf16.mxu0 0
        %1520 = vmatpush1.bf16.msra.mxu0 0
        %1521 = vmatprep.subr.bf16.mxu0 0
        %1522 = vmatpush1.bf16.msra.mxu0 %v1505
        %1523 = vmatprep.subr.bf16.mxu0 0
        %1524 = vmatpush2.bf16.msra.mxu0 0
        %1525 = vmatprep.subr.bf16.mxu0 0
        %1526 = vmatpush2.bf16.msra.mxu0 0
        %1527 = vmatprep.subr.bf16.mxu0 0
        %1528 = vmatpush2.bf16.msra.mxu0 0
        %1529 = vmatprep.subr.bf16.mxu0 0
        %1530 = vmatpush2.bf16.msra.mxu0 0
        %1531 = vmatprep.subr.bf16.mxu0 0
        %1532 = vmatpush2.bf16.msra.mxu0 0
        %1533 = vmatprep.subr.bf16.mxu0 0
        %1534 = vmatpush2.bf16.msra.mxu0 0
        %1535 = vmatprep.subr.bf16.mxu0 0
        %1536 = vmatpush2.bf16.msra.mxu0 0
        %1537 = vmatprep.subr.bf16.mxu0 0
        %1538 = vmatpush2.bf16.msra.mxu0 0
        %1539 = vmatprep.mubr.bf16.mxu0 0
        %1540 = vmatmul.mubr.bf16.gmra.mxu0 %v1502
        %v1541 = vpop.f32.mrf.mxu0
        %v1542 = vadd.f32 0.0, %v1541
        %v1543 = vpop.f32.mrf.mxu0
        %v1544 = vpop.f32.mrf.mxu0
        %v1545 = vpop.f32.mrf.mxu0
        %1546 = vdwg.mxu0
        %v1547 = vadd.f32 %v1385, %v1542
        %1548 = vrot.lane.b32.xlu0 %v1075, 104
        %v1549 = vpop.permute.xlu0 %1548
        %1550 = vrot.lane.b32.xlu0 %v1076, 104
        %v1551 = vpop.permute.xlu0 %1550
        %v1553 = vsel %vm291, %v1549, 0
        %v1556 = vsel %vm291, %v1551, 0
        %1558 = vmatprep.subr.bf16.mxu0 0
        %1559 = vmatpush1.bf16.xpose.msra.mxu0 0
        %1560 = vmatprep.subr.bf16.mxu0 0
        %1561 = vmatpush1.bf16.xpose.msra.mxu0 0
        %1562 = vmatprep.subr.bf16.mxu0 0
        %1563 = vmatpush1.bf16.xpose.msra.mxu0 0
        %1564 = vmatprep.subr.bf16.mxu0 0
        %1565 = vmatpush1.bf16.xpose.msra.mxu0 0
        %1566 = vmatprep.subr.bf16.mxu0 0
        %1567 = vmatpush1.bf16.xpose.msra.mxu0 0
        %1568 = vmatprep.subr.bf16.mxu0 0
        %1569 = vmatpush1.bf16.xpose.msra.mxu0 0
        %1570 = vmatprep.subr.bf16.mxu0 0
        %1571 = vmatpush1.bf16.xpose.msra.mxu0 0
        %1572 = vmatprep.subr.bf16.mxu0 0
        %1573 = vmatpush1.bf16.xpose.msra.mxu0 %v1556
        %1574 = vmatprep.subr.bf16.mxu0 0
        %1575 = vmatpush2.bf16.xpose.msra.mxu0 0
        %1576 = vmatprep.subr.bf16.mxu0 0
        %1577 = vmatpush2.bf16.xpose.msra.mxu0 0
        %1578 = vmatprep.subr.bf16.mxu0 0
        %1579 = vmatpush2.bf16.xpose.msra.mxu0 0
        %1580 = vmatprep.subr.bf16.mxu0 0
        %1581 = vmatpush2.bf16.xpose.msra.mxu0 0
        %1582 = vmatprep.subr.bf16.mxu0 0
        %1583 = vmatpush2.bf16.xpose.msra.mxu0 0
        %1584 = vmatprep.subr.bf16.mxu0 0
        %1585 = vmatpush2.bf16.xpose.msra.mxu0 0
        %1586 = vmatprep.subr.bf16.mxu0 0
        %1587 = vmatpush2.bf16.xpose.msra.mxu0 0
        %1588 = vmatprep.subr.bf16.mxu0 0
        %1589 = vmatpush2.bf16.xpose.msra.mxu0 0
        %1590 = vmatprep.mubr.bf16.mxu0 0
        %1591 = vmatmul.mubr.bf16.gmra.mxu0 %v1553
        %v1592 = vpop.f32.mrf.mxu0
        %v1593 = vadd.f32 0.0, %v1592
        %v1594 = vpop.f32.mrf.mxu0
        %v1595 = vpop.f32.mrf.mxu0
        %v1596 = vpop.f32.mrf.mxu0
        %1597 = vdwg.mxu0
        %v1598 = vmul.f32 %v1593, 0.35355338
        %v1599 = vsel %vm1124, %v1598, -inf
        %1600 = vmax.xlane.f32.xlu0 %v1599
        %v1601 = vpop.xlane.xlu0 %1600
        %v1602 = vsub.f32 %v1598, %v1601
        %v1603 = vmul.f32 %v1602, 1.442695
        %v1604 = vpow.pop %v1603
        %v1605 = vsel %vm1124, %v1604, 0.0
        %1606 = vadd.xlane.f32.xlu0 %v1605
        %v1607 = vpop.xlane.xlu0 %1606
        %v1608 = vrcp.pop %v1607
        %v1609 = vmul.f32 %v1604, %v1608
        %v1610 = vpack.c.bf16 %v1609, %v1609
        %1611 = vrot.lane.b32.xlu0 %v1076, 72
        %v1612 = vpop.permute.xlu0 %1611
        %v1615 = vsel %vm1124, %v1610, 0
        %1617 = vmatprep.subr.bf16.mxu0 0
        %1618 = vmatpush1.bf16.msra.mxu0 0
        %1619 = vmatprep.subr.bf16.mxu0 0
        %1620 = vmatpush1.bf16.msra.mxu0 0
        %1621 = vmatprep.subr.bf16.mxu0 0
        %1622 = vmatpush1.bf16.msra.mxu0 0
        %1623 = vmatprep.subr.bf16.mxu0 0
        %1624 = vmatpush1.bf16.msra.mxu0 0
        %1625 = vmatprep.subr.bf16.mxu0 0
        %1626 = vmatpush1.bf16.msra.mxu0 0
        %1627 = vmatprep.subr.bf16.mxu0 0
        %1628 = vmatpush1.bf16.msra.mxu0 0
        %1629 = vmatprep.subr.bf16.mxu0 0
        %1630 = vmatpush1.bf16.msra.mxu0 0
        %1631 = vmatprep.subr.bf16.mxu0 0
        %1632 = vmatpush1.bf16.msra.mxu0 %v1612
        %1633 = vmatprep.subr.bf16.mxu0 0
        %1634 = vmatpush2.bf16.msra.mxu0 0
        %1635 = vmatprep.subr.bf16.mxu0 0
        %1636 = vmatpush2.bf16.msra.mxu0 0
        %1637 = vmatprep.subr.bf16.mxu0 0
        %1638 = vmatpush2.bf16.msra.mxu0 0
        %1639 = vmatprep.subr.bf16.mxu0 0
        %1640 = vmatpush2.bf16.msra.mxu0 0
        %1641 = vmatprep.subr.bf16.mxu0 0
        %1642 = vmatpush2.bf16.msra.mxu0 0
        %1643 = vmatprep.subr.bf16.mxu0 0
        %1644 = vmatpush2.bf16.msra.mxu0 0
        %1645 = vmatprep.subr.bf16.mxu0 0
        %1646 = vmatpush2.bf16.msra.mxu0 0
        %1647 = vmatprep.subr.bf16.mxu0 0
        %1648 = vmatpush2.bf16.msra.mxu0 0
        %1649 = vmatprep.mubr.bf16.mxu0 0
        %1650 = vmatmul.mubr.bf16.gmra.mxu0 %v1615
        %v1651 = vpop.f32.mrf.mxu0
        %v1652 = vadd.f32 0.0, %v1651
        %v1653 = vpop.f32.mrf.mxu0
        %v1654 = vpop.f32.mrf.mxu0
        %v1655 = vpop.f32.mrf.mxu0
        %1656 = vdwg.mxu0
        %v1657 = vpack.c.bf16 %v1652, %v1652
        %v1658 = vpack.c.bf16 %v1074, %v1074
        %v1660 = vsel %vm291, %v1657, 0
        %v1663 = vsel %vm179, %v1658, 0
        %1665 = vmatprep.subr.bf16.mxu0 0
        %1666 = vmatpush1.bf16.msra.mxu0 0
        %1667 = vmatprep.subr.bf16.mxu0 0
        %1668 = vmatpush1.bf16.msra.mxu0 0
        %1669 = vmatprep.subr.bf16.mxu0 0
        %1670 = vmatpush1.bf16.msra.mxu0 0
        %1671 = vmatprep.subr.bf16.mxu0 0
        %1672 = vmatpush1.bf16.msra.mxu0 0
        %1673 = vmatprep.subr.bf16.mxu0 0
        %1674 = vmatpush1.bf16.msra.mxu0 0
        %1675 = vmatprep.subr.bf16.mxu0 0
        %1676 = vmatpush1.bf16.msra.mxu0 0
        %1677 = vmatprep.subr.bf16.mxu0 0
        %1678 = vmatpush1.bf16.msra.mxu0 0
        %1679 = vmatprep.subr.bf16.mxu0 0
        %1680 = vmatpush1.bf16.msra.mxu0 %v1663
        %1681 = vmatprep.subr.bf16.mxu0 0
        %1682 = vmatpush2.bf16.msra.mxu0 0
        %1683 = vmatprep.subr.bf16.mxu0 0
        %1684 = vmatpush2.bf16.msra.mxu0 0
        %1685 = vmatprep.subr.bf16.mxu0 0
        %1686 = vmatpush2.bf16.msra.mxu0 0
        %1687 = vmatprep.subr.bf16.mxu0 0
        %1688 = vmatpush2.bf16.msra.mxu0 0
        %1689 = vmatprep.subr.bf16.mxu0 0
        %1690 = vmatpush2.bf16.msra.mxu0 0
        %1691 = vmatprep.subr.bf16.mxu0 0
        %1692 = vmatpush2.bf16.msra.mxu0 0
        %1693 = vmatprep.subr.bf16.mxu0 0
        %1694 = vmatpush2.bf16.msra.mxu0 0
        %1695 = vmatprep.subr.bf16.mxu0 0
        %1696 = vmatpush2.bf16.msra.mxu0 0
        %1697 = vmatprep.mubr.bf16.mxu0 0
        %1698 = vmatmul.mubr.bf16.gmra.mxu0 %v1660
        %v1699 = vpop.f32.mrf.mxu0
        %v1700 = vadd.f32 0.0, %v1699
        %v1701 = vpop.f32.mrf.mxu0
        %v1702 = vpop.f32.mrf.mxu0
        %v1703 = vpop.f32.mrf.mxu0
        %1704 = vdwg.mxu0
        %v1705 = vadd.f32 %v1547, %v1700
        %v1706 = vld [vmem:[#allocation2 + $0x108] sm:$0x1]
        %v1707 = vlaneseq
        %v1708 = vshrl.u32 %v1707, 7
        %v1709 = vsub.s32 0, %v1708
        %v1710 = vrot.slane %v1706, %v1709
        %v1711 = vadd.f32 %v1705, %v1710
        %v1712 = vadd.f32 %v958, %v1711
        %v1713 = vsel %vm239, %v1712, 0.0
        %1714 = vadd.xlane.f32.xlu0 %v1713
        %v1715 = vpop.xlane.xlu0 %1714
        %v1716 = vmul.f32 %v1715, %v936
        %v1717 = vsub.f32 %v1712, %v1716
        %v1718 = vmul.f32 %v1717, %v1717
        %v1719 = vsel %vm239, %v1718, 0.0
        %1720 = vadd.xlane.f32.xlu0 %v1719
        %v1721 = vpop.xlane.xlu0 %1720
        %v1722 = vmul.f32 %v1721, %v936
        %v1723 = vadd.f32 %v1722, 1e-05
        %v1724 = vrsqrt.pop %v1723
        %v1725 = vmul.f32 %v1717, %v1724
        %v1726 = vld [vmem:[#allocation2 + $0x120] sm:$0x1]
        %v1727 = vlaneseq
        %v1728 = vshrl.u32 %v1727, 7
        %v1729 = vsub.s32 0, %v1728
        %v1730 = vrot.slane %v1726, %v1729
        %v1731 = vmul.f32 %v1725, %v1730
        %v1732 = vld [vmem:[#allocation2 + $0x128] sm:$0x1]
        %v1733 = vlaneseq
        %v1734 = vshrl.u32 %v1733, 7
        %v1735 = vsub.s32 0, %v1734
        %v1736 = vrot.slane %v1732, %v1735
        %v1737 = vadd.f32 %v1731, %v1736
        %v1738 = vld [vmem:[#allocation2 + $0x140] sm:$0xff]
        %v1739 = vld [vmem:[#allocation2 + $0x148] sm:$0xff]
        %v1740 = vld [vmem:[#allocation2 + $0x150] sm:$0xff]
        %v1741 = vld [vmem:[#allocation2 + $0x158] sm:$0xff]
        %v1742 = vpack.c.bf16 %v1737, %v1737
        %v1743 = vpack.c.bf16 %v1739, %v1738
        %v1744 = vpack.c.bf16 %v1741, %v1740
        %v1745 = vld [vmem:[#allocation2 + $0x160] sm:$0x1]
        %v1746 = vlaneseq
        %v1747 = vshrl.u32 %v1746, 7
        %v1748 = vsub.s32 0, %v1747
        %v1749 = vrot.slane %v1745, %v1748
        %v1751 = vsel %vm239, %v1742, 0
        %1753 = vmatprep.subr.bf16.mxu0 0
        %1754 = vmatpush1.bf16.msra.mxu0 0
        %1755 = vmatprep.subr.bf16.mxu0 0
        %1756 = vmatpush1.bf16.msra.mxu0 0
        %1757 = vmatprep.subr.bf16.mxu0 0
        %1758 = vmatpush1.bf16.msra.mxu0 0
        %1759 = vmatprep.subr.bf16.mxu0 0
        %1760 = vmatpush1.bf16.msra.mxu0 0
        %1761 = vmatprep.subr.bf16.mxu0 0
        %1762 = vmatpush1.bf16.msra.mxu0 0
        %1763 = vmatprep.subr.bf16.mxu0 0
        %1764 = vmatpush1.bf16.msra.mxu0 0
        %1765 = vmatprep.subr.bf16.mxu0 0
        %1766 = vmatpush1.bf16.msra.mxu0 %v1744
        %1767 = vmatprep.subr.bf16.mxu0 0
        %1768 = vmatpush1.bf16.msra.mxu0 %v1743
        %1769 = vmatprep.subr.bf16.mxu0 0
        %1770 = vmatpush2.bf16.msra.mxu0 0
        %1771 = vmatprep.subr.bf16.mxu0 0
        %1772 = vmatpush2.bf16.msra.mxu0 0
        %1773 = vmatprep.subr.bf16.mxu0 0
        %1774 = vmatpush2.bf16.msra.mxu0 0
        %1775 = vmatprep.subr.bf16.mxu0 0
        %1776 = vmatpush2.bf16.msra.mxu0 0
        %1777 = vmatprep.subr.bf16.mxu0 0
        %1778 = vmatpush2.bf16.msra.mxu0 0
        %1779 = vmatprep.subr.bf16.mxu0 0
        %1780 = vmatpush2.bf16.msra.mxu0 0
        %1781 = vmatprep.subr.bf16.mxu0 0
        %1782 = vmatpush2.bf16.msra.mxu0 0
        %1783 = vmatprep.subr.bf16.mxu0 0
        %1784 = vmatpush2.bf16.msra.mxu0 0
        %1785 = vmatprep.mubr.bf16.mxu0 0
        %1786 = vmatmul.mubr.bf16.gmra.mxu0 %v1751
        %v1787 = vpop.f32.mrf.mxu0
        %v1788 = vadd.f32 %v1749, %v1787
        %v1789 = vpop.f32.mrf.mxu0
        %v1790 = vpop.f32.mrf.mxu0
        %v1791 = vpop.f32.mrf.mxu0
        %1792 = vdwg.mxu0
        %v1793 = vmax.f32 %v1788, 0.0
        %v1794 = vld [vmem:[#allocation2 + $0x168] sm:$0xff]
        %v1795 = vld [vmem:[#allocation2 + $0x170] sm:$0xff]
        %v1796 = vld [vmem:[#allocation2 + $0x178] sm:$0xff]
        %v1797 = vld [vmem:[#allocation2 + $0x180] sm:$0xff]
        %v1798 = vld [vmem:[#allocation2 + $0x188] sm:$0xff]
        %v1799 = vld [vmem:[#allocation2 + $0x190] sm:$0xff]
        %v1800 = vld [vmem:[#allocation2 + $0x198] sm:$0xff]
        %v1801 = vld [vmem:[#allocation2 + $0x1a0] sm:$0xff]
        %v1802 = vpack.c.bf16 %v1793, %v1793
        %v1803 = vpack.c.bf16 %v1795, %v1794
        %v1804 = vpack.c.bf16 %v1797, %v1796
        %v1805 = vpack.c.bf16 %v1799, %v1798
        %v1806 = vpack.c.bf16 %v1801, %v1800
        %v1807 = vld [vmem:[#allocation2 + $0x1a8] sm:$0x1]
        %v1808 = vlaneseq
        %v1809 = vshrl.u32 %v1808, 7
        %v1810 = vsub.s32 0, %v1809
        %v1811 = vrot.slane %v1807, %v1810
        %vm1812 = vcmask 523264
        %v1814 = vsel %vm1812, %v1802, 0
        %1816 = vmatprep.subr.bf16.mxu0 0
        %1817 = vmatpush1.bf16.msra.mxu0 0
        %1818 = vmatprep.subr.bf16.mxu0 0
        %1819 = vmatpush1.bf16.msra.mxu0 0
        %1820 = vmatprep.subr.bf16.mxu0 0
        %1821 = vmatpush1.bf16.msra.mxu0 0
        %1822 = vmatprep.subr.bf16.mxu0 0
        %1823 = vmatpush1.bf16.msra.mxu0 0
        %1824 = vmatprep.subr.bf16.mxu0 0
        %1825 = vmatpush1.bf16.msra.mxu0 %v1806
        %1826 = vmatprep.subr.bf16.mxu0 0
        %1827 = vmatpush1.bf16.msra.mxu0 %v1805
        %1828 = vmatprep.subr.bf16.mxu0 0
        %1829 = vmatpush1.bf16.msra.mxu0 %v1804
        %1830 = vmatprep.subr.bf16.mxu0 0
        %1831 = vmatpush1.bf16.msra.mxu0 %v1803
        %1832 = vmatprep.subr.bf16.mxu0 0
        %1833 = vmatpush2.bf16.msra.mxu0 0
        %1834 = vmatprep.subr.bf16.mxu0 0
        %1835 = vmatpush2.bf16.msra.mxu0 0
        %1836 = vmatprep.subr.bf16.mxu0 0
        %1837 = vmatpush2.bf16.msra.mxu0 0
        %1838 = vmatprep.subr.bf16.mxu0 0
        %1839 = vmatpush2.bf16.msra.mxu0 0
        %1840 = vmatprep.subr.bf16.mxu0 0
        %1841 = vmatpush2.bf16.msra.mxu0 0
        %1842 = vmatprep.subr.bf16.mxu0 0
        %1843 = vmatpush2.bf16.msra.mxu0 0
        %1844 = vmatprep.subr.bf16.mxu0 0
        %1845 = vmatpush2.bf16.msra.mxu0 0
        %1846 = vmatprep.subr.bf16.mxu0 0
        %1847 = vmatpush2.bf16.msra.mxu0 0
        %1848 = vmatprep.mubr.bf16.mxu0 0
        %1849 = vmatmul.mubr.bf16.gmra.mxu0 %v1814
        %v1850 = vpop.f32.mrf.mxu0
        %v1851 = vadd.f32 %v1811, %v1850
        %v1852 = vpop.f32.mrf.mxu0
        %v1853 = vpop.f32.mrf.mxu0
        %v1854 = vpop.f32.mrf.mxu0
        %1855 = vdwg.mxu0
        %v1856 = vadd.f32 %v1737, %v1851
        %v1857 = vsel %vm239, %v1856, 0.0
        %1858 = vadd.xlane.f32.xlu0 %v1857
        %v1859 = vpop.xlane.xlu0 %1858
        %v1860 = vmul.f32 %v1859, %v936
        %v1861 = vsub.f32 %v1856, %v1860
        %v1862 = vmul.f32 %v1861, %v1861
        %v1863 = vsel %vm239, %v1862, 0.0
        %1864 = vadd.xlane.f32.xlu0 %v1863
        %v1865 = vpop.xlane.xlu0 %1864
        %v1866 = vmul.f32 %v1865, %v936
        %v1867 = vadd.f32 %v1866, 1e-05
        %v1868 = vrsqrt.pop %v1867
        %v1869 = vmul.f32 %v1861, %v1868
        %v1870 = vld [vmem:[#allocation2 + $0x130] sm:$0x1]
        %v1871 = vlaneseq
        %v1872 = vshrl.u32 %v1871, 7
        %v1873 = vsub.s32 0, %v1872
        %v1874 = vrot.slane %v1870, %v1873
        %v1875 = vmul.f32 %v1869, %v1874
        %v1876 = vld [vmem:[#allocation2 + $0x138] sm:$0x1]
        %v1877 = vlaneseq
        %v1878 = vshrl.u32 %v1877, 7
        %v1879 = vsub.s32 0, %v1878
        %v1880 = vrot.slane %v1876, %v1879
        %v1881 = vadd.f32 %v1875, %v1880
        %v1882 = vsel %vm239, %v1881, 0.0
        %1883 = vadd.xlane.f32.xlu0 %v1882
        %v1884 = vpop.xlane.xlu0 %1883
        %v1885 = vmul.f32 %v1884, %v936
        %v1886 = vsub.f32 %v1881, %v1885
        %v1887 = vmul.f32 %v1886, %v1886
        %v1888 = vsel %vm239, %v1887, 0.0
        %1889 = vadd.xlane.f32.xlu0 %v1888
        %v1890 = vpop.xlane.xlu0 %1889
        %v1891 = vmul.f32 %v1890, %v936
        %v1892 = vadd.f32 %v1891, 1e-05
        %v1893 = vrsqrt.pop %v1892
        %v1894 = vmul.f32 %v1886, %v1893
        %v1895 = vld [vmem:[#allocation2 + $0x1b0] sm:$0x1]
        %v1896 = vlaneseq
        %v1897 = vshrl.u32 %v1896, 7
        %v1898 = vsub.s32 0, %v1897
        %v1899 = vrot.slane %v1895, %v1898
        %v1900 = vmul.f32 %v1894, %v1899
        %v1901 = vld [vmem:[#allocation2 + $0x1b8] sm:$0x1]
        %v1902 = vlaneseq
        %v1903 = vshrl.u32 %v1902, 7
        %v1904 = vsub.s32 0, %v1903
        %v1905 = vrot.slane %v1901, %v1904
        %v1906 = vadd.f32 %v1900, %v1905
        %v1907 = vld [vmem:[#allocation2 + $0x30] sm:$0xff]
        %v1908 = vld [vmem:[#allocation2 + $0x38] sm:$0xff]
        %v1909 = vld [vmem:[#allocation2 + $0x40] sm:$0xff]
        %v1910 = vld [vmem:[#allocation2 + $0x48] sm:$0xff]
        %v1911 = vld [vmem:[#allocation2 + $0x50] sm:$0xff]
        %v1912 = vpack.c.bf16 %v160, %v160
        %v1913 = vpack.c.bf16 %v1908, %v1907
        %v1914 = vpack.c.bf16 %v1910, %v1909
        %v1915 = vpack.c.bf16 %v1911, %v1911
        %v1916 = vld [vmem:[#allocation2 + $0x58] sm:$0x1]
        %v1917 = vlaneseq
        %v1918 = vshrl.u32 %v1917, 7
        %v1919 = vsub.s32 0, %v1918
        %v1920 = vrot.slane %v1916, %v1919
        %v1922 = vsel %vm175, %v1912, 0
        %v1925 = vsel %vm179, %v1915, 0
        %1927 = vmatprep.subr.bf16.mxu0 0
        %1928 = vmatpush1.bf16.msra.mxu0 0
        %1929 = vmatprep.subr.bf16.mxu0 0
        %1930 = vmatpush1.bf16.msra.mxu0 0
        %1931 = vmatprep.subr.bf16.mxu0 0
        %1932 = vmatpush1.bf16.msra.mxu0 0
        %1933 = vmatprep.subr.bf16.mxu0 0
        %1934 = vmatpush1.bf16.msra.mxu0 0
        %1935 = vmatprep.subr.bf16.mxu0 0
        %1936 = vmatpush1.bf16.msra.mxu0 0
        %1937 = vmatprep.subr.bf16.mxu0 0
        %1938 = vmatpush1.bf16.msra.mxu0 %v1925
        %1939 = vmatprep.subr.bf16.mxu0 0
        %1940 = vmatpush1.bf16.msra.mxu0 %v1914
        %1941 = vmatprep.subr.bf16.mxu0 0
        %1942 = vmatpush1.bf16.msra.mxu0 %v1913
        %1943 = vmatprep.subr.bf16.mxu0 0
        %1944 = vmatpush2.bf16.msra.mxu0 0
        %1945 = vmatprep.subr.bf16.mxu0 0
        %1946 = vmatpush2.bf16.msra.mxu0 0
        %1947 = vmatprep.subr.bf16.mxu0 0
        %1948 = vmatpush2.bf16.msra.mxu0 0
        %1949 = vmatprep.subr.bf16.mxu0 0
        %1950 = vmatpush2.bf16.msra.mxu0 0
        %1951 = vmatprep.subr.bf16.mxu0 0
        %1952 = vmatpush2.bf16.msra.mxu0 0
        %1953 = vmatprep.subr.bf16.mxu0 0
        %1954 = vmatpush2.bf16.msra.mxu0 0
        %1955 = vmatprep.subr.bf16.mxu0 0
        %1956 = vmatpush2.bf16.msra.mxu0 0
        %1957 = vmatprep.subr.bf16.mxu0 0
        %1958 = vmatpush2.bf16.msra.mxu0 0
        %1959 = vmatprep.mubr.bf16.mxu0 0
        %1960 = vmatmul.mubr.bf16.gmra.mxu0 %v1922
        %v1961 = vpop.f32.mrf.mxu0
        %v1962 = vadd.f32 %v1920, %v1961
        %v1963 = vpop.f32.mrf.mxu0
        %v1964 = vpop.f32.mrf.mxu0
        %v1965 = vpop.f32.mrf.mxu0
        %1966 = vdwg.mxu0
        %v1967 = vmax.f32 %v1962, 0.0
        %v1968 = vld [vmem:[#allocation2 + $0x68] sm:$0xff]
        %v1969 = vadd.f32 %v1967, %v1968
        %v1970 = vlaneseq
        %v1971 = vshrl.u32 %v1970, 7
        %v1972 = vlaneseq
        %v1973 = vand.u32 %v1972, 127
        %vm1974 = vcmp.le.s32.totalorder %v1973, %v1971
        %v1975 = vsel %vm1974, 0.0, -1e+30
        %v1976 = vld [vmem:[#allocation2 + $0x1c0] sm:$0xff]
        %v1977 = vld [vmem:[#allocation2 + $0x1c8] sm:$0xff]
        %v1978 = vld [vmem:[#allocation2 + $0x1d0] sm:$0xff]
        %v1979 = vld [vmem:[#allocation2 + $0x1d8] sm:$0xff]
        %v1980 = vld [vmem:[#allocation2 + $0x1e0] sm:$0x1]
        %v1981 = vpack.c.bf16 %v1969, %v1969
        %v1982 = vpack.c.bf16 %v1977, %v1976
        %v1983 = vpack.c.bf16 %v1979, %v1978
        %v1984 = vlaneseq
        %v1985 = vshrl.u32 %v1984, 7
        %v1986 = vsub.s32 0, %v1985
        %v1987 = vrot.slane %v1980, %v1986
        %v1989 = vsel %vm239, %v1981, 0
        %1991 = vmatprep.subr.bf16.mxu0 0
        %1992 = vmatpush1.bf16.msra.mxu0 0
        %1993 = vmatprep.subr.bf16.mxu0 0
        %1994 = vmatpush1.bf16.msra.mxu0 0
        %1995 = vmatprep.subr.bf16.mxu0 0
        %1996 = vmatpush1.bf16.msra.mxu0 0
        %1997 = vmatprep.subr.bf16.mxu0 0
        %1998 = vmatpush1.bf16.msra.mxu0 0
        %1999 = vmatprep.subr.bf16.mxu0 0
        %2000 = vmatpush1.bf16.msra.mxu0 0
        %2001 = vmatprep.subr.bf16.mxu0 0
        %2002 = vmatpush1.bf16.msra.mxu0 0
        %2003 = vmatprep.subr.bf16.mxu0 0
        %2004 = vmatpush1.bf16.msra.mxu0 %v1983
        %2005 = vmatprep.subr.bf16.mxu0 0
        %2006 = vmatpush1.bf16.msra.mxu0 %v1982
        %2007 = vmatprep.subr.bf16.mxu0 0
        %2008 = vmatpush2.bf16.msra.mxu0 0
        %2009 = vmatprep.subr.bf16.mxu0 0
        %2010 = vmatpush2.bf16.msra.mxu0 0
        %2011 = vmatprep.subr.bf16.mxu0 0
        %2012 = vmatpush2.bf16.msra.mxu0 0
        %2013 = vmatprep.subr.bf16.mxu0 0
        %2014 = vmatpush2.bf16.msra.mxu0 0
        %2015 = vmatprep.subr.bf16.mxu0 0
        %2016 = vmatpush2.bf16.msra.mxu0 0
        %2017 = vmatprep.subr.bf16.mxu0 0
        %2018 = vmatpush2.bf16.msra.mxu0 0
        %2019 = vmatprep.subr.bf16.mxu0 0
        %2020 = vmatpush2.bf16.msra.mxu0 0
        %2021 = vmatprep.subr.bf16.mxu0 0
        %2022 = vmatpush2.bf16.msra.mxu0 0
        %2023 = vmatprep.mubr.bf16.mxu0 0
        %2024 = vmatmul.mubr.bf16.gmra.mxu0 %v1989
        %v2025 = vpop.f32.mrf.mxu0
        %v2026 = vadd.f32 %v1987, %v2025
        %v2027 = vpop.f32.mrf.mxu0
        %v2028 = vpop.f32.mrf.mxu0
        %v2029 = vpop.f32.mrf.mxu0
        %2030 = vdwg.mxu0
        %v2031 = vld [vmem:[#allocation2 + $0x1e8] sm:$0xff]
        %v2032 = vld [vmem:[#allocation2 + $0x1f0] sm:$0xff]
        %v2033 = vld [vmem:[#allocation2 + $0x1f8] sm:$0xff]
        %v2034 = vld [vmem:[#allocation2 + $0x200] sm:$0xff]
        %v2035 = vpack.c.bf16 %v2026, %v2026
        %2037 = vrot.lane.b32.xlu0 %v2035, 96
        %v2038 = vpop.permute.xlu0 %2037
        %v2040 = vsel %vm291, %v2035, 0
        %v2043 = vsel %vm291, %v2038, 0
        %2045 = vmatprep.subr.bf16.mxu0 0
        %2046 = vmatpush1.bf16.xpose.msra.mxu0 0
        %2047 = vmatprep.subr.bf16.mxu0 0
        %2048 = vmatpush1.bf16.xpose.msra.mxu0 0
        %2049 = vmatprep.subr.bf16.mxu0 0
        %2050 = vmatpush1.bf16.xpose.msra.mxu0 0
        %2051 = vmatprep.subr.bf16.mxu0 0
        %2052 = vmatpush1.bf16.xpose.msra.mxu0 0
        %2053 = vmatprep.subr.bf16.mxu0 0
        %2054 = vmatpush1.bf16.xpose.msra.mxu0 0
        %2055 = vmatprep.subr.bf16.mxu0 0
        %2056 = vmatpush1.bf16.xpose.msra.mxu0 0
        %2057 = vmatprep.subr.bf16.mxu0 0
        %2058 = vmatpush1.bf16.xpose.msra.mxu0 0
        %2059 = vmatprep.subr.bf16.mxu0 0
        %2060 = vmatpush1.bf16.xpose.msra.mxu0 %v2043
        %2061 = vmatprep.subr.bf16.mxu0 0
        %2062 = vmatpush2.bf16.xpose.msra.mxu0 0
        %2063 = vmatprep.subr.bf16.mxu0 0
        %2064 = vmatpush2.bf16.xpose.msra.mxu0 0
        %2065 = vmatprep.subr.bf16.mxu0 0
        %2066 = vmatpush2.bf16.xpose.msra.mxu0 0
        %2067 = vmatprep.subr.bf16.mxu0 0
        %2068 = vmatpush2.bf16.xpose.msra.mxu0 0
        %2069 = vmatprep.subr.bf16.mxu0 0
        %2070 = vmatpush2.bf16.xpose.msra.mxu0 0
        %2071 = vmatprep.subr.bf16.mxu0 0
        %2072 = vmatpush2.bf16.xpose.msra.mxu0 0
        %2073 = vmatprep.subr.bf16.mxu0 0
        %2074 = vmatpush2.bf16.xpose.msra.mxu0 0
        %2075 = vmatprep.subr.bf16.mxu0 0
        %2076 = vmatpush2.bf16.xpose.msra.mxu0 0
        %2077 = vmatprep.mubr.bf16.mxu0 0
        %2078 = vmatmul.mubr.bf16.gmra.mxu0 %v2040
        %v2079 = vpop.f32.mrf.mxu0
        %v2080 = vadd.f32 0.0, %v2079
        %v2081 = vpop.f32.mrf.mxu0
        %v2082 = vpop.f32.mrf.mxu0
        %v2083 = vpop.f32.mrf.mxu0
        %2084 = vdwg.mxu0
        %v2085 = vmul.f32 %v2080, 0.35355338
        %v2086 = vadd.f32 %v2085, %v1975
        %v2087 = vsel %vm291, %v2086, -inf
        %2088 = vmax.xlane.f32.xlu0 %v2087
        %v2089 = vpop.xlane.xlu0 %2088
        %v2090 = vsub.f32 %v2086, %v2089
        %v2091 = vmul.f32 %v2090, 1.442695
        %v2092 = vpow.pop %v2091
        %v2093 = vsel %vm291, %v2092, 0.0
        %2094 = vadd.xlane.f32.xlu0 %v2093
        %v2095 = vpop.xlane.xlu0 %2094
        %v2096 = vrcp.pop %v2095
        %v2097 = vmul.f32 %v2092, %v2096
        %v2098 = vpack.c.bf16 %v2097, %v2097
        %2099 = vrot.lane.b32.xlu0 %v2035, 64
        %v2100 = vpop.permute.xlu0 %2099
        %v2102 = vsel %vm291, %v2098, 0
        %v2105 = vsel %vm179, %v2100, 0
        %2107 = vmatprep.subr.bf16.mxu0 0
        %2108 = vmatpush1.bf16.msra.mxu0 0
        %2109 = vmatprep.subr.bf16.mxu0 0
        %2110 = vmatpush1.bf16.msra.mxu0 0
        %2111 = vmatprep.subr.bf16.mxu0 0
        %2112 = vmatpush1.bf16.msra.mxu0 0
        %2113 = vmatprep.subr.bf16.mxu0 0
        %2114 = vmatpush1.bf16.msra.mxu0 0
        %2115 = vmatprep.subr.bf16.mxu0 0
        %2116 = vmatpush1.bf16.msra.mxu0 0
        %2117 = vmatprep.subr.bf16.mxu0 0
        %2118 = vmatpush1.bf16.msra.mxu0 0
        %2119 = vmatprep.subr.bf16.mxu0 0
        %2120 = vmatpush1.bf16.msra.mxu0 0
        %2121 = vmatprep.subr.bf16.mxu0 0
        %2122 = vmatpush1.bf16.msra.mxu0 %v2105
        %2123 = vmatprep.subr.bf16.mxu0 0
        %2124 = vmatpush2.bf16.msra.mxu0 0
        %2125 = vmatprep.subr.bf16.mxu0 0
        %2126 = vmatpush2.bf16.msra.mxu0 0
        %2127 = vmatprep.subr.bf16.mxu0 0
        %2128 = vmatpush2.bf16.msra.mxu0 0
        %2129 = vmatprep.subr.bf16.mxu0 0
        %2130 = vmatpush2.bf16.msra.mxu0 0
        %2131 = vmatprep.subr.bf16.mxu0 0
        %2132 = vmatpush2.bf16.msra.mxu0 0
        %2133 = vmatprep.subr.bf16.mxu0 0
        %2134 = vmatpush2.bf16.msra.mxu0 0
        %2135 = vmatprep.subr.bf16.mxu0 0
        %2136 = vmatpush2.bf16.msra.mxu0 0
        %2137 = vmatprep.subr.bf16.mxu0 0
        %2138 = vmatpush2.bf16.msra.mxu0 0
        %2139 = vmatprep.mubr.bf16.mxu0 0
        %2140 = vmatmul.mubr.bf16.gmra.mxu0 %v2102
        %v2141 = vpop.f32.mrf.mxu0
        %v2142 = vadd.f32 0.0, %v2141
        %v2143 = vpop.f32.mrf.mxu0
        %v2144 = vpop.f32.mrf.mxu0
        %v2145 = vpop.f32.mrf.mxu0
        %2146 = vdwg.mxu0
        %v2147 = vpack.c.bf16 %v2142, %v2142
        %v2148 = vpack.c.bf16 %v2031, %v2031
        %2149 = vrot.lane.b32.xlu0 %v2035, 120
        %v2150 = vpop.permute.xlu0 %2149
        %2151 = vrot.lane.b32.xlu0 %v2035, 88
        %v2152 = vpop.permute.xlu0 %2151
        %v2154 = vsel %vm291, %v2150, 0
        %v2157 = vsel %vm291, %v2152, 0
        %2159 = vmatprep.subr.bf16.mxu0 0
        %2160 = vmatpush1.bf16.xpose.msra.mxu0 0
        %2161 = vmatprep.subr.bf16.mxu0 0
        %2162 = vmatpush1.bf16.xpose.msra.mxu0 0
        %2163 = vmatprep.subr.bf16.mxu0 0
        %2164 = vmatpush1.bf16.xpose.msra.mxu0 0
        %2165 = vmatprep.subr.bf16.mxu0 0
        %2166 = vmatpush1.bf16.xpose.msra.mxu0 0
        %2167 = vmatprep.subr.bf16.mxu0 0
        %2168 = vmatpush1.bf16.xpose.msra.mxu0 0
        %2169 = vmatprep.subr.bf16.mxu0 0
        %2170 = vmatpush1.bf16.xpose.msra.mxu0 0
        %2171 = vmatprep.subr.bf16.mxu0 0
        %2172 = vmatpush1.bf16.xpose.msra.mxu0 0
        %2173 = vmatprep.subr.bf16.mxu0 0
        %2174 = vmatpush1.bf16.xpose.msra.mxu0 %v2157
        %2175 = vmatprep.subr.bf16.mxu0 0
        %2176 = vmatpush2.bf16.xpose.msra.mxu0 0
        %2177 = vmatprep.subr.bf16.mxu0 0
        %2178 = vmatpush2.bf16.xpose.msra.mxu0 0
        %2179 = vmatprep.subr.bf16.mxu0 0
        %2180 = vmatpush2.bf16.xpose.msra.mxu0 0
        %2181 = vmatprep.subr.bf16.mxu0 0
        %2182 = vmatpush2.bf16.xpose.msra.mxu0 0
        %2183 = vmatprep.subr.bf16.mxu0 0
        %2184 = vmatpush2.bf16.xpose.msra.mxu0 0
        %2185 = vmatprep.subr.bf16.mxu0 0
        %2186 = vmatpush2.bf16.xpose.msra.mxu0 0
        %2187 = vmatprep.subr.bf16.mxu0 0
        %2188 = vmatpush2.bf16.xpose.msra.mxu0 0
        %2189 = vmatprep.subr.bf16.mxu0 0
        %2190 = vmatpush2.bf16.xpose.msra.mxu0 0
        %2191 = vmatprep.mubr.bf16.mxu0 0
        %2192 = vmatmul.mubr.bf16.gmra.mxu0 %v2154
        %v2193 = vpop.f32.mrf.mxu0
        %v2194 = vadd.f32 0.0, %v2193
        %v2195 = vpop.f32.mrf.mxu0
        %v2196 = vpop.f32.mrf.mxu0
        %v2197 = vpop.f32.mrf.mxu0
        %2198 = vdwg.mxu0
        %v2199 = vmul.f32 %v2194, 0.35355338
        %v2200 = vadd.f32 %v2199, %v1975
        %v2201 = vsel %vm291, %v2200, -inf
        %2202 = vmax.xlane.f32.xlu0 %v2201
        %v2203 = vpop.xlane.xlu0 %2202
        %v2204 = vsub.f32 %v2200, %v2203
        %v2205 = vmul.f32 %v2204, 1.442695
        %v2206 = vpow.pop %v2205
        %v2207 = vsel %vm291, %v2206, 0.0
        %2208 = vadd.xlane.f32.xlu0 %v2207
        %v2209 = vpop.xlane.xlu0 %2208
        %v2210 = vrcp.pop %v2209
        %v2211 = vmul.f32 %v2206, %v2210
        %v2212 = vpack.c.bf16 %v2211, %v2211
        %2213 = vrot.lane.b32.xlu0 %v2035, 56
        %v2214 = vpop.permute.xlu0 %2213
        %v2216 = vsel %vm291, %v2212, 0
        %v2219 = vsel %vm179, %v2214, 0
        %2221 = vmatprep.subr.bf16.mxu0 0
        %2222 = vmatpush1.bf16.msra.mxu0 0
        %2223 = vmatprep.subr.bf16.mxu0 0
        %2224 = vmatpush1.bf16.msra.mxu0 0
        %2225 = vmatprep.subr.bf16.mxu0 0
        %2226 = vmatpush1.bf16.msra.mxu0 0
        %2227 = vmatprep.subr.bf16.mxu0 0
        %2228 = vmatpush1.bf16.msra.mxu0 0
        %2229 = vmatprep.subr.bf16.mxu0 0
        %2230 = vmatpush1.bf16.msra.mxu0 0
        %2231 = vmatprep.subr.bf16.mxu0 0
        %2232 = vmatpush1.bf16.msra.mxu0 0
        %2233 = vmatprep.subr.bf16.mxu0 0
        %2234 = vmatpush1.bf16.msra.mxu0 0
        %2235 = vmatprep.subr.bf16.mxu0 0
        %2236 = vmatpush1.bf16.msra.mxu0 %v2219
        %2237 = vmatprep.subr.bf16.mxu0 0
        %2238 = vmatpush2.bf16.msra.mxu0 0
        %2239 = vmatprep.subr.bf16.mxu0 0
        %2240 = vmatpush2.bf16.msra.mxu0 0
        %2241 = vmatprep.subr.bf16.mxu0 0
        %2242 = vmatpush2.bf16.msra.mxu0 0
        %2243 = vmatprep.subr.bf16.mxu0 0
        %2244 = vmatpush2.bf16.msra.mxu0 0
        %2245 = vmatprep.subr.bf16.mxu0 0
        %2246 = vmatpush2.bf16.msra.mxu0 0
        %2247 = vmatprep.subr.bf16.mxu0 0
        %2248 = vmatpush2.bf16.msra.mxu0 0
        %2249 = vmatprep.subr.bf16.mxu0 0
        %2250 = vmatpush2.bf16.msra.mxu0 0
        %2251 = vmatprep.subr.bf16.mxu0 0
        %2252 = vmatpush2.bf16.msra.mxu0 0
        %2253 = vmatprep.mubr.bf16.mxu0 0
        %2254 = vmatmul.mubr.bf16.gmra.mxu0 %v2216
        %v2255 = vpop.f32.mrf.mxu0
        %v2256 = vadd.f32 0.0, %v2255
        %v2257 = vpop.f32.mrf.mxu0
        %v2258 = vpop.f32.mrf.mxu0
        %v2259 = vpop.f32.mrf.mxu0
        %2260 = vdwg.mxu0
        %v2261 = vpack.c.bf16 %v2256, %v2256
        %v2262 = vpack.c.bf16 %v2032, %v2032
        %v2264 = vsel %vm291, %v2261, 0
        %v2267 = vsel %vm179, %v2262, 0
        %2269 = vmatprep.subr.bf16.mxu0 0
        %2270 = vmatpush1.bf16.msra.mxu0 0
        %2271 = vmatprep.subr.bf16.mxu0 0
        %2272 = vmatpush1.bf16.msra.mxu0 0
        %2273 = vmatprep.subr.bf16.mxu0 0
        %2274 = vmatpush1.bf16.msra.mxu0 0
        %2275 = vmatprep.subr.bf16.mxu0 0
        %2276 = vmatpush1.bf16.msra.mxu0 0
        %2277 = vmatprep.subr.bf16.mxu0 0
        %2278 = vmatpush1.bf16.msra.mxu0 0
        %2279 = vmatprep.subr.bf16.mxu0 0
        %2280 = vmatpush1.bf16.msra.mxu0 0
        %2281 = vmatprep.subr.bf16.mxu0 0
        %2282 = vmatpush1.bf16.msra.mxu0 0
        %2283 = vmatprep.subr.bf16.mxu0 0
        %2284 = vmatpush1.bf16.msra.mxu0 %v2267
        %2285 = vmatprep.subr.bf16.mxu0 0
        %2286 = vmatpush2.bf16.msra.mxu0 0
        %2287 = vmatprep.subr.bf16.mxu0 0
        %2288 = vmatpush2.bf16.msra.mxu0 0
        %2289 = vmatprep.subr.bf16.mxu0 0
        %2290 = vmatpush2.bf16.msra.mxu0 0
        %2291 = vmatprep.subr.bf16.mxu0 0
        %2292 = vmatpush2.bf16.msra.mxu0 0
        %2293 = vmatprep.subr.bf16.mxu0 0
        %2294 = vmatpush2.bf16.msra.mxu0 0
        %2295 = vmatprep.subr.bf16.mxu0 0
        %2296 = vmatpush2.bf16.msra.mxu0 0
        %2297 = vmatprep.subr.bf16.mxu0 0
        %2298 = vmatpush2.bf16.msra.mxu0 0
        %2299 = vmatprep.subr.bf16.mxu0 0
        %2300 = vmatpush2.bf16.msra.mxu0 0
        %2301 = vmatprep.mubr.bf16.mxu0 0
        %2302 = vmatmul.mubr.bf16.gmra.mxu0 %v2264
        %v2303 = vpop.f32.mrf.mxu0
        %v2304 = vadd.f32 0.0, %v2303
        %v2305 = vpop.f32.mrf.mxu0
        %v2306 = vpop.f32.mrf.mxu0
        %v2307 = vpop.f32.mrf.mxu0
        %2308 = vdwg.mxu0
        %v2310 = vsel %vm291, %v2147, 0
        %v2313 = vsel %vm179, %v2148, 0
        %2315 = vmatprep.subr.bf16.mxu0 0
        %2316 = vmatpush1.bf16.msra.mxu0 0
        %2317 = vmatprep.subr.bf16.mxu0 0
        %2318 = vmatpush1.bf16.msra.mxu0 0
        %2319 = vmatprep.subr.bf16.mxu0 0
        %2320 = vmatpush1.bf16.msra.mxu0 0
        %2321 = vmatprep.subr.bf16.mxu0 0
        %2322 = vmatpush1.bf16.msra.mxu0 0
        %2323 = vmatprep.subr.bf16.mxu0 0
        %2324 = vmatpush1.bf16.msra.mxu0 0
        %2325 = vmatprep.subr.bf16.mxu0 0
        %2326 = vmatpush1.bf16.msra.mxu0 0
        %2327 = vmatprep.subr.bf16.mxu0 0
        %2328 = vmatpush1.bf16.msra.mxu0 0
        %2329 = vmatprep.subr.bf16.mxu0 0
        %2330 = vmatpush1.bf16.msra.mxu0 %v2313
        %2331 = vmatprep.subr.bf16.mxu0 0
        %2332 = vmatpush2.bf16.msra.mxu0 0
        %2333 = vmatprep.subr.bf16.mxu0 0
        %2334 = vmatpush2.bf16.msra.mxu0 0
        %2335 = vmatprep.subr.bf16.mxu0 0
        %2336 = vmatpush2.bf16.msra.mxu0 0
        %2337 = vmatprep.subr.bf16.mxu0 0
        %2338 = vmatpush2.bf16.msra.mxu0 0
        %2339 = vmatprep.subr.bf16.mxu0 0
        %2340 = vmatpush2.bf16.msra.mxu0 0
        %2341 = vmatprep.subr.bf16.mxu0 0
        %2342 = vmatpush2.bf16.msra.mxu0 0
        %2343 = vmatprep.subr.bf16.mxu0 0
        %2344 = vmatpush2.bf16.msra.mxu0 0
        %2345 = vmatprep.subr.bf16.mxu0 0
        %2346 = vmatpush2.bf16.msra.mxu0 0
        %2347 = vmatprep.mubr.bf16.mxu0 0
        %2348 = vmatmul.mubr.bf16.gmra.mxu0 %v2310
        %v2349 = vpop.f32.mrf.mxu0
        %v2350 = vadd.f32 %v2304, %v2349
        %v2351 = vpop.f32.mrf.mxu0
        %v2352 = vpop.f32.mrf.mxu0
        %v2353 = vpop.f32.mrf.mxu0
        %2354 = vdwg.mxu0
        %2355 = vrot.lane.b32.xlu0 %v2035, 112
        %v2356 = vpop.permute.xlu0 %2355
        %2357 = vrot.lane.b32.xlu0 %v2035, 80
        %v2358 = vpop.permute.xlu0 %2357
        %v2360 = vsel %vm291, %v2356, 0
        %v2363 = vsel %vm291, %v2358, 0
        %2365 = vmatprep.subr.bf16.mxu0 0
        %2366 = vmatpush1.bf16.xpose.msra.mxu0 0
        %2367 = vmatprep.subr.bf16.mxu0 0
        %2368 = vmatpush1.bf16.xpose.msra.mxu0 0
        %2369 = vmatprep.subr.bf16.mxu0 0
        %2370 = vmatpush1.bf16.xpose.msra.mxu0 0
        %2371 = vmatprep.subr.bf16.mxu0 0
        %2372 = vmatpush1.bf16.xpose.msra.mxu0 0
        %2373 = vmatprep.subr.bf16.mxu0 0
        %2374 = vmatpush1.bf16.xpose.msra.mxu0 0
        %2375 = vmatprep.subr.bf16.mxu0 0
        %2376 = vmatpush1.bf16.xpose.msra.mxu0 0
        %2377 = vmatprep.subr.bf16.mxu0 0
        %2378 = vmatpush1.bf16.xpose.msra.mxu0 0
        %2379 = vmatprep.subr.bf16.mxu0 0
        %2380 = vmatpush1.bf16.xpose.msra.mxu0 %v2363
        %2381 = vmatprep.subr.bf16.mxu0 0
        %2382 = vmatpush2.bf16.xpose.msra.mxu0 0
        %2383 = vmatprep.subr.bf16.mxu0 0
        %2384 = vmatpush2.bf16.xpose.msra.mxu0 0
        %2385 = vmatprep.subr.bf16.mxu0 0
        %2386 = vmatpush2.bf16.xpose.msra.mxu0 0
        %2387 = vmatprep.subr.bf16.mxu0 0
        %2388 = vmatpush2.bf16.xpose.msra.mxu0 0
        %2389 = vmatprep.subr.bf16.mxu0 0
        %2390 = vmatpush2.bf16.xpose.msra.mxu0 0
        %2391 = vmatprep.subr.bf16.mxu0 0
        %2392 = vmatpush2.bf16.xpose.msra.mxu0 0
        %2393 = vmatprep.subr.bf16.mxu0 0
        %2394 = vmatpush2.bf16.xpose.msra.mxu0 0
        %2395 = vmatprep.subr.bf16.mxu0 0
        %2396 = vmatpush2.bf16.xpose.msra.mxu0 0
        %2397 = vmatprep.mubr.bf16.mxu0 0
        %2398 = vmatmul.mubr.bf16.gmra.mxu0 %v2360
        %v2399 = vpop.f32.mrf.mxu0
        %v2400 = vadd.f32 0.0, %v2399
        %v2401 = vpop.f32.mrf.mxu0
        %v2402 = vpop.f32.mrf.mxu0
        %v2403 = vpop.f32.mrf.mxu0
        %2404 = vdwg.mxu0
        %v2405 = vmul.f32 %v2400, 0.35355338
        %v2406 = vadd.f32 %v2405, %v1975
        %v2407 = vsel %vm291, %v2406, -inf
        %2408 = vmax.xlane.f32.xlu0 %v2407
        %v2409 = vpop.xlane.xlu0 %2408
        %v2410 = vsub.f32 %v2406, %v2409
        %v2411 = vmul.f32 %v2410, 1.442695
        %v2412 = vpow.pop %v2411
        %v2413 = vsel %vm291, %v2412, 0.0
        %2414 = vadd.xlane.f32.xlu0 %v2413
        %v2415 = vpop.xlane.xlu0 %2414
        %v2416 = vrcp.pop %v2415
        %v2417 = vmul.f32 %v2412, %v2416
        %v2418 = vpack.c.bf16 %v2417, %v2417
        %2419 = vrot.lane.b32.xlu0 %v2035, 48
        %v2420 = vpop.permute.xlu0 %2419
        %v2422 = vsel %vm291, %v2418, 0
        %v2425 = vsel %vm179, %v2420, 0
        %2427 = vmatprep.subr.bf16.mxu0 0
        %2428 = vmatpush1.bf16.msra.mxu0 0
        %2429 = vmatprep.subr.bf16.mxu0 0
        %2430 = vmatpush1.bf16.msra.mxu0 0
        %2431 = vmatprep.subr.bf16.mxu0 0
        %2432 = vmatpush1.bf16.msra.mxu0 0
        %2433 = vmatprep.subr.bf16.mxu0 0
        %2434 = vmatpush1.bf16.msra.mxu0 0
        %2435 = vmatprep.subr.bf16.mxu0 0
        %2436 = vmatpush1.bf16.msra.mxu0 0
        %2437 = vmatprep.subr.bf16.mxu0 0
        %2438 = vmatpush1.bf16.msra.mxu0 0
        %2439 = vmatprep.subr.bf16.mxu0 0
        %2440 = vmatpush1.bf16.msra.mxu0 0
        %2441 = vmatprep.subr.bf16.mxu0 0
        %2442 = vmatpush1.bf16.msra.mxu0 %v2425
        %2443 = vmatprep.subr.bf16.mxu0 0
        %2444 = vmatpush2.bf16.msra.mxu0 0
        %2445 = vmatprep.subr.bf16.mxu0 0
        %2446 = vmatpush2.bf16.msra.mxu0 0
        %2447 = vmatprep.subr.bf16.mxu0 0
        %2448 = vmatpush2.bf16.msra.mxu0 0
        %2449 = vmatprep.subr.bf16.mxu0 0
        %2450 = vmatpush2.bf16.msra.mxu0 0
        %2451 = vmatprep.subr.bf16.mxu0 0
        %2452 = vmatpush2.bf16.msra.mxu0 0
        %2453 = vmatprep.subr.bf16.mxu0 0
        %2454 = vmatpush2.bf16.msra.mxu0 0
        %2455 = vmatprep.subr.bf16.mxu0 0
        %2456 = vmatpush2.bf16.msra.mxu0 0
        %2457 = vmatprep.subr.bf16.mxu0 0
        %2458 = vmatpush2.bf16.msra.mxu0 0
        %2459 = vmatprep.mubr.bf16.mxu0 0
        %2460 = vmatmul.mubr.bf16.gmra.mxu0 %v2422
        %v2461 = vpop.f32.mrf.mxu0
        %v2462 = vadd.f32 0.0, %v2461
        %v2463 = vpop.f32.mrf.mxu0
        %v2464 = vpop.f32.mrf.mxu0
        %v2465 = vpop.f32.mrf.mxu0
        %2466 = vdwg.mxu0
        %v2467 = vpack.c.bf16 %v2462, %v2462
        %v2468 = vpack.c.bf16 %v2033, %v2033
        %v2470 = vsel %vm291, %v2467, 0
        %v2473 = vsel %vm179, %v2468, 0
        %2475 = vmatprep.subr.bf16.mxu0 0
        %2476 = vmatpush1.bf16.msra.mxu0 0
        %2477 = vmatprep.subr.bf16.mxu0 0
        %2478 = vmatpush1.bf16.msra.mxu0 0
        %2479 = vmatprep.subr.bf16.mxu0 0
        %2480 = vmatpush1.bf16.msra.mxu0 0
        %2481 = vmatprep.subr.bf16.mxu0 0
        %2482 = vmatpush1.bf16.msra.mxu0 0
        %2483 = vmatprep.subr.bf16.mxu0 0
        %2484 = vmatpush1.bf16.msra.mxu0 0
        %2485 = vmatprep.subr.bf16.mxu0 0
        %2486 = vmatpush1.bf16.msra.mxu0 0
        %2487 = vmatprep.subr.bf16.mxu0 0
        %2488 = vmatpush1.bf16.msra.mxu0 0
        %2489 = vmatprep.subr.bf16.mxu0 0
        %2490 = vmatpush1.bf16.msra.mxu0 %v2473
        %2491 = vmatprep.subr.bf16.mxu0 0
        %2492 = vmatpush2.bf16.msra.mxu0 0
        %2493 = vmatprep.subr.bf16.mxu0 0
        %2494 = vmatpush2.bf16.msra.mxu0 0
        %2495 = vmatprep.subr.bf16.mxu0 0
        %2496 = vmatpush2.bf16.msra.mxu0 0
        %2497 = vmatprep.subr.bf16.mxu0 0
        %2498 = vmatpush2.bf16.msra.mxu0 0
        %2499 = vmatprep.subr.bf16.mxu0 0
        %2500 = vmatpush2.bf16.msra.mxu0 0
        %2501 = vmatprep.subr.bf16.mxu0 0
        %2502 = vmatpush2.bf16.msra.mxu0 0
        %2503 = vmatprep.subr.bf16.mxu0 0
        %2504 = vmatpush2.bf16.msra.mxu0 0
        %2505 = vmatprep.subr.bf16.mxu0 0
        %2506 = vmatpush2.bf16.msra.mxu0 0
        %2507 = vmatprep.mubr.bf16.mxu0 0
        %2508 = vmatmul.mubr.bf16.gmra.mxu0 %v2470
        %v2509 = vpop.f32.mrf.mxu0
        %v2510 = vadd.f32 0.0, %v2509
        %v2511 = vpop.f32.mrf.mxu0
        %v2512 = vpop.f32.mrf.mxu0
        %v2513 = vpop.f32.mrf.mxu0
        %2514 = vdwg.mxu0
        %v2515 = vadd.f32 %v2350, %v2510
        %2516 = vrot.lane.b32.xlu0 %v2035, 104
        %v2517 = vpop.permute.xlu0 %2516
        %2518 = vrot.lane.b32.xlu0 %v2035, 72
        %v2519 = vpop.permute.xlu0 %2518
        %v2521 = vsel %vm291, %v2517, 0
        %v2524 = vsel %vm291, %v2519, 0
        %2526 = vmatprep.subr.bf16.mxu0 0
        %2527 = vmatpush1.bf16.xpose.msra.mxu0 0
        %2528 = vmatprep.subr.bf16.mxu0 0
        %2529 = vmatpush1.bf16.xpose.msra.mxu0 0
        %2530 = vmatprep.subr.bf16.mxu0 0
        %2531 = vmatpush1.bf16.xpose.msra.mxu0 0
        %2532 = vmatprep.subr.bf16.mxu0 0
        %2533 = vmatpush1.bf16.xpose.msra.mxu0 0
        %2534 = vmatprep.subr.bf16.mxu0 0
        %2535 = vmatpush1.bf16.xpose.msra.mxu0 0
        %2536 = vmatprep.subr.bf16.mxu0 0
        %2537 = vmatpush1.bf16.xpose.msra.mxu0 0
        %2538 = vmatprep.subr.bf16.mxu0 0
        %2539 = vmatpush1.bf16.xpose.msra.mxu0 0
        %2540 = vmatprep.subr.bf16.mxu0 0
        %2541 = vmatpush1.bf16.xpose.msra.mxu0 %v2524
        %2542 = vmatprep.subr.bf16.mxu0 0
        %2543 = vmatpush2.bf16.xpose.msra.mxu0 0
        %2544 = vmatprep.subr.bf16.mxu0 0
        %2545 = vmatpush2.bf16.xpose.msra.mxu0 0
        %2546 = vmatprep.subr.bf16.mxu0 0
        %2547 = vmatpush2.bf16.xpose.msra.mxu0 0
        %2548 = vmatprep.subr.bf16.mxu0 0
        %2549 = vmatpush2.bf16.xpose.msra.mxu0 0
        %2550 = vmatprep.subr.bf16.mxu0 0
        %2551 = vmatpush2.bf16.xpose.msra.mxu0 0
        %2552 = vmatprep.subr.bf16.mxu0 0
        %2553 = vmatpush2.bf16.xpose.msra.mxu0 0
        %2554 = vmatprep.subr.bf16.mxu0 0
        %2555 = vmatpush2.bf16.xpose.msra.mxu0 0
        %2556 = vmatprep.subr.bf16.mxu0 0
        %2557 = vmatpush2.bf16.xpose.msra.mxu0 0
        %2558 = vmatprep.mubr.bf16.mxu0 0
        %2559 = vmatmul.mubr.bf16.gmra.mxu0 %v2521
        %v2560 = vpop.f32.mrf.mxu0
        %v2561 = vadd.f32 0.0, %v2560
        %v2562 = vpop.f32.mrf.mxu0
        %v2563 = vpop.f32.mrf.mxu0
        %v2564 = vpop.f32.mrf.mxu0
        %2565 = vdwg.mxu0
        %v2566 = vmul.f32 %v2561, 0.35355338
        %v2567 = vadd.f32 %v2566, %v1975
        %v2568 = vsel %vm291, %v2567, -inf
        %2569 = vmax.xlane.f32.xlu0 %v2568
        %v2570 = vpop.xlane.xlu0 %2569
        %v2571 = vsub.f32 %v2567, %v2570
        %v2572 = vmul.f32 %v2571, 1.442695
        %v2573 = vpow.pop %v2572
        %v2574 = vsel %vm291, %v2573, 0.0
        %2575 = vadd.xlane.f32.xlu0 %v2574
        %v2576 = vpop.xlane.xlu0 %2575
        %v2577 = vrcp.pop %v2576
        %v2578 = vmul.f32 %v2573, %v2577
        %v2579 = vpack.c.bf16 %v2578, %v2578
        %2580 = vrot.lane.b32.xlu0 %v2035, 40
        %v2581 = vpop.permute.xlu0 %2580
        %v2583 = vsel %vm291, %v2579, 0
        %v2586 = vsel %vm179, %v2581, 0
        %2588 = vmatprep.subr.bf16.mxu0 0
        %2589 = vmatpush1.bf16.msra.mxu0 0
        %2590 = vmatprep.subr.bf16.mxu0 0
        %2591 = vmatpush1.bf16.msra.mxu0 0
        %2592 = vmatprep.subr.bf16.mxu0 0
        %2593 = vmatpush1.bf16.msra.mxu0 0
        %2594 = vmatprep.subr.bf16.mxu0 0
        %2595 = vmatpush1.bf16.msra.mxu0 0
        %2596 = vmatprep.subr.bf16.mxu0 0
        %2597 = vmatpush1.bf16.msra.mxu0 0
        %2598 = vmatprep.subr.bf16.mxu0 0
        %2599 = vmatpush1.bf16.msra.mxu0 0
        %2600 = vmatprep.subr.bf16.mxu0 0
        %2601 = vmatpush1.bf16.msra.mxu0 0
        %2602 = vmatprep.subr.bf16.mxu0 0
        %2603 = vmatpush1.bf16.msra.mxu0 %v2586
        %2604 = vmatprep.subr.bf16.mxu0 0
        %2605 = vmatpush2.bf16.msra.mxu0 0
        %2606 = vmatprep.subr.bf16.mxu0 0
        %2607 = vmatpush2.bf16.msra.mxu0 0
        %2608 = vmatprep.subr.bf16.mxu0 0
        %2609 = vmatpush2.bf16.msra.mxu0 0
        %2610 = vmatprep.subr.bf16.mxu0 0
        %2611 = vmatpush2.bf16.msra.mxu0 0
        %2612 = vmatprep.subr.bf16.mxu0 0
        %2613 = vmatpush2.bf16.msra.mxu0 0
        %2614 = vmatprep.subr.bf16.mxu0 0
        %2615 = vmatpush2.bf16.msra.mxu0 0
        %2616 = vmatprep.subr.bf16.mxu0 0
        %2617 = vmatpush2.bf16.msra.mxu0 0
        %2618 = vmatprep.subr.bf16.mxu0 0
        %2619 = vmatpush2.bf16.msra.mxu0 0
        %2620 = vmatprep.mubr.bf16.mxu0 0
        %2621 = vmatmul.mubr.bf16.gmra.mxu0 %v2583
        %v2622 = vpop.f32.mrf.mxu0
        %v2623 = vadd.f32 0.0, %v2622
        %v2624 = vpop.f32.mrf.mxu0
        %v2625 = vpop.f32.mrf.mxu0
        %v2626 = vpop.f32.mrf.mxu0
        %2627 = vdwg.mxu0
        %v2628 = vpack.c.bf16 %v2623, %v2623
        %v2629 = vpack.c.bf16 %v2034, %v2034
        %v2631 = vsel %vm291, %v2628, 0
        %v2634 = vsel %vm179, %v2629, 0
        %2636 = vmatprep.subr.bf16.mxu0 0
        %2637 = vmatpush1.bf16.msra.mxu0 0
        %2638 = vmatprep.subr.bf16.mxu0 0
        %2639 = vmatpush1.bf16.msra.mxu0 0
        %2640 = vmatprep.subr.bf16.mxu0 0
        %2641 = vmatpush1.bf16.msra.mxu0 0
        %2642 = vmatprep.subr.bf16.mxu0 0
        %2643 = vmatpush1.bf16.msra.mxu0 0
        %2644 = vmatprep.subr.bf16.mxu0 0
        %2645 = vmatpush1.bf16.msra.mxu0 0
        %2646 = vmatprep.subr.bf16.mxu0 0
        %2647 = vmatpush1.bf16.msra.mxu0 0
        %2648 = vmatprep.subr.bf16.mxu0 0
        %2649 = vmatpush1.bf16.msra.mxu0 0
        %2650 = vmatprep.subr.bf16.mxu0 0
        %2651 = vmatpush1.bf16.msra.mxu0 %v2634
        %2652 = vmatprep.subr.bf16.mxu0 0
        %2653 = vmatpush2.bf16.msra.mxu0 0
        %2654 = vmatprep.subr.bf16.mxu0 0
        %2655 = vmatpush2.bf16.msra.mxu0 0
        %2656 = vmatprep.subr.bf16.mxu0 0
        %2657 = vmatpush2.bf16.msra.mxu0 0
        %2658 = vmatprep.subr.bf16.mxu0 0
        %2659 = vmatpush2.bf16.msra.mxu0 0
        %2660 = vmatprep.subr.bf16.mxu0 0
        %2661 = vmatpush2.bf16.msra.mxu0 0
        %2662 = vmatprep.subr.bf16.mxu0 0
        %2663 = vmatpush2.bf16.msra.mxu0 0
        %2664 = vmatprep.subr.bf16.mxu0 0
        %2665 = vmatpush2.bf16.msra.mxu0 0
        %2666 = vmatprep.subr.bf16.mxu0 0
        %2667 = vmatpush2.bf16.msra.mxu0 0
        %2668 = vmatprep.mubr.bf16.mxu0 0
        %2669 = vmatmul.mubr.bf16.gmra.mxu0 %v2631
        %v2670 = vpop.f32.mrf.mxu0
        %v2671 = vadd.f32 0.0, %v2670
        %v2672 = vpop.f32.mrf.mxu0
        %v2673 = vpop.f32.mrf.mxu0
        %v2674 = vpop.f32.mrf.mxu0
        %2675 = vdwg.mxu0
        %v2676 = vadd.f32 %v2515, %v2671
        %v2677 = vld [vmem:[#allocation2 + $0x208] sm:$0x1]
        %v2678 = vlaneseq
        %v2679 = vshrl.u32 %v2678, 7
        %v2680 = vsub.s32 0, %v2679
        %v2681 = vrot.slane %v2677, %v2680
        %v2682 = vadd.f32 %v2676, %v2681
        %v2683 = vadd.f32 %v1969, %v2682
        %v2684 = vsel %vm239, %v2683, 0.0
        %2685 = vadd.xlane.f32.xlu0 %v2684
        %v2686 = vpop.xlane.xlu0 %2685
        %v2687 = vmul.f32 %v2686, %v936
        %v2688 = vsub.f32 %v2683, %v2687
        %v2689 = vmul.f32 %v2688, %v2688
        %v2690 = vsel %vm239, %v2689, 0.0
        %2691 = vadd.xlane.f32.xlu0 %v2690
        %v2692 = vpop.xlane.xlu0 %2691
        %v2693 = vmul.f32 %v2692, %v936
        %v2694 = vadd.f32 %v2693, 1e-05
        %v2695 = vrsqrt.pop %v2694
        %v2696 = vmul.f32 %v2688, %v2695
        %v2697 = vld [vmem:[#allocation2 + $0x260] sm:$0x1]
        %v2698 = vlaneseq
        %v2699 = vshrl.u32 %v2698, 7
        %v2700 = vsub.s32 0, %v2699
        %v2701 = vrot.slane %v2697, %v2700
        %v2702 = vmul.f32 %v2696, %v2701
        %v2703 = vld [vmem:[#allocation2 + $0x268] sm:$0x1]
        %v2704 = vlaneseq
        %v2705 = vshrl.u32 %v2704, 7
        %v2706 = vsub.s32 0, %v2705
        %v2707 = vrot.slane %v2703, %v2706
        %v2708 = vadd.f32 %v2702, %v2707
        %v2709 = vld [vmem:[#allocation2 + $0x210] sm:$0xff]
        %v2710 = vld [vmem:[#allocation2 + $0x218] sm:$0xff]
        %v2711 = vld [vmem:[#allocation2 + $0x220] sm:$0xff]
        %v2712 = vld [vmem:[#allocation2 + $0x228] sm:$0xff]
        %v2713 = vld [vmem:[#allocation2 + $0x230] sm:$0x1]
        %v2714 = vpack.c.bf16 %v2708, %v2708
        %v2715 = vpack.c.bf16 %v2710, %v2709
        %v2716 = vpack.c.bf16 %v2712, %v2711
        %v2717 = vlaneseq
        %v2718 = vshrl.u32 %v2717, 7
        %v2719 = vsub.s32 0, %v2718
        %v2720 = vrot.slane %v2713, %v2719
        %v2722 = vsel %vm239, %v2714, 0
        %2724 = vmatprep.subr.bf16.mxu0 0
        %2725 = vmatpush1.bf16.msra.mxu0 0
        %2726 = vmatprep.subr.bf16.mxu0 0
        %2727 = vmatpush1.bf16.msra.mxu0 0
        %2728 = vmatprep.subr.bf16.mxu0 0
        %2729 = vmatpush1.bf16.msra.mxu0 0
        %2730 = vmatprep.subr.bf16.mxu0 0
        %2731 = vmatpush1.bf16.msra.mxu0 0
        %2732 = vmatprep.subr.bf16.mxu0 0
        %2733 = vmatpush1.bf16.msra.mxu0 0
        %2734 = vmatprep.subr.bf16.mxu0 0
        %2735 = vmatpush1.bf16.msra.mxu0 0
        %2736 = vmatprep.subr.bf16.mxu0 0
        %2737 = vmatpush1.bf16.msra.mxu0 %v2716
        %2738 = vmatprep.subr.bf16.mxu0 0
        %2739 = vmatpush1.bf16.msra.mxu0 %v2715
        %2740 = vmatprep.subr.bf16.mxu0 0
        %2741 = vmatpush2.bf16.msra.mxu0 0
        %2742 = vmatprep.subr.bf16.mxu0 0
        %2743 = vmatpush2.bf16.msra.mxu0 0
        %2744 = vmatprep.subr.bf16.mxu0 0
        %2745 = vmatpush2.bf16.msra.mxu0 0
        %2746 = vmatprep.subr.bf16.mxu0 0
        %2747 = vmatpush2.bf16.msra.mxu0 0
        %2748 = vmatprep.subr.bf16.mxu0 0
        %2749 = vmatpush2.bf16.msra.mxu0 0
        %2750 = vmatprep.subr.bf16.mxu0 0
        %2751 = vmatpush2.bf16.msra.mxu0 0
        %2752 = vmatprep.subr.bf16.mxu0 0
        %2753 = vmatpush2.bf16.msra.mxu0 0
        %2754 = vmatprep.subr.bf16.mxu0 0
        %2755 = vmatpush2.bf16.msra.mxu0 0
        %2756 = vmatprep.mubr.bf16.mxu0 0
        %2757 = vmatmul.mubr.bf16.gmra.mxu0 %v2722
        %v2758 = vpop.f32.mrf.mxu0
        %v2759 = vadd.f32 %v2720, %v2758
        %v2760 = vpop.f32.mrf.mxu0
        %v2761 = vpop.f32.mrf.mxu0
        %v2762 = vpop.f32.mrf.mxu0
        %2763 = vdwg.mxu0
        %v2764 = vpack.c.bf16 %v1906, %v1906
        %2767 = vrot.lane.b32.xlu0 %v2715, 96
        %v2768 = vpop.permute.xlu0 %2767
        %2769 = vrot.lane.b32.xlu0 %v2716, 96
        %v2770 = vpop.permute.xlu0 %2769
        %2774 = vrot.lane.b32.xlu0 %v2720, 96
        %v2775 = vpop.permute.xlu0 %2774
        %v2778 = vsel %vm239, %v2764, 0
        %2780 = vmatprep.subr.bf16.mxu0 0
        %2781 = vmatpush1.bf16.msra.mxu0 0
        %2782 = vmatprep.subr.bf16.mxu0 0
        %2783 = vmatpush1.bf16.msra.mxu0 0
        %2784 = vmatprep.subr.bf16.mxu0 0
        %2785 = vmatpush1.bf16.msra.mxu0 0
        %2786 = vmatprep.subr.bf16.mxu0 0
        %2787 = vmatpush1.bf16.msra.mxu0 0
        %2788 = vmatprep.subr.bf16.mxu0 0
        %2789 = vmatpush1.bf16.msra.mxu0 0
        %2790 = vmatprep.subr.bf16.mxu0 0
        %2791 = vmatpush1.bf16.msra.mxu0 0
        %2792 = vmatprep.subr.bf16.mxu0 0
        %2793 = vmatpush1.bf16.msra.mxu0 %v2770
        %2794 = vmatprep.subr.bf16.mxu0 0
        %2795 = vmatpush1.bf16.msra.mxu0 %v2768
        %2796 = vmatprep.subr.bf16.mxu0 0
        %2797 = vmatpush2.bf16.msra.mxu0 0
        %2798 = vmatprep.subr.bf16.mxu0 0
        %2799 = vmatpush2.bf16.msra.mxu0 0
        %2800 = vmatprep.subr.bf16.mxu0 0
        %2801 = vmatpush2.bf16.msra.mxu0 0
        %2802 = vmatprep.subr.bf16.mxu0 0
        %2803 = vmatpush2.bf16.msra.mxu0 0
        %2804 = vmatprep.subr.bf16.mxu0 0
        %2805 = vmatpush2.bf16.msra.mxu0 0
        %2806 = vmatprep.subr.bf16.mxu0 0
        %2807 = vmatpush2.bf16.msra.mxu0 0
        %2808 = vmatprep.subr.bf16.mxu0 0
        %2809 = vmatpush2.bf16.msra.mxu0 0
        %2810 = vmatprep.subr.bf16.mxu0 0
        %2811 = vmatpush2.bf16.msra.mxu0 0
        %2812 = vmatprep.mubr.bf16.mxu0 0
        %2813 = vmatmul.mubr.bf16.gmra.mxu0 %v2778
        %v2814 = vpop.f32.mrf.mxu0
        %v2815 = vadd.f32 %v2775, %v2814
        %v2816 = vpop.f32.mrf.mxu0
        %v2817 = vpop.f32.mrf.mxu0
        %v2818 = vpop.f32.mrf.mxu0
        %2819 = vdwg.mxu0
        %v2820 = vld [vmem:[#allocation2 + $0x238] sm:$0xff]
        %v2821 = vld [vmem:[#allocation2 + $0x240] sm:$0xff]
        %v2822 = vld [vmem:[#allocation2 + $0x248] sm:$0xff]
        %v2823 = vld [vmem:[#allocation2 + $0x250] sm:$0xff]
        %v2824 = vpack.c.bf16 %v2759, %v2759
        %v2825 = vpack.c.bf16 %v2815, %v2815
        %v2827 = vsel %vm291, %v2824, 0
        %v2830 = vsel %vm291, %v2825, 0
        %2832 = vmatprep.subr.bf16.mxu0 0
        %2833 = vmatpush1.bf16.xpose.msra.mxu0 0
        %2834 = vmatprep.subr.bf16.mxu0 0
        %2835 = vmatpush1.bf16.xpose.msra.mxu0 0
        %2836 = vmatprep.subr.bf16.mxu0 0
        %2837 = vmatpush1.bf16.xpose.msra.mxu0 0
        %2838 = vmatprep.subr.bf16.mxu0 0
        %2839 = vmatpush1.bf16.xpose.msra.mxu0 0
        %2840 = vmatprep.subr.bf16.mxu0 0
        %2841 = vmatpush1.bf16.xpose.msra.mxu0 0
        %2842 = vmatprep.subr.bf16.mxu0 0
        %2843 = vmatpush1.bf16.xpose.msra.mxu0 0
        %2844 = vmatprep.subr.bf16.mxu0 0
        %2845 = vmatpush1.bf16.xpose.msra.mxu0 0
        %2846 = vmatprep.subr.bf16.mxu0 0
        %2847 = vmatpush1.bf16.xpose.msra.mxu0 %v2830
        %2848 = vmatprep.subr.bf16.mxu0 0
        %2849 = vmatpush2.bf16.xpose.msra.mxu0 0
        %2850 = vmatprep.subr.bf16.mxu0 0
        %2851 = vmatpush2.bf16.xpose.msra.mxu0 0
        %2852 = vmatprep.subr.bf16.mxu0 0
        %2853 = vmatpush2.bf16.xpose.msra.mxu0 0
        %2854 = vmatprep.subr.bf16.mxu0 0
        %2855 = vmatpush2.bf16.xpose.msra.mxu0 0
        %2856 = vmatprep.subr.bf16.mxu0 0
        %2857 = vmatpush2.bf16.xpose.msra.mxu0 0
        %2858 = vmatprep.subr.bf16.mxu0 0
        %2859 = vmatpush2.bf16.xpose.msra.mxu0 0
        %2860 = vmatprep.subr.bf16.mxu0 0
        %2861 = vmatpush2.bf16.xpose.msra.mxu0 0
        %2862 = vmatprep.subr.bf16.mxu0 0
        %2863 = vmatpush2.bf16.xpose.msra.mxu0 0
        %2864 = vmatprep.mubr.bf16.mxu0 0
        %2865 = vmatmul.mubr.bf16.gmra.mxu0 %v2827
        %v2866 = vpop.f32.mrf.mxu0
        %v2867 = vadd.f32 0.0, %v2866
        %v2868 = vpop.f32.mrf.mxu0
        %v2869 = vpop.f32.mrf.mxu0
        %v2870 = vpop.f32.mrf.mxu0
        %2871 = vdwg.mxu0
        %v2872 = vmul.f32 %v2867, 0.35355338
        %v2873 = vsel %vm291, %v2872, -inf
        %2874 = vmax.xlane.f32.xlu0 %v2873
        %v2875 = vpop.xlane.xlu0 %2874
        %v2876 = vsub.f32 %v2872, %v2875
        %v2877 = vmul.f32 %v2876, 1.442695
        %v2878 = vpow.pop %v2877
        %v2879 = vsel %vm291, %v2878, 0.0
        %2880 = vadd.xlane.f32.xlu0 %v2879
        %v2881 = vpop.xlane.xlu0 %2880
        %v2882 = vrcp.pop %v2881
        %v2883 = vmul.f32 %v2878, %v2882
        %v2884 = vpack.c.bf16 %v2883, %v2883
        %2886 = vrot.lane.b32.xlu0 %v2825, 96
        %v2887 = vpop.permute.xlu0 %2886
        %v2889 = vsel %vm291, %v2884, 0
        %v2892 = vsel %vm179, %v2887, 0
        %2894 = vmatprep.subr.bf16.mxu0 0
        %2895 = vmatpush1.bf16.msra.mxu0 0
        %2896 = vmatprep.subr.bf16.mxu0 0
        %2897 = vmatpush1.bf16.msra.mxu0 0
        %2898 = vmatprep.subr.bf16.mxu0 0
        %2899 = vmatpush1.bf16.msra.mxu0 0
        %2900 = vmatprep.subr.bf16.mxu0 0
        %2901 = vmatpush1.bf16.msra.mxu0 0
        %2902 = vmatprep.subr.bf16.mxu0 0
        %2903 = vmatpush1.bf16.msra.mxu0 0
        %2904 = vmatprep.subr.bf16.mxu0 0
        %2905 = vmatpush1.bf16.msra.mxu0 0
        %2906 = vmatprep.subr.bf16.mxu0 0
        %2907 = vmatpush1.bf16.msra.mxu0 0
        %2908 = vmatprep.subr.bf16.mxu0 0
        %2909 = vmatpush1.bf16.msra.mxu0 %v2892
        %2910 = vmatprep.subr.bf16.mxu0 0
        %2911 = vmatpush2.bf16.msra.mxu0 0
        %2912 = vmatprep.subr.bf16.mxu0 0
        %2913 = vmatpush2.bf16.msra.mxu0 0
        %2914 = vmatprep.subr.bf16.mxu0 0
        %2915 = vmatpush2.bf16.msra.mxu0 0
        %2916 = vmatprep.subr.bf16.mxu0 0
        %2917 = vmatpush2.bf16.msra.mxu0 0
        %2918 = vmatprep.subr.bf16.mxu0 0
        %2919 = vmatpush2.bf16.msra.mxu0 0
        %2920 = vmatprep.subr.bf16.mxu0 0
        %2921 = vmatpush2.bf16.msra.mxu0 0
        %2922 = vmatprep.subr.bf16.mxu0 0
        %2923 = vmatpush2.bf16.msra.mxu0 0
        %2924 = vmatprep.subr.bf16.mxu0 0
        %2925 = vmatpush2.bf16.msra.mxu0 0
        %2926 = vmatprep.mubr.bf16.mxu0 0
        %2927 = vmatmul.mubr.bf16.gmra.mxu0 %v2889
        %v2928 = vpop.f32.mrf.mxu0
        %v2929 = vadd.f32 0.0, %v2928
        %v2930 = vpop.f32.mrf.mxu0
        %v2931 = vpop.f32.mrf.mxu0
        %v2932 = vpop.f32.mrf.mxu0
        %2933 = vdwg.mxu0
        %v2934 = vpack.c.bf16 %v2929, %v2929
        %v2935 = vpack.c.bf16 %v2820, %v2820
        %2937 = vrot.lane.b32.xlu0 %v2824, 120
        %v2938 = vpop.permute.xlu0 %2937
        %2939 = vrot.lane.b32.xlu0 %v2825, 120
        %v2940 = vpop.permute.xlu0 %2939
        %v2942 = vsel %vm291, %v2938, 0
        %v2945 = vsel %vm291, %v2940, 0
        %2947 = vmatprep.subr.bf16.mxu0 0
        %2948 = vmatpush1.bf16.xpose.msra.mxu0 0
        %2949 = vmatprep.subr.bf16.mxu0 0
        %2950 = vmatpush1.bf16.xpose.msra.mxu0 0
        %2951 = vmatprep.subr.bf16.mxu0 0
        %2952 = vmatpush1.bf16.xpose.msra.mxu0 0
        %2953 = vmatprep.subr.bf16.mxu0 0
        %2954 = vmatpush1.bf16.xpose.msra.mxu0 0
        %2955 = vmatprep.subr.bf16.mxu0 0
        %2956 = vmatpush1.bf16.xpose.msra.mxu0 0
        %2957 = vmatprep.subr.bf16.mxu0 0
        %2958 = vmatpush1.bf16.xpose.msra.mxu0 0
        %2959 = vmatprep.subr.bf16.mxu0 0
        %2960 = vmatpush1.bf16.xpose.msra.mxu0 0
        %2961 = vmatprep.subr.bf16.mxu0 0
        %2962 = vmatpush1.bf16.xpose.msra.mxu0 %v2945
        %2963 = vmatprep.subr.bf16.mxu0 0
        %2964 = vmatpush2.bf16.xpose.msra.mxu0 0
        %2965 = vmatprep.subr.bf16.mxu0 0
        %2966 = vmatpush2.bf16.xpose.msra.mxu0 0
        %2967 = vmatprep.subr.bf16.mxu0 0
        %2968 = vmatpush2.bf16.xpose.msra.mxu0 0
        %2969 = vmatprep.subr.bf16.mxu0 0
        %2970 = vmatpush2.bf16.xpose.msra.mxu0 0
        %2971 = vmatprep.subr.bf16.mxu0 0
        %2972 = vmatpush2.bf16.xpose.msra.mxu0 0
        %2973 = vmatprep.subr.bf16.mxu0 0
        %2974 = vmatpush2.bf16.xpose.msra.mxu0 0
        %2975 = vmatprep.subr.bf16.mxu0 0
        %2976 = vmatpush2.bf16.xpose.msra.mxu0 0
        %2977 = vmatprep.subr.bf16.mxu0 0
        %2978 = vmatpush2.bf16.xpose.msra.mxu0 0
        %2979 = vmatprep.mubr.bf16.mxu0 0
        %2980 = vmatmul.mubr.bf16.gmra.mxu0 %v2942
        %v2981 = vpop.f32.mrf.mxu0
        %v2982 = vadd.f32 0.0, %v2981
        %v2983 = vpop.f32.mrf.mxu0
        %v2984 = vpop.f32.mrf.mxu0
        %v2985 = vpop.f32.mrf.mxu0
        %2986 = vdwg.mxu0
        %v2987 = vmul.f32 %v2982, 0.35355338
        %v2988 = vsel %vm291, %v2987, -inf
        %2989 = vmax.xlane.f32.xlu0 %v2988
        %v2990 = vpop.xlane.xlu0 %2989
        %v2991 = vsub.f32 %v2987, %v2990
        %v2992 = vmul.f32 %v2991, 1.442695
        %v2993 = vpow.pop %v2992
        %v2994 = vsel %vm291, %v2993, 0.0
        %2995 = vadd.xlane.f32.xlu0 %v2994
        %v2996 = vpop.xlane.xlu0 %2995
        %v2997 = vrcp.pop %v2996
        %v2998 = vmul.f32 %v2993, %v2997
        %v2999 = vpack.c.bf16 %v2998, %v2998
        %3000 = vrot.lane.b32.xlu0 %v2825, 88
        %v3001 = vpop.permute.xlu0 %3000
        %v3003 = vsel %vm291, %v2999, 0
        %v3006 = vsel %vm179, %v3001, 0
        %3008 = vmatprep.subr.bf16.mxu0 0
        %3009 = vmatpush1.bf16.msra.mxu0 0
        %3010 = vmatprep.subr.bf16.mxu0 0
        %3011 = vmatpush1.bf16.msra.mxu0 0
        %3012 = vmatprep.subr.bf16.mxu0 0
        %3013 = vmatpush1.bf16.msra.mxu0 0
        %3014 = vmatprep.subr.bf16.mxu0 0
        %3015 = vmatpush1.bf16.msra.mxu0 0
        %3016 = vmatprep.subr.bf16.mxu0 0
        %3017 = vmatpush1.bf16.msra.mxu0 0
        %3018 = vmatprep.subr.bf16.mxu0 0
        %3019 = vmatpush1.bf16.msra.mxu0 0
        %3020 = vmatprep.subr.bf16.mxu0 0
        %3021 = vmatpush1.bf16.msra.mxu0 0
        %3022 = vmatprep.subr.bf16.mxu0 0
        %3023 = vmatpush1.bf16.msra.mxu0 %v3006
        %3024 = vmatprep.subr.bf16.mxu0 0
        %3025 = vmatpush2.bf16.msra.mxu0 0
        %3026 = vmatprep.subr.bf16.mxu0 0
        %3027 = vmatpush2.bf16.msra.mxu0 0
        %3028 = vmatprep.subr.bf16.mxu0 0
        %3029 = vmatpush2.bf16.msra.mxu0 0
        %3030 = vmatprep.subr.bf16.mxu0 0
        %3031 = vmatpush2.bf16.msra.mxu0 0
        %3032 = vmatprep.subr.bf16.mxu0 0
        %3033 = vmatpush2.bf16.msra.mxu0 0
        %3034 = vmatprep.subr.bf16.mxu0 0
        %3035 = vmatpush2.bf16.msra.mxu0 0
        %3036 = vmatprep.subr.bf16.mxu0 0
        %3037 = vmatpush2.bf16.msra.mxu0 0
        %3038 = vmatprep.subr.bf16.mxu0 0
        %3039 = vmatpush2.bf16.msra.mxu0 0
        %3040 = vmatprep.mubr.bf16.mxu0 0
        %3041 = vmatmul.mubr.bf16.gmra.mxu0 %v3003
        %v3042 = vpop.f32.mrf.mxu0
        %v3043 = vadd.f32 0.0, %v3042
        %v3044 = vpop.f32.mrf.mxu0
        %v3045 = vpop.f32.mrf.mxu0
        %v3046 = vpop.f32.mrf.mxu0
        %3047 = vdwg.mxu0
        %v3048 = vpack.c.bf16 %v3043, %v3043
        %v3049 = vpack.c.bf16 %v2821, %v2821
        %v3051 = vsel %vm291, %v3048, 0
        %v3054 = vsel %vm179, %v3049, 0
        %3056 = vmatprep.subr.bf16.mxu0 0
        %3057 = vmatpush1.bf16.msra.mxu0 0
        %3058 = vmatprep.subr.bf16.mxu0 0
        %3059 = vmatpush1.bf16.msra.mxu0 0
        %3060 = vmatprep.subr.bf16.mxu0 0
        %3061 = vmatpush1.bf16.msra.mxu0 0
        %3062 = vmatprep.subr.bf16.mxu0 0
        %3063 = vmatpush1.bf16.msra.mxu0 0
        %3064 = vmatprep.subr.bf16.mxu0 0
        %3065 = vmatpush1.bf16.msra.mxu0 0
        %3066 = vmatprep.subr.bf16.mxu0 0
        %3067 = vmatpush1.bf16.msra.mxu0 0
        %3068 = vmatprep.subr.bf16.mxu0 0
        %3069 = vmatpush1.bf16.msra.mxu0 0
        %3070 = vmatprep.subr.bf16.mxu0 0
        %3071 = vmatpush1.bf16.msra.mxu0 %v3054
        %3072 = vmatprep.subr.bf16.mxu0 0
        %3073 = vmatpush2.bf16.msra.mxu0 0
        %3074 = vmatprep.subr.bf16.mxu0 0
        %3075 = vmatpush2.bf16.msra.mxu0 0
        %3076 = vmatprep.subr.bf16.mxu0 0
        %3077 = vmatpush2.bf16.msra.mxu0 0
        %3078 = vmatprep.subr.bf16.mxu0 0
        %3079 = vmatpush2.bf16.msra.mxu0 0
        %3080 = vmatprep.subr.bf16.mxu0 0
        %3081 = vmatpush2.bf16.msra.mxu0 0
        %3082 = vmatprep.subr.bf16.mxu0 0
        %3083 = vmatpush2.bf16.msra.mxu0 0
        %3084 = vmatprep.subr.bf16.mxu0 0
        %3085 = vmatpush2.bf16.msra.mxu0 0
        %3086 = vmatprep.subr.bf16.mxu0 0
        %3087 = vmatpush2.bf16.msra.mxu0 0
        %3088 = vmatprep.mubr.bf16.mxu0 0
        %3089 = vmatmul.mubr.bf16.gmra.mxu0 %v3051
        %v3090 = vpop.f32.mrf.mxu0
        %v3091 = vadd.f32 0.0, %v3090
        %v3092 = vpop.f32.mrf.mxu0
        %v3093 = vpop.f32.mrf.mxu0
        %v3094 = vpop.f32.mrf.mxu0
        %3095 = vdwg.mxu0
        %v3097 = vsel %vm291, %v2934, 0
        %v3100 = vsel %vm179, %v2935, 0
        %3102 = vmatprep.subr.bf16.mxu0 0
        %3103 = vmatpush1.bf16.msra.mxu0 0
        %3104 = vmatprep.subr.bf16.mxu0 0
        %3105 = vmatpush1.bf16.msra.mxu0 0
        %3106 = vmatprep.subr.bf16.mxu0 0
        %3107 = vmatpush1.bf16.msra.mxu0 0
        %3108 = vmatprep.subr.bf16.mxu0 0
        %3109 = vmatpush1.bf16.msra.mxu0 0
        %3110 = vmatprep.subr.bf16.mxu0 0
        %3111 = vmatpush1.bf16.msra.mxu0 0
        %3112 = vmatprep.subr.bf16.mxu0 0
        %3113 = vmatpush1.bf16.msra.mxu0 0
        %3114 = vmatprep.subr.bf16.mxu0 0
        %3115 = vmatpush1.bf16.msra.mxu0 0
        %3116 = vmatprep.subr.bf16.mxu0 0
        %3117 = vmatpush1.bf16.msra.mxu0 %v3100
        %3118 = vmatprep.subr.bf16.mxu0 0
        %3119 = vmatpush2.bf16.msra.mxu0 0
        %3120 = vmatprep.subr.bf16.mxu0 0
        %3121 = vmatpush2.bf16.msra.mxu0 0
        %3122 = vmatprep.subr.bf16.mxu0 0
        %3123 = vmatpush2.bf16.msra.mxu0 0
        %3124 = vmatprep.subr.bf16.mxu0 0
        %3125 = vmatpush2.bf16.msra.mxu0 0
        %3126 = vmatprep.subr.bf16.mxu0 0
        %3127 = vmatpush2.bf16.msra.mxu0 0
        %3128 = vmatprep.subr.bf16.mxu0 0
        %3129 = vmatpush2.bf16.msra.mxu0 0
        %3130 = vmatprep.subr.bf16.mxu0 0
        %3131 = vmatpush2.bf16.msra.mxu0 0
        %3132 = vmatprep.subr.bf16.mxu0 0
        %3133 = vmatpush2.bf16.msra.mxu0 0
        %3134 = vmatprep.mubr.bf16.mxu0 0
        %3135 = vmatmul.mubr.bf16.gmra.mxu0 %v3097
        %v3136 = vpop.f32.mrf.mxu0
        %v3137 = vadd.f32 %v3091, %v3136
        %v3138 = vpop.f32.mrf.mxu0
        %v3139 = vpop.f32.mrf.mxu0
        %v3140 = vpop.f32.mrf.mxu0
        %3141 = vdwg.mxu0
        %3142 = vrot.lane.b32.xlu0 %v2824, 112
        %v3143 = vpop.permute.xlu0 %3142
        %3144 = vrot.lane.b32.xlu0 %v2825, 112
        %v3145 = vpop.permute.xlu0 %3144
        %v3147 = vsel %vm291, %v3143, 0
        %v3150 = vsel %vm291, %v3145, 0
        %3152 = vmatprep.subr.bf16.mxu0 0
        %3153 = vmatpush1.bf16.xpose.msra.mxu0 0
        %3154 = vmatprep.subr.bf16.mxu0 0
        %3155 = vmatpush1.bf16.xpose.msra.mxu0 0
        %3156 = vmatprep.subr.bf16.mxu0 0
        %3157 = vmatpush1.bf16.xpose.msra.mxu0 0
        %3158 = vmatprep.subr.bf16.mxu0 0
        %3159 = vmatpush1.bf16.xpose.msra.mxu0 0
        %3160 = vmatprep.subr.bf16.mxu0 0
        %3161 = vmatpush1.bf16.xpose.msra.mxu0 0
        %3162 = vmatprep.subr.bf16.mxu0 0
        %3163 = vmatpush1.bf16.xpose.msra.mxu0 0
        %3164 = vmatprep.subr.bf16.mxu0 0
        %3165 = vmatpush1.bf16.xpose.msra.mxu0 0
        %3166 = vmatprep.subr.bf16.mxu0 0
        %3167 = vmatpush1.bf16.xpose.msra.mxu0 %v3150
        %3168 = vmatprep.subr.bf16.mxu0 0
        %3169 = vmatpush2.bf16.xpose.msra.mxu0 0
        %3170 = vmatprep.subr.bf16.mxu0 0
        %3171 = vmatpush2.bf16.xpose.msra.mxu0 0
        %3172 = vmatprep.subr.bf16.mxu0 0
        %3173 = vmatpush2.bf16.xpose.msra.mxu0 0
        %3174 = vmatprep.subr.bf16.mxu0 0
        %3175 = vmatpush2.bf16.xpose.msra.mxu0 0
        %3176 = vmatprep.subr.bf16.mxu0 0
        %3177 = vmatpush2.bf16.xpose.msra.mxu0 0
        %3178 = vmatprep.subr.bf16.mxu0 0
        %3179 = vmatpush2.bf16.xpose.msra.mxu0 0
        %3180 = vmatprep.subr.bf16.mxu0 0
        %3181 = vmatpush2.bf16.xpose.msra.mxu0 0
        %3182 = vmatprep.subr.bf16.mxu0 0
        %3183 = vmatpush2.bf16.xpose.msra.mxu0 0
        %3184 = vmatprep.mubr.bf16.mxu0 0
        %3185 = vmatmul.mubr.bf16.gmra.mxu0 %v3147
        %v3186 = vpop.f32.mrf.mxu0
        %v3187 = vadd.f32 0.0, %v3186
        %v3188 = vpop.f32.mrf.mxu0
        %v3189 = vpop.f32.mrf.mxu0
        %v3190 = vpop.f32.mrf.mxu0
        %3191 = vdwg.mxu0
        %v3192 = vmul.f32 %v3187, 0.35355338
        %v3193 = vsel %vm291, %v3192, -inf
        %3194 = vmax.xlane.f32.xlu0 %v3193
        %v3195 = vpop.xlane.xlu0 %3194
        %v3196 = vsub.f32 %v3192, %v3195
        %v3197 = vmul.f32 %v3196, 1.442695
        %v3198 = vpow.pop %v3197
        %v3199 = vsel %vm291, %v3198, 0.0
        %3200 = vadd.xlane.f32.xlu0 %v3199
        %v3201 = vpop.xlane.xlu0 %3200
        %v3202 = vrcp.pop %v3201
        %v3203 = vmul.f32 %v3198, %v3202
        %v3204 = vpack.c.bf16 %v3203, %v3203
        %3205 = vrot.lane.b32.xlu0 %v2825, 80
        %v3206 = vpop.permute.xlu0 %3205
        %v3208 = vsel %vm291, %v3204, 0
        %v3211 = vsel %vm179, %v3206, 0
        %3213 = vmatprep.subr.bf16.mxu0 0
        %3214 = vmatpush1.bf16.msra.mxu0 0
        %3215 = vmatprep.subr.bf16.mxu0 0
        %3216 = vmatpush1.bf16.msra.mxu0 0
        %3217 = vmatprep.subr.bf16.mxu0 0
        %3218 = vmatpush1.bf16.msra.mxu0 0
        %3219 = vmatprep.subr.bf16.mxu0 0
        %3220 = vmatpush1.bf16.msra.mxu0 0
        %3221 = vmatprep.subr.bf16.mxu0 0
        %3222 = vmatpush1.bf16.msra.mxu0 0
        %3223 = vmatprep.subr.bf16.mxu0 0
        %3224 = vmatpush1.bf16.msra.mxu0 0
        %3225 = vmatprep.subr.bf16.mxu0 0
        %3226 = vmatpush1.bf16.msra.mxu0 0
        %3227 = vmatprep.subr.bf16.mxu0 0
        %3228 = vmatpush1.bf16.msra.mxu0 %v3211
        %3229 = vmatprep.subr.bf16.mxu0 0
        %3230 = vmatpush2.bf16.msra.mxu0 0
        %3231 = vmatprep.subr.bf16.mxu0 0
        %3232 = vmatpush2.bf16.msra.mxu0 0
        %3233 = vmatprep.subr.bf16.mxu0 0
        %3234 = vmatpush2.bf16.msra.mxu0 0
        %3235 = vmatprep.subr.bf16.mxu0 0
        %3236 = vmatpush2.bf16.msra.mxu0 0
        %3237 = vmatprep.subr.bf16.mxu0 0
        %3238 = vmatpush2.bf16.msra.mxu0 0
        %3239 = vmatprep.subr.bf16.mxu0 0
        %3240 = vmatpush2.bf16.msra.mxu0 0
        %3241 = vmatprep.subr.bf16.mxu0 0
        %3242 = vmatpush2.bf16.msra.mxu0 0
        %3243 = vmatprep.subr.bf16.mxu0 0
        %3244 = vmatpush2.bf16.msra.mxu0 0
        %3245 = vmatprep.mubr.bf16.mxu0 0
        %3246 = vmatmul.mubr.bf16.gmra.mxu0 %v3208
        %v3247 = vpop.f32.mrf.mxu0
        %v3248 = vadd.f32 0.0, %v3247
        %v3249 = vpop.f32.mrf.mxu0
        %v3250 = vpop.f32.mrf.mxu0
        %v3251 = vpop.f32.mrf.mxu0
        %3252 = vdwg.mxu0
        %v3253 = vpack.c.bf16 %v3248, %v3248
        %v3254 = vpack.c.bf16 %v2822, %v2822
        %v3256 = vsel %vm291, %v3253, 0
        %v3259 = vsel %vm179, %v3254, 0
        %3261 = vmatprep.subr.bf16.mxu0 0
        %3262 = vmatpush1.bf16.msra.mxu0 0
        %3263 = vmatprep.subr.bf16.mxu0 0
        %3264 = vmatpush1.bf16.msra.mxu0 0
        %3265 = vmatprep.subr.bf16.mxu0 0
        %3266 = vmatpush1.bf16.msra.mxu0 0
        %3267 = vmatprep.subr.bf16.mxu0 0
        %3268 = vmatpush1.bf16.msra.mxu0 0
        %3269 = vmatprep.subr.bf16.mxu0 0
        %3270 = vmatpush1.bf16.msra.mxu0 0
        %3271 = vmatprep.subr.bf16.mxu0 0
        %3272 = vmatpush1.bf16.msra.mxu0 0
        %3273 = vmatprep.subr.bf16.mxu0 0
        %3274 = vmatpush1.bf16.msra.mxu0 0
        %3275 = vmatprep.subr.bf16.mxu0 0
        %3276 = vmatpush1.bf16.msra.mxu0 %v3259
        %3277 = vmatprep.subr.bf16.mxu0 0
        %3278 = vmatpush2.bf16.msra.mxu0 0
        %3279 = vmatprep.subr.bf16.mxu0 0
        %3280 = vmatpush2.bf16.msra.mxu0 0
        %3281 = vmatprep.subr.bf16.mxu0 0
        %3282 = vmatpush2.bf16.msra.mxu0 0
        %3283 = vmatprep.subr.bf16.mxu0 0
        %3284 = vmatpush2.bf16.msra.mxu0 0
        %3285 = vmatprep.subr.bf16.mxu0 0
        %3286 = vmatpush2.bf16.msra.mxu0 0
        %3287 = vmatprep.subr.bf16.mxu0 0
        %3288 = vmatpush2.bf16.msra.mxu0 0
        %3289 = vmatprep.subr.bf16.mxu0 0
        %3290 = vmatpush2.bf16.msra.mxu0 0
        %3291 = vmatprep.subr.bf16.mxu0 0
        %3292 = vmatpush2.bf16.msra.mxu0 0
        %3293 = vmatprep.mubr.bf16.mxu0 0
        %3294 = vmatmul.mubr.bf16.gmra.mxu0 %v3256
        %v3295 = vpop.f32.mrf.mxu0
        %v3296 = vadd.f32 0.0, %v3295
        %v3297 = vpop.f32.mrf.mxu0
        %v3298 = vpop.f32.mrf.mxu0
        %v3299 = vpop.f32.mrf.mxu0
        %3300 = vdwg.mxu0
        %v3301 = vadd.f32 %v3137, %v3296
        %3302 = vrot.lane.b32.xlu0 %v2824, 104
        %v3303 = vpop.permute.xlu0 %3302
        %3304 = vrot.lane.b32.xlu0 %v2825, 104
        %v3305 = vpop.permute.xlu0 %3304
        %v3307 = vsel %vm291, %v3303, 0
        %v3310 = vsel %vm291, %v3305, 0
        %3312 = vmatprep.subr.bf16.mxu0 0
        %3313 = vmatpush1.bf16.xpose.msra.mxu0 0
        %3314 = vmatprep.subr.bf16.mxu0 0
        %3315 = vmatpush1.bf16.xpose.msra.mxu0 0
        %3316 = vmatprep.subr.bf16.mxu0 0
        %3317 = vmatpush1.bf16.xpose.msra.mxu0 0
        %3318 = vmatprep.subr.bf16.mxu0 0
        %3319 = vmatpush1.bf16.xpose.msra.mxu0 0
        %3320 = vmatprep.subr.bf16.mxu0 0
        %3321 = vmatpush1.bf16.xpose.msra.mxu0 0
        %3322 = vmatprep.subr.bf16.mxu0 0
        %3323 = vmatpush1.bf16.xpose.msra.mxu0 0
        %3324 = vmatprep.subr.bf16.mxu0 0
        %3325 = vmatpush1.bf16.xpose.msra.mxu0 0
        %3326 = vmatprep.subr.bf16.mxu0 0
        %3327 = vmatpush1.bf16.xpose.msra.mxu0 %v3310
        %3328 = vmatprep.subr.bf16.mxu0 0
        %3329 = vmatpush2.bf16.xpose.msra.mxu0 0
        %3330 = vmatprep.subr.bf16.mxu0 0
        %3331 = vmatpush2.bf16.xpose.msra.mxu0 0
        %3332 = vmatprep.subr.bf16.mxu0 0
        %3333 = vmatpush2.bf16.xpose.msra.mxu0 0
        %3334 = vmatprep.subr.bf16.mxu0 0
        %3335 = vmatpush2.bf16.xpose.msra.mxu0 0
        %3336 = vmatprep.subr.bf16.mxu0 0
        %3337 = vmatpush2.bf16.xpose.msra.mxu0 0
        %3338 = vmatprep.subr.bf16.mxu0 0
        %3339 = vmatpush2.bf16.xpose.msra.mxu0 0
        %3340 = vmatprep.subr.bf16.mxu0 0
        %3341 = vmatpush2.bf16.xpose.msra.mxu0 0
        %3342 = vmatprep.subr.bf16.mxu0 0
        %3343 = vmatpush2.bf16.xpose.msra.mxu0 0
        %3344 = vmatprep.mubr.bf16.mxu0 0
        %3345 = vmatmul.mubr.bf16.gmra.mxu0 %v3307
        %v3346 = vpop.f32.mrf.mxu0
        %v3347 = vadd.f32 0.0, %v3346
        %v3348 = vpop.f32.mrf.mxu0
        %v3349 = vpop.f32.mrf.mxu0
        %v3350 = vpop.f32.mrf.mxu0
        %3351 = vdwg.mxu0
        %v3352 = vmul.f32 %v3347, 0.35355338
        %v3353 = vsel %vm291, %v3352, -inf
        %3354 = vmax.xlane.f32.xlu0 %v3353
        %v3355 = vpop.xlane.xlu0 %3354
        %v3356 = vsub.f32 %v3352, %v3355
        %v3357 = vmul.f32 %v3356, 1.442695
        %v3358 = vpow.pop %v3357
        %v3359 = vsel %vm291, %v3358, 0.0
        %3360 = vadd.xlane.f32.xlu0 %v3359
        %v3361 = vpop.xlane.xlu0 %3360
        %v3362 = vrcp.pop %v3361
        %v3363 = vmul.f32 %v3358, %v3362
        %v3364 = vpack.c.bf16 %v3363, %v3363
        %3365 = vrot.lane.b32.xlu0 %v2825, 72
        %v3366 = vpop.permute.xlu0 %3365
        %v3368 = vsel %vm291, %v3364, 0
        %v3371 = vsel %vm179, %v3366, 0
        %3373 = vmatprep.subr.bf16.mxu0 0
        %3374 = vmatpush1.bf16.msra.mxu0 0
        %3375 = vmatprep.subr.bf16.mxu0 0
        %3376 = vmatpush1.bf16.msra.mxu0 0
        %3377 = vmatprep.subr.bf16.mxu0 0
        %3378 = vmatpush1.bf16.msra.mxu0 0
        %3379 = vmatprep.subr.bf16.mxu0 0
        %3380 = vmatpush1.bf16.msra.mxu0 0
        %3381 = vmatprep.subr.bf16.mxu0 0
        %3382 = vmatpush1.bf16.msra.mxu0 0
        %3383 = vmatprep.subr.bf16.mxu0 0
        %3384 = vmatpush1.bf16.msra.mxu0 0
        %3385 = vmatprep.subr.bf16.mxu0 0
        %3386 = vmatpush1.bf16.msra.mxu0 0
        %3387 = vmatprep.subr.bf16.mxu0 0
        %3388 = vmatpush1.bf16.msra.mxu0 %v3371
        %3389 = vmatprep.subr.bf16.mxu0 0
        %3390 = vmatpush2.bf16.msra.mxu0 0
        %3391 = vmatprep.subr.bf16.mxu0 0
        %3392 = vmatpush2.bf16.msra.mxu0 0
        %3393 = vmatprep.subr.bf16.mxu0 0
        %3394 = vmatpush2.bf16.msra.mxu0 0
        %3395 = vmatprep.subr.bf16.mxu0 0
        %3396 = vmatpush2.bf16.msra.mxu0 0
        %3397 = vmatprep.subr.bf16.mxu0 0
        %3398 = vmatpush2.bf16.msra.mxu0 0
        %3399 = vmatprep.subr.bf16.mxu0 0
        %3400 = vmatpush2.bf16.msra.mxu0 0
        %3401 = vmatprep.subr.bf16.mxu0 0
        %3402 = vmatpush2.bf16.msra.mxu0 0
        %3403 = vmatprep.subr.bf16.mxu0 0
        %3404 = vmatpush2.bf16.msra.mxu0 0
        %3405 = vmatprep.mubr.bf16.mxu0 0
        %3406 = vmatmul.mubr.bf16.gmra.mxu0 %v3368
        %v3407 = vpop.f32.mrf.mxu0
        %v3408 = vadd.f32 0.0, %v3407
        %v3409 = vpop.f32.mrf.mxu0
        %v3410 = vpop.f32.mrf.mxu0
        %v3411 = vpop.f32.mrf.mxu0
        %3412 = vdwg.mxu0
        %v3413 = vpack.c.bf16 %v3408, %v3408
        %v3414 = vpack.c.bf16 %v2823, %v2823
        %v3416 = vsel %vm291, %v3413, 0
        %v3419 = vsel %vm179, %v3414, 0
        %3421 = vmatprep.subr.bf16.mxu0 0
        %3422 = vmatpush1.bf16.msra.mxu0 0
        %3423 = vmatprep.subr.bf16.mxu0 0
        %3424 = vmatpush1.bf16.msra.mxu0 0
        %3425 = vmatprep.subr.bf16.mxu0 0
        %3426 = vmatpush1.bf16.msra.mxu0 0
        %3427 = vmatprep.subr.bf16.mxu0 0
        %3428 = vmatpush1.bf16.msra.mxu0 0
        %3429 = vmatprep.subr.bf16.mxu0 0
        %3430 = vmatpush1.bf16.msra.mxu0 0
        %3431 = vmatprep.subr.bf16.mxu0 0
        %3432 = vmatpush1.bf16.msra.mxu0 0
        %3433 = vmatprep.subr.bf16.mxu0 0
        %3434 = vmatpush1.bf16.msra.mxu0 0
        %3435 = vmatprep.subr.bf16.mxu0 0
        %3436 = vmatpush1.bf16.msra.mxu0 %v3419
        %3437 = vmatprep.subr.bf16.mxu0 0
        %3438 = vmatpush2.bf16.msra.mxu0 0
        %3439 = vmatprep.subr.bf16.mxu0 0
        %3440 = vmatpush2.bf16.msra.mxu0 0
        %3441 = vmatprep.subr.bf16.mxu0 0
        %3442 = vmatpush2.bf16.msra.mxu0 0
        %3443 = vmatprep.subr.bf16.mxu0 0
        %3444 = vmatpush2.bf16.msra.mxu0 0
        %3445 = vmatprep.subr.bf16.mxu0 0
        %3446 = vmatpush2.bf16.msra.mxu0 0
        %3447 = vmatprep.subr.bf16.mxu0 0
        %3448 = vmatpush2.bf16.msra.mxu0 0
        %3449 = vmatprep.subr.bf16.mxu0 0
        %3450 = vmatpush2.bf16.msra.mxu0 0
        %3451 = vmatprep.subr.bf16.mxu0 0
        %3452 = vmatpush2.bf16.msra.mxu0 0
        %3453 = vmatprep.mubr.bf16.mxu0 0
        %3454 = vmatmul.mubr.bf16.gmra.mxu0 %v3416
        %v3455 = vpop.f32.mrf.mxu0
        %v3456 = vadd.f32 0.0, %v3455
        %v3457 = vpop.f32.mrf.mxu0
        %v3458 = vpop.f32.mrf.mxu0
        %v3459 = vpop.f32.mrf.mxu0
        %3460 = vdwg.mxu0
        %v3461 = vadd.f32 %v3301, %v3456
        %v3462 = vld [vmem:[#allocation2 + $0x258] sm:$0x1]
        %v3463 = vlaneseq
        %v3464 = vshrl.u32 %v3463, 7
        %v3465 = vsub.s32 0, %v3464
        %v3466 = vrot.slane %v3462, %v3465
        %v3467 = vadd.f32 %v3461, %v3466
        %v3468 = vadd.f32 %v2708, %v3467
        %v3469 = vsel %vm239, %v3468, 0.0
        %3470 = vadd.xlane.f32.xlu0 %v3469
        %v3471 = vpop.xlane.xlu0 %3470
        %v3472 = vmul.f32 %v3471, %v936
        %v3473 = vsub.f32 %v3468, %v3472
        %v3474 = vmul.f32 %v3473, %v3473
        %v3475 = vsel %vm239, %v3474, 0.0
        %3476 = vadd.xlane.f32.xlu0 %v3475
        %v3477 = vpop.xlane.xlu0 %3476
        %v3478 = vmul.f32 %v3477, %v936
        %v3479 = vadd.f32 %v3478, 1e-05
        %v3480 = vrsqrt.pop %v3479
        %v3481 = vmul.f32 %v3473, %v3480
        %v3482 = vld [vmem:[#allocation2 + $0x270] sm:$0x1]
        %v3483 = vlaneseq
        %v3484 = vshrl.u32 %v3483, 7
        %v3485 = vsub.s32 0, %v3484
        %v3486 = vrot.slane %v3482, %v3485
        %v3487 = vmul.f32 %v3481, %v3486
        %v3488 = vld [vmem:[#allocation2 + $0x278] sm:$0x1]
        %v3489 = vlaneseq
        %v3490 = vshrl.u32 %v3489, 7
        %v3491 = vsub.s32 0, %v3490
        %v3492 = vrot.slane %v3488, %v3491
        %v3493 = vadd.f32 %v3487, %v3492
        %v3494 = vld [vmem:[#allocation2 + $0x290] sm:$0xff]
        %v3495 = vld [vmem:[#allocation2 + $0x298] sm:$0xff]
        %v3496 = vld [vmem:[#allocation2 + $0x2a0] sm:$0xff]
        %v3497 = vld [vmem:[#allocation2 + $0x2a8] sm:$0xff]
        %v3498 = vpack.c.bf16 %v3493, %v3493
        %v3499 = vpack.c.bf16 %v3495, %v3494
        %v3500 = vpack.c.bf16 %v3497, %v3496
        %v3501 = vld [vmem:[#allocation2 + $0x2b0] sm:$0x1]
        %v3502 = vlaneseq
        %v3503 = vshrl.u32 %v3502, 7
        %v3504 = vsub.s32 0, %v3503
        %v3505 = vrot.slane %v3501, %v3504
        %v3507 = vsel %vm239, %v3498, 0
        %3509 = vmatprep.subr.bf16.mxu0 0
        %3510 = vmatpush1.bf16.msra.mxu0 0
        %3511 = vmatprep.subr.bf16.mxu0 0
        %3512 = vmatpush1.bf16.msra.mxu0 0
        %3513 = vmatprep.subr.bf16.mxu0 0
        %3514 = vmatpush1.bf16.msra.mxu0 0
        %3515 = vmatprep.subr.bf16.mxu0 0
        %3516 = vmatpush1.bf16.msra.mxu0 0
        %3517 = vmatprep.subr.bf16.mxu0 0
        %3518 = vmatpush1.bf16.msra.mxu0 0
        %3519 = vmatprep.subr.bf16.mxu0 0
        %3520 = vmatpush1.bf16.msra.mxu0 0
        %3521 = vmatprep.subr.bf16.mxu0 0
        %3522 = vmatpush1.bf16.msra.mxu0 %v3500
        %3523 = vmatprep.subr.bf16.mxu0 0
        %3524 = vmatpush1.bf16.msra.mxu0 %v3499
        %3525 = vmatprep.subr.bf16.mxu0 0
        %3526 = vmatpush2.bf16.msra.mxu0 0
        %3527 = vmatprep.subr.bf16.mxu0 0
        %3528 = vmatpush2.bf16.msra.mxu0 0
        %3529 = vmatprep.subr.bf16.mxu0 0
        %3530 = vmatpush2.bf16.msra.mxu0 0
        %3531 = vmatprep.subr.bf16.mxu0 0
        %3532 = vmatpush2.bf16.msra.mxu0 0
        %3533 = vmatprep.subr.bf16.mxu0 0
        %3534 = vmatpush2.bf16.msra.mxu0 0
        %3535 = vmatprep.subr.bf16.mxu0 0
        %3536 = vmatpush2.bf16.msra.mxu0 0
        %3537 = vmatprep.subr.bf16.mxu0 0
        %3538 = vmatpush2.bf16.msra.mxu0 0
        %3539 = vmatprep.subr.bf16.mxu0 0
        %3540 = vmatpush2.bf16.msra.mxu0 0
        %3541 = vmatprep.mubr.bf16.mxu0 0
        %3542 = vmatmul.mubr.bf16.gmra.mxu0 %v3507
        %v3543 = vpop.f32.mrf.mxu0
        %v3544 = vadd.f32 %v3505, %v3543
        %v3545 = vpop.f32.mrf.mxu0
        %v3546 = vpop.f32.mrf.mxu0
        %v3547 = vpop.f32.mrf.mxu0
        %3548 = vdwg.mxu0
        %v3549 = vmax.f32 %v3544, 0.0
        %v3550 = vld [vmem:[#allocation2 + $0x2b8] sm:$0xff]
        %v3551 = vld [vmem:[#allocation2 + $0x2c0] sm:$0xff]
        %v3552 = vld [vmem:[#allocation2 + $0x2c8] sm:$0xff]
        %v3553 = vld [vmem:[#allocation2 + $0x2d0] sm:$0xff]
        %v3554 = vld [vmem:[#allocation2 + $0x2d8] sm:$0xff]
        %v3555 = vld [vmem:[#allocation2 + $0x2e0] sm:$0xff]
        %v3556 = vld [vmem:[#allocation2 + $0x2e8] sm:$0xff]
        %v3557 = vld [vmem:[#allocation2 + $0x2f0] sm:$0xff]
        %v3558 = vpack.c.bf16 %v3549, %v3549
        %v3559 = vpack.c.bf16 %v3551, %v3550
        %v3560 = vpack.c.bf16 %v3553, %v3552
        %v3561 = vpack.c.bf16 %v3555, %v3554
        %v3562 = vpack.c.bf16 %v3557, %v3556
        %v3563 = vld [vmem:[#allocation2 + $0x2f8] sm:$0x1]
        %v3564 = vlaneseq
        %v3565 = vshrl.u32 %v3564, 7
        %v3566 = vsub.s32 0, %v3565
        %v3567 = vrot.slane %v3563, %v3566
        %v3569 = vsel %vm1812, %v3558, 0
        %3571 = vmatprep.subr.bf16.mxu0 0
        %3572 = vmatpush1.bf16.msra.mxu0 0
        %3573 = vmatprep.subr.bf16.mxu0 0
        %3574 = vmatpush1.bf16.msra.mxu0 0
        %3575 = vmatprep.subr.bf16.mxu0 0
        %3576 = vmatpush1.bf16.msra.mxu0 0
        %3577 = vmatprep.subr.bf16.mxu0 0
        %3578 = vmatpush1.bf16.msra.mxu0 0
        %3579 = vmatprep.subr.bf16.mxu0 0
        %3580 = vmatpush1.bf16.msra.mxu0 %v3562
        %3581 = vmatprep.subr.bf16.mxu0 0
        %3582 = vmatpush1.bf16.msra.mxu0 %v3561
        %3583 = vmatprep.subr.bf16.mxu0 0
        %3584 = vmatpush1.bf16.msra.mxu0 %v3560
        %3585 = vmatprep.subr.bf16.mxu0 0
        %3586 = vmatpush1.bf16.msra.mxu0 %v3559
        %3587 = vmatprep.subr.bf16.mxu0 0
        %3588 = vmatpush2.bf16.msra.mxu0 0
        %3589 = vmatprep.subr.bf16.mxu0 0
        %3590 = vmatpush2.bf16.msra.mxu0 0
        %3591 = vmatprep.subr.bf16.mxu0 0
        %3592 = vmatpush2.bf16.msra.mxu0 0
        %3593 = vmatprep.subr.bf16.mxu0 0
        %3594 = vmatpush2.bf16.msra.mxu0 0
        %3595 = vmatprep.subr.bf16.mxu0 0
        %3596 = vmatpush2.bf16.msra.mxu0 0
        %3597 = vmatprep.subr.bf16.mxu0 0
        %3598 = vmatpush2.bf16.msra.mxu0 0
        %3599 = vmatprep.subr.bf16.mxu0 0
        %3600 = vmatpush2.bf16.msra.mxu0 0
        %3601 = vmatprep.subr.bf16.mxu0 0
        %3602 = vmatpush2.bf16.msra.mxu0 0
        %3603 = vmatprep.mubr.bf16.mxu0 0
        %3604 = vmatmul.mubr.bf16.gmra.mxu0 %v3569
        %v3605 = vpop.f32.mrf.mxu0
        %v3606 = vadd.f32 %v3567, %v3605
        %v3607 = vpop.f32.mrf.mxu0
        %v3608 = vpop.f32.mrf.mxu0
        %v3609 = vpop.f32.mrf.mxu0
        %3610 = vdwg.mxu0
        %v3611 = vadd.f32 %v3493, %v3606
        %v3612 = vsel %vm239, %v3611, 0.0
        %3613 = vadd.xlane.f32.xlu0 %v3612
        %v3614 = vpop.xlane.xlu0 %3613
        %v3615 = vmul.f32 %v3614, %v936
        %v3616 = vsub.f32 %v3611, %v3615
        %v3617 = vmul.f32 %v3616, %v3616
        %v3618 = vsel %vm239, %v3617, 0.0
        %3619 = vadd.xlane.f32.xlu0 %v3618
        %v3620 = vpop.xlane.xlu0 %3619
        %v3621 = vmul.f32 %v3620, %v936
        %v3622 = vadd.f32 %v3621, 1e-05
        %v3623 = vrsqrt.pop %v3622
        %v3624 = vmul.f32 %v3616, %v3623
        %v3625 = vld [vmem:[#allocation2 + $0x280] sm:$0x1]
        %v3626 = vlaneseq
        %v3627 = vshrl.u32 %v3626, 7
        %v3628 = vsub.s32 0, %v3627
        %v3629 = vrot.slane %v3625, %v3628
        %v3630 = vmul.f32 %v3624, %v3629
        %v3631 = vld [vmem:[#allocation2 + $0x288] sm:$0x1]
        %v3632 = vlaneseq
        %v3633 = vshrl.u32 %v3632, 7
        %v3634 = vsub.s32 0, %v3633
        %v3635 = vrot.slane %v3631, %v3634
        %v3636 = vadd.f32 %v3630, %v3635
        %v3637 = vsel %vm239, %v3636, 0.0
        %3638 = vadd.xlane.f32.xlu0 %v3637
        %v3639 = vpop.xlane.xlu0 %3638
        %v3640 = vmul.f32 %v3639, %v936
        %v3641 = vsub.f32 %v3636, %v3640
        %v3642 = vmul.f32 %v3641, %v3641
        %v3643 = vsel %vm239, %v3642, 0.0
        %3644 = vadd.xlane.f32.xlu0 %v3643
        %v3645 = vpop.xlane.xlu0 %3644
        %v3646 = vmul.f32 %v3645, %v936
        %v3647 = vadd.f32 %v3646, 1e-05
        %v3648 = vrsqrt.pop %v3647
        %v3649 = vmul.f32 %v3641, %v3648
        %v3650 = vld [vmem:[#allocation2 + $0x300] sm:$0x1]
        %v3651 = vlaneseq
        %v3652 = vshrl.u32 %v3651, 7
        %v3653 = vsub.s32 0, %v3652
        %v3654 = vrot.slane %v3650, %v3653
        %v3655 = vmul.f32 %v3649, %v3654
        %v3656 = vld [vmem:[#allocation2 + $0x308] sm:$0x1]
        %v3657 = vlaneseq
        %v3658 = vshrl.u32 %v3657, 7
        %v3659 = vsub.s32 0, %v3658
        %v3660 = vrot.slane %v3656, %v3659
        %v3661 = vadd.f32 %v3655, %v3660
        %v3662 = vld [vmem:[#allocation2 + $0x310] sm:$0xff]
        %v3663 = vld [vmem:[#allocation2 + $0x318] sm:$0xff]
        %v3664 = vld [vmem:[#allocation2 + $0x320] sm:$0xff]
        %v3665 = vld [vmem:[#allocation2 + $0x328] sm:$0xff]
        %v3666 = vpack.c.bf16 %v3661, %v3661
        %v3667 = vpack.c.bf16 %v3663, %v3662
        %v3668 = vpack.c.bf16 %v3665, %v3664
        %v3669 = vld [vmem:[#allocation2 + $0x330] sm:$0x1]
        %v3670 = vlaneseq
        %v3671 = vshrl.u32 %v3670, 7
        %v3672 = vsub.s32 0, %v3671
        %v3673 = vrot.slane %v3669, %v3672
        %v3675 = vsel %vm239, %v3666, 0
        %3677 = vmatprep.subr.bf16.mxu0 0
        %3678 = vmatpush1.bf16.msra.mxu0 0
        %3679 = vmatprep.subr.bf16.mxu0 0
        %3680 = vmatpush1.bf16.msra.mxu0 0
        %3681 = vmatprep.subr.bf16.mxu0 0
        %3682 = vmatpush1.bf16.msra.mxu0 0
        %3683 = vmatprep.subr.bf16.mxu0 0
        %3684 = vmatpush1.bf16.msra.mxu0 0
        %3685 = vmatprep.subr.bf16.mxu0 0
        %3686 = vmatpush1.bf16.msra.mxu0 0
        %3687 = vmatprep.subr.bf16.mxu0 0
        %3688 = vmatpush1.bf16.msra.mxu0 0
        %3689 = vmatprep.subr.bf16.mxu0 0
        %3690 = vmatpush1.bf16.msra.mxu0 %v3668
        %3691 = vmatprep.subr.bf16.mxu0 0
        %3692 = vmatpush1.bf16.msra.mxu0 %v3667
        %3693 = vmatprep.subr.bf16.mxu0 0
        %3694 = vmatpush2.bf16.msra.mxu0 0
        %3695 = vmatprep.subr.bf16.mxu0 0
        %3696 = vmatpush2.bf16.msra.mxu0 0
        %3697 = vmatprep.subr.bf16.mxu0 0
        %3698 = vmatpush2.bf16.msra.mxu0 0
        %3699 = vmatprep.subr.bf16.mxu0 0
        %3700 = vmatpush2.bf16.msra.mxu0 0
        %3701 = vmatprep.subr.bf16.mxu0 0
        %3702 = vmatpush2.bf16.msra.mxu0 0
        %3703 = vmatprep.subr.bf16.mxu0 0
        %3704 = vmatpush2.bf16.msra.mxu0 0
        %3705 = vmatprep.subr.bf16.mxu0 0
        %3706 = vmatpush2.bf16.msra.mxu0 0
        %3707 = vmatprep.subr.bf16.mxu0 0
        %3708 = vmatpush2.bf16.msra.mxu0 0
        %3709 = vmatprep.mubr.bf16.mxu0 0
        %3710 = vmatmul.mubr.bf16.gmra.mxu0 %v3675
        %v3711 = vpop.f32.mrf.mxu0
        %v3712 = vadd.f32 %v3673, %v3711
        %v3713 = vpop.f32.mrf.mxu0
        %v3714 = vpop.f32.mrf.mxu0
        %v3715 = vpop.f32.mrf.mxu0
        %3716 = vdwg.mxu0
        %vm3717 = vcmask 80896
        %3718 = vst.msk [vmem:[%s151] sm:$0xff] %vm3717, %v3712
        %s3719 = sand.u32 %s72, 1
        %s3720 = scalar_lea.sflag [#allocation4], %s3719
        %s3721 = sand.u32 %s72, 1
        %s3722 = smul.addr %s3721, 8
        %s3723 = scalar_lea.vmem [#allocation5], %s3722
        // Predicated region
        $region33: #{_lambda_.1} parent=27 // pred_check
          %p3724 = pneg %p82
        $region34: #{_lambda_.1} parent=27 // pred_check_branch
          %3726 = sbr.rel (%p3724) target = $region36
        $region35: #{_lambda_.1} parent=27 // pred_region
          %s3728 = ssub.s32 128, 128
          %3729 = vsyncadd %s3720, %s3728
          %s3730 = smul.addr %s17, 128
          %s3731 = scalar_lea.hbm %s2, %s3730
          %s3733 = sshll.u32 %s3723, 4
          %s3734 = int_to_ptr.vmem [resolvable:$true] %s3733
          %3736 = dma.vmem_to_hbm [thread:$0]  %s3734, 128, %s3731, %s3720
        $region36: #{_lambda_.1} parent=27 // pred_fallthru
          _
      $region28: #{_lambda_.1} parent=5 // pred_fallthru
        _
      %p3737 = scmp.le.s32.totalorder 2, %s12
      // Predicated region
      $region37: #{_lambda_.1} parent=5 // pred_check
        %p3738 = pneg %p3737
      $region38: #{_lambda_.1} parent=5 // pred_check_branch
        %3740 = sbr.rel (%p3738) target = $region40
      $region39: #{_lambda_.1} parent=5 // pred_region
        %s3741 = ssub.s32 %s12, 2
        // Predicated region
        $region41: #{_lambda_.1} parent=39 // pred_check
          %p3742 = pneg %p88
        $region42: #{_lambda_.1} parent=39 // pred_check_branch
          %3744 = sbr.rel (%p3742) target = $region44
        $region43: #{_lambda_.1} parent=39 // pred_region
          %s3745 = sand.u32 %s73, 1
          %s3746 = scalar_lea.sflag [#allocation4], %s3745
          %s3747 = sand.u32 %s73, 1
          %s3748 = smul.addr %s3747, 8
          %s3749 = scalar_lea.vmem [#allocation5], %s3748
          %3750 = dma.done %s3746, 128
        $region44: #{_lambda_.1} parent=39 // pred_fallthru
          _
      $region40: #{_lambda_.1} parent=5 // pred_fallthru
        _
    $region6: #{_lambda_.1} parent=1 // loop_footer
      %s16 = sadd.s32 1, %s12
    $region7: #{_lambda_.1} parent=1 // loop_footer_branch
      %11 = sbr.rel target = $region3
    $region8: #{_lambda_.1} parent=1 // loop_exit
      _
    %3751 = vsyncpa [#allocation3], 1
    %s3752 = scalar_lea.sflag [#allocation3], 1
    %3753 = vsyncpa %s3752, 1
    %3754 = vsyncpa [#allocation4], 1
    %s3755 = scalar_lea.sflag [#allocation4], 1
    %3756 = vsyncpa %s3755, 1

</llo_original>
